<compile_context>
chip_gen: v7x
topology: tpu7x:2x2x1
jax: 0.10.0
libtpu: 0.0.40
codegen_flags: <defaults>
</compile_context>

<pallas_src>
import functools
import math

import jax
import jax.numpy as jnp
import numpy as np
from jax.experimental import pallas as pl
from jax.experimental.pallas import tpu as pltpu


# 3x3 window offsets in the row-major (ky, kx) order matching a PyTorch conv
# weight reshaped (C, 1, 3, 3) -> (C, 9).
_OFFSETS = tuple((dy, dx) for dy in (-1, 0, 1) for dx in (-1, 0, 1))
_INV_SQRT2 = 0.7071067811865476


def _gelu_exact(u):
    """Exact (erf-based) GELU; erf via Abramowitz&Stegun 7.1.26 (|err| < 1.5e-7)."""
    z = u * _INV_SQRT2
    za = jnp.abs(z)
    t = 1.0 / (1.0 + 0.3275911 * za)
    poly = ((((1.061405429 * t - 1.453152027) * t + 1.421413741) * t
             - 0.284496736) * t + 0.254829592) * t
    erf_abs = 1.0 - poly * jnp.exp(-za * za)
    erf_z = jnp.where(z < 0.0, -erf_abs, erf_abs)
    return 0.5 * u * (1.0 + erf_z)


def _round_up8(n):
    return -(-n // 8) * 8


def _dw_inception_kernel(x_ref, sc_ref, wp_ref, o_ref, *,
                         W, cin, c4, c6, offs, bb):
    o_head, o_dw12, o_mid, o_dw2, o_tail = offs
    n_head = 2 * c4 + 2 * c6

    # Stencil constants (loaded once, reused by all three stencil passes).
    mask_rows = [sc_ref[j:j + 1, :] for j in range(8)]   # non-centre border masks
    inv_cnt = sc_ref[8:9, :]                             # 1 / #valid taps per pixel

    # Weight views from the single packed operand (8-row aligned sections).
    w_head = wp_ref[o_head:o_head + n_head, 0:cin]        # (2c4+2c6, cin) stacked heads
    w_dw12 = wp_ref[o_dw12:o_dw12 + 2 * c6, 0:9]          # (2c6, 9)   w1dw | w2dw1
    w_mid = wp_ref[o_mid:o_mid + 2 * c4, 0:2 * c6]        # (2c4, 2c6) blockdiag(w1b,w2b)
    w_dw2 = wp_ref[o_dw2:o_dw2 + c4, 0:9]                 # (c4, 9)    w2dw2
    w_tail = wp_ref[o_tail:o_tail + c4, 0:c4]             # (c4, c4)   w2c

    def matmul(w, t):  # exact-f32 channel contraction on the MXU
        return jnp.dot(w, t, precision=jax.lax.Precision.HIGHEST,
                       preferred_element_type=jnp.float32)

    def taps3x3(t):
        # The 9 shifted views of t (C, HW); out-of-image taps zeroed by masks.
        out, mi = [], 0
        for dy, dx in _OFFSETS:
            if dy == 0 and dx == 0:
                out.append(t)                       # centre tap: mask is all ones
            else:
                s = -(dy * W + dx)
                out.append(jnp.roll(t, s, axis=1) * mask_rows[mi])
                mi += 1
        return out

    def dwconv3x3(t, w):                            # per-channel 3x3 conv, pad=1
        tp = taps3x3(t)
        acc = tp[0] * w[:, 0:1]
        for j in range(1, 9):
            acc = acc + tp[j] * w[:, j:j + 1]
        return acc

    def avgpool3x3(t):                              # 3x3 pool, count_include_pad=False
        tp = taps3x3(t)
        s = tp[0]
        for j in range(1, 9):
            s = s + tp[j]
        return s * inv_cnt

    for bi in range(bb):                            # statically unrolled image loop
        x = x_ref[bi].astype(jnp.float32)           # (cin, HW), lane axis = H*W

        # --- fused head: all four branch-entry 1x1 convs in one matmul ---
        h = matmul(w_head, x)                       # (c4 + 2*c6 + c4, HW)
        hg = _gelu_exact(h[0:c4 + 2 * c6, :])       # one GELU over the b0/b1/b2 rows
        y0 = hg[0:c4, :]                            # branch 0 done
        u12 = hg[c4:c4 + 2 * c6, :]                 # packed branch-1/2 slab (2c6, HW)
        h3 = h[c4 + 2 * c6:, :]                     # branch 3: GELU deferred past pool

        # --- packed DW 3x3 + GELU (branches 1 & 2), block-diagonal mid 1x1s ---
        d12 = _gelu_exact(dwconv3x3(u12, w_dw12))   # (2*c6, HW)
        m12 = _gelu_exact(matmul(w_mid, d12))       # (2*c4, HW)
        y1 = m12[0:c4, :]                           # branch 1 done
        v2 = m12[c4:, :]

        # --- branch 2 tail: DW 3x3 -> 1x1 ---
        y2 = _gelu_exact(matmul(w_tail, _gelu_exact(dwconv3x3(v2, w_dw2))))

        # --- branch 3: pool the already-projected slab (conv & pool commute) ---
        y3 = _gelu_exact(avgpool3x3(h3))

        # single aligned (4*c4, HW) store
        o_ref[bi] = jnp.concatenate([y0, y1, y2, y3], axis=0).astype(o_ref.dtype)


def _pack_weights(p2d, cin, c4, c6):
    """Fuse/stack the 10 conv weights into one sublane-aligned 2-D operand."""
    w_head = jnp.concatenate(
        [p2d["w0"], p2d["w1a"], p2d["w2a"], p2d["w3"]], axis=0)        # (2c4+2c6, cin)
    w_dw12 = jnp.concatenate([p2d["w1dw"], p2d["w2dw1"]], axis=0)      # (2c6, 9)
    w_mid = jnp.zeros((2 * c4, 2 * c6), jnp.float32)
    w_mid = w_mid.at[:c4, :c6].set(p2d["w1b"]).at[c4:, c6:].set(p2d["w2b"])
    sections = [w_head, w_dw12, w_mid, p2d["w2dw2"], p2d["w2c"]]

    cols = max(cin, 9, 2 * c6, c4)
    offs, blocks, off = [], [], 0
    for w in sections:
        offs.append(off)
        rows = _round_up8(w.shape[0])
        blk = jnp.zeros((rows, cols), jnp.float32)
        blk = blk.at[:w.shape[0], :w.shape[1]].set(w.astype(jnp.float32))
        blocks.append(blk)
        off += rows
    return jnp.concatenate(blocks, axis=0), tuple(offs)


def dw_inception_forward(x, p2d, *, images_per_step=1):
    """x: (B, Cin, H, W) float32 NCHW. p2d: dict of 2-D kernel weights."""
    B, Cin, H, W = x.shape
    HW = H * W
    c4 = p2d["w0"].shape[0]       # out_dim // 4
    c6 = p2d["w1a"].shape[0]      # out_dim // 6
    Cout = 4 * c4
    bb = images_per_step
    assert B % bb == 0

    # Free reshape (no transpose): NCHW -> (B, Cin, H*W); H*W is the lane axis.
    x3 = x.reshape(B, Cin, HW)

    # Border-validity masks for the 8 non-centre taps of a 3x3/pad=1 window plus
    # the reciprocal valid-tap count (count_include_pad=False divisor).
    ys, xs = np.divmod(np.arange(HW), W)
    rows = []
    cnt = np.ones(HW, np.float32)            # centre tap is always valid
    for dy, dx in _OFFSETS:
        if dy == 0 and dx == 0:
            continue
        ok = ((xs + dx >= 0) & (xs + dx < W) &
              (ys + dy >= 0) & (ys + dy < H)).astype(np.float32)
        rows.append(ok)
        cnt += ok
    rows.append(1.0 / cnt)
    sc = jnp.asarray(np.stack(rows, axis=0))  # (9, HW): 8 masks + inverse count

    wpack, offs = _pack_weights(p2d, Cin, c4, c6)

    kernel = functools.partial(_dw_inception_kernel, W=W, cin=Cin, c4=c4,
                               c6=c6, offs=offs, bb=bb)

    out = pl.pallas_call(
        kernel,
        out_shape=jax.ShapeDtypeStruct((B, Cout, HW), x.dtype),
        grid_spec=pltpu.PrefetchScalarGridSpec(
            num_scalar_prefetch=0,
            grid=(B // bb,),
            in_specs=[
                pl.BlockSpec((bb, Cin, HW), lambda b: (b, 0, 0)),
                pl.BlockSpec((9, HW), lambda b: (0, 0)),
                pl.BlockSpec(wpack.shape, lambda b: (0, 0)),
            ],
            out_specs=pl.BlockSpec((bb, Cout, HW), lambda b: (b, 0, 0)),
        ),
        compiler_params=pltpu.CompilerParams(
            dimension_semantics=("parallel",)),
    )(x3, sc, wpack)

    # TODO(synk): for large H*W, add a second "parallel" grid axis over spatial
    # tiles with 1-pixel halos (size tiles for v7x's 64 MiB VMEM and raise
    # vmem_limit_bytes on v6e); optionally cast stencil/GELU intermediates to
    # bf16 on v6e/v7x only (keep f32 on v5e).
    return out.reshape(B, Cout, H, W)


def init_dw_inception_params(key, in_dim, out_dim):
    """PyTorch-default-style uniform(-1/sqrt(fan_in), 1/sqrt(fan_in)) init."""
    c4, c6 = out_dim // 4, out_dim // 6

    def conv_w(k, cout, cin, ksz):
        bound = 1.0 / math.sqrt(cin * ksz * ksz)
        return jax.random.uniform(k, (cout, cin, ksz, ksz), jnp.float32,
                                  -bound, bound)

    keys = jax.random.split(key, 10)
    p4d = {
        "w0":    conv_w(keys[0], c4, in_dim, 1),
        "w1a":   conv_w(keys[1], c6, in_dim, 1),
        "w1dw":  conv_w(keys[2], c6, 1, 3),       # depthwise: (C, 1, 3, 3)
        "w1b":   conv_w(keys[3], c4, c6, 1),
        "w2a":   conv_w(keys[4], c6, in_dim, 1),
        "w2dw1": conv_w(keys[5], c6, 1, 3),
        "w2b":   conv_w(keys[6], c4, c6, 1),
        "w2dw2": conv_w(keys[7], c4, 1, 3),
        "w2c":   conv_w(keys[8], c4, c4, 1),
        "w3":    conv_w(keys[9], c4, in_dim, 1),
    }
    # 2-D views for the Pallas kernel: 1x1 -> (Cout, Cin); DW 3x3 -> (C, 9).
    p2d = {n: (w.reshape(w.shape[0], 9) if n in ("w1dw", "w2dw1", "w2dw2")
               else w.reshape(w.shape[0], w.shape[1]))
           for n, w in p4d.items()}
    return p2d, p4d


def _reference(x, p4d):
    """Pure-JAX (XLA) reference with exact GELU and HIGHEST-precision convs."""
    prec = jax.lax.Precision.HIGHEST
    dn = ("NCHW", "OIHW", "NCHW")

    def conv1x1(t, w):
        return jax.lax.conv_general_dilated(
            t, w, (1, 1), "VALID", dimension_numbers=dn, precision=prec)

    def dwconv(t, w):
        return jax.lax.conv_general_dilated(
            t, w, (1, 1), ((1, 1), (1, 1)), dimension_numbers=dn,
            feature_group_count=t.shape[1], precision=prec)

    def gelu(t):
        return 0.5 * t * (1.0 + jax.scipy.special.erf(t * _INV_SQRT2))

    def avgpool(t):
        win, st = (1, 1, 3, 3), (1, 1, 1, 1)
        pad = ((0, 0), (0, 0), (1, 1), (1, 1))
        s = jax.lax.reduce_window(t, 0.0, jax.lax.add, win, st, pad)
        c = jax.lax.reduce_window(jnp.ones_like(t), 0.0, jax.lax.add, win, st, pad)
        return s / c

    x0 = gelu(conv1x1(x, p4d["w0"]))
    x1 = gelu(conv1x1(x, p4d["w1a"]))
    x1 = gelu(dwconv(x1, p4d["w1dw"]))
    x1 = gelu(conv1x1(x1, p4d["w1b"]))
    x2 = gelu(conv1x1(x, p4d["w2a"]))
    x2 = gelu(dwconv(x2, p4d["w2dw1"]))
    x2 = gelu(conv1x1(x2, p4d["w2b"]))
    x2 = gelu(dwconv(x2, p4d["w2dw2"]))
    x2 = gelu(conv1x1(x2, p4d["w2c"]))
    x3 = gelu(conv1x1(avgpool(x), p4d["w3"]))
    return jnp.concatenate([x0, x1, x2, x3], axis=1)


if __name__ == "__main__":
    B, in_dim, H, W = 2, 16, 16, 16
    out_dim = 24   # branch widths: out_dim//4 = 6, out_dim//6 = 4

    root = jax.random.PRNGKey(0)
    kx, kp = jax.random.split(root)
    x = jax.random.normal(kx, (B, in_dim, H, W), dtype=jnp.float32)
    p2d, p4d = init_dw_inception_params(kp, in_dim, out_dim)

    y = dw_inception_forward(x, p2d)
    jax.block_until_ready(y)
    assert y.shape == (B, out_dim, H, W)

    ref = _reference(x, p4d)
    err = float(jnp.max(jnp.abs(y - ref)))
    assert err < 1e-3, f"max abs error {err}"

    print("KERNEL_OK")
</pallas_src>

<mosaic_0001>
module attributes {stable_mosaic.version = 11 : i64} {
  func.func @_dw_inception_kernel(%arg0: i32, %arg1: memref<1x16x256xf32, #tpu.memory_space<vmem>>, %arg2: memref<9x256xf32, #tpu.memory_space<vmem>>, %arg3: memref<64x16xf32, #tpu.memory_space<vmem>>, %arg4: memref<1x24x256xf32, #tpu.memory_space<vmem>>) attributes {dimension_semantics = [#tpu.dimension_semantics<parallel>], iteration_bounds = array<i64: 2>, scalar_prefetch = 0 : i64, scratch_operands = 0 : i64, tpu.core_type = #tpu.core_type<tc>, window_params = [{transform_indices = @transform_0, window_bounds = array<i64: 1, 16, 256>}, {pipeline_mode = #tpu.pipeline_mode<synchronous>, transform_indices = @transform_1, window_bounds = array<i64: 9, 256>}, {pipeline_mode = #tpu.pipeline_mode<synchronous>, transform_indices = @transform_2, window_bounds = array<i64: 64, 16>}, {transform_indices = @transform_3, window_bounds = array<i64: 1, 24, 256>}]} {
    %c0 = arith.constant 0 : index
    %c0_0 = arith.constant 0 : index
    %0 = vector.load %arg2[%c0, %c0_0] : memref<9x256xf32, #tpu.memory_space<vmem>>, vector<1x256xf32>
    %c1 = arith.constant 1 : index
    %c0_1 = arith.constant 0 : index
    %1 = vector.load %arg2[%c1, %c0_1] : memref<9x256xf32, #tpu.memory_space<vmem>>, vector<1x256xf32>
    %c2 = arith.constant 2 : index
    %c0_2 = arith.constant 0 : index
    %2 = vector.load %arg2[%c2, %c0_2] : memref<9x256xf32, #tpu.memory_space<vmem>>, vector<1x256xf32>
    %c3 = arith.constant 3 : index
    %c0_3 = arith.constant 0 : index
    %3 = vector.load %arg2[%c3, %c0_3] : memref<9x256xf32, #tpu.memory_space<vmem>>, vector<1x256xf32>
    %c4 = arith.constant 4 : index
    %c0_4 = arith.constant 0 : index
    %4 = vector.load %arg2[%c4, %c0_4] : memref<9x256xf32, #tpu.memory_space<vmem>>, vector<1x256xf32>
    %c5 = arith.constant 5 : index
    %c0_5 = arith.constant 0 : index
    %5 = vector.load %arg2[%c5, %c0_5] : memref<9x256xf32, #tpu.memory_space<vmem>>, vector<1x256xf32>
    %c6 = arith.constant 6 : index
    %c0_6 = arith.constant 0 : index
    %6 = vector.load %arg2[%c6, %c0_6] : memref<9x256xf32, #tpu.memory_space<vmem>>, vector<1x256xf32>
    %c7 = arith.constant 7 : index
    %c0_7 = arith.constant 0 : index
    %7 = vector.load %arg2[%c7, %c0_7] : memref<9x256xf32, #tpu.memory_space<vmem>>, vector<1x256xf32>
    %c8 = arith.constant 8 : index
    %c0_8 = arith.constant 0 : index
    %8 = vector.load %arg2[%c8, %c0_8] : memref<9x256xf32, #tpu.memory_space<vmem>>, vector<1x256xf32>
    %c0_9 = arith.constant 0 : index
    %c0_10 = arith.constant 0 : index
    %9 = vector.load %arg3[%c0_9, %c0_10] : memref<64x16xf32, #tpu.memory_space<vmem>>, vector<20x16xf32>
    %c24 = arith.constant 24 : index
    %c0_11 = arith.constant 0 : index
    %10 = vector.load %arg3[%c24, %c0_11] : memref<64x16xf32, #tpu.memory_space<vmem>>, vector<8x9xf32>
    %c32 = arith.constant 32 : index
    %c0_12 = arith.constant 0 : index
    %11 = vector.load %arg3[%c32, %c0_12] : memref<64x16xf32, #tpu.memory_space<vmem>>, vector<12x8xf32>
    %c48 = arith.constant 48 : index
    %c0_13 = arith.constant 0 : index
    %12 = vector.load %arg3[%c48, %c0_13] : memref<64x16xf32, #tpu.memory_space<vmem>>, vector<6x9xf32>
    %c56 = arith.constant 56 : index
    %c0_14 = arith.constant 0 : index
    %13 = vector.load %arg3[%c56, %c0_14] : memref<64x16xf32, #tpu.memory_space<vmem>>, vector<6x6xf32>
    %c0_15 = arith.constant 0 : index
    %c0_16 = arith.constant 0 : index
    %c0_17 = arith.constant 0 : index
    %14 = vector.load %arg1[%c0_15, %c0_16, %c0_17] : memref<1x16x256xf32, #tpu.memory_space<vmem>>, vector<1x16x256xf32>
    %15 = vector.shape_cast %14 : vector<1x16x256xf32> to vector<16x256xf32>
    %cst = arith.constant dense<0.000000e+00> : vector<20x256xf32>
    %16 = tpu.matmul %9, %15, %cst {dimension_numbers = #tpu.dot_dimension_numbers<[1], [0], [0], [1], [0, 0, 1, 1], [], []>, precision = #tpu.contract_precision<fp32>} : vector<20x16xf32>, vector<16x256xf32>, vector<20x256xf32> -> vector<20x256xf32>
    %17 = vector.extract_strided_slice %16 {offsets = [0, 0], sizes = [14, 256], strides = [1, 1]} : vector<20x256xf32> to vector<14x256xf32>
    %cst_18 = arith.constant 0.707106769 : f32
    %18 = vector.broadcast %cst_18 : f32 to vector<14x256xf32>
    %19 = arith.mulf %17, %18 : vector<14x256xf32>
    %20 = math.absf %19 : vector<14x256xf32>
    %cst_19 = arith.constant 0.327591091 : f32
    %21 = vector.broadcast %cst_19 : f32 to vector<14x256xf32>
    %22 = arith.mulf %21, %20 : vector<14x256xf32>
    %cst_20 = arith.constant 1.000000e+00 : f32
    %23 = vector.broadcast %cst_20 : f32 to vector<14x256xf32>
    %24 = arith.addf %23, %22 : vector<14x256xf32>
    %cst_21 = arith.constant 1.000000e+00 : f32
    %25 = vector.broadcast %cst_21 : f32 to vector<14x256xf32>
    %26 = arith.divf %25, %24 : vector<14x256xf32>
    %cst_22 = arith.constant 1.06140542 : f32
    %27 = vector.broadcast %cst_22 : f32 to vector<14x256xf32>
    %28 = arith.mulf %27, %26 : vector<14x256xf32>
    %cst_23 = arith.constant 1.45315206 : f32
    %29 = vector.broadcast %cst_23 : f32 to vector<14x256xf32>
    %30 = arith.subf %28, %29 : vector<14x256xf32>
    %31 = arith.mulf %30, %26 : vector<14x256xf32>
    %cst_24 = arith.constant 1.42141378 : f32
    %32 = vector.broadcast %cst_24 : f32 to vector<14x256xf32>
    %33 = arith.addf %31, %32 : vector<14x256xf32>
    %34 = arith.mulf %33, %26 : vector<14x256xf32>
    %cst_25 = arith.constant 0.284496725 : f32
    %35 = vector.broadcast %cst_25 : f32 to vector<14x256xf32>
    %36 = arith.subf %34, %35 : vector<14x256xf32>
    %37 = arith.mulf %36, %26 : vector<14x256xf32>
    %cst_26 = arith.constant 0.254829586 : f32
    %38 = vector.broadcast %cst_26 : f32 to vector<14x256xf32>
    %39 = arith.addf %37, %38 : vector<14x256xf32>
    %40 = arith.mulf %39, %26 : vector<14x256xf32>
    %cst_27 = arith.constant 0.000000e+00 : f32
    %41 = vector.broadcast %cst_27 : f32 to vector<14x256xf32>
    %42 = arith.subf %41, %20 : vector<14x256xf32>
    %43 = arith.mulf %42, %20 : vector<14x256xf32>
    %44 = math.exp %43 : vector<14x256xf32>
    %45 = arith.mulf %40, %44 : vector<14x256xf32>
    %cst_28 = arith.constant 1.000000e+00 : f32
    %46 = vector.broadcast %cst_28 : f32 to vector<14x256xf32>
    %47 = arith.subf %46, %45 : vector<14x256xf32>
    %cst_29 = arith.constant 0.000000e+00 : f32
    %48 = vector.broadcast %cst_29 : f32 to vector<14x256xf32>
    %49 = arith.cmpf olt, %19, %48 : vector<14x256xf32>
    %cst_30 = arith.constant 0.000000e+00 : f32
    %50 = vector.broadcast %cst_30 : f32 to vector<14x256xf32>
    %51 = arith.subf %50, %47 : vector<14x256xf32>
    %52 = arith.select %49, %51, %47 : vector<14x256xi1>, vector<14x256xf32>
    %cst_31 = arith.constant 5.000000e-01 : f32
    %53 = vector.broadcast %cst_31 : f32 to vector<14x256xf32>
    %54 = arith.mulf %53, %17 : vector<14x256xf32>
    %cst_32 = arith.constant 1.000000e+00 : f32
    %55 = vector.broadcast %cst_32 : f32 to vector<14x256xf32>
    %56 = arith.addf %55, %52 : vector<14x256xf32>
    %57 = arith.mulf %54, %56 : vector<14x256xf32>
    %58 = vector.extract_strided_slice %57 {offsets = [0, 0], sizes = [6, 256], strides = [1, 1]} : vector<14x256xf32> to vector<6x256xf32>
    %59 = vector.extract_strided_slice %57 {offsets = [6, 0], sizes = [8, 256], strides = [1, 1]} : vector<14x256xf32> to vector<8x256xf32>
    %60 = vector.extract_strided_slice %16 {offsets = [14, 0], sizes = [6, 256], strides = [1, 1]} : vector<20x256xf32> to vector<6x256xf32>
    %61 = vector.extract_strided_slice %59 {offsets = [0, 239], sizes = [8, 17], strides = [1, 1]} : vector<8x256xf32> to vector<8x17xf32>
    %62 = vector.extract_strided_slice %59 {offsets = [0, 0], sizes = [8, 239], strides = [1, 1]} : vector<8x256xf32> to vector<8x239xf32>
    %63 = tpu.concatenate %61, %62 in 1 : vector<8x17xf32>, vector<8x239xf32> -> vector<8x256xf32>
    %64 = vector.broadcast %0 : vector<1x256xf32> to vector<8x256xf32>
    %65 = arith.mulf %63, %64 : vector<8x256xf32>
    %66 = vector.extract_strided_slice %59 {offsets = [0, 240], sizes = [8, 16], strides = [1, 1]} : vector<8x256xf32> to vector<8x16xf32>
    %67 = vector.extract_strided_slice %59 {offsets = [0, 0], sizes = [8, 240], strides = [1, 1]} : vector<8x256xf32> to vector<8x240xf32>
    %68 = tpu.concatenate %66, %67 in 1 : vector<8x16xf32>, vector<8x240xf32> -> vector<8x256xf32>
    %69 = vector.broadcast %1 : vector<1x256xf32> to vector<8x256xf32>
    %70 = arith.mulf %68, %69 : vector<8x256xf32>
    %71 = vector.extract_strided_slice %59 {offsets = [0, 241], sizes = [8, 15], strides = [1, 1]} : vector<8x256xf32> to vector<8x15xf32>
    %72 = vector.extract_strided_slice %59 {offsets = [0, 0], sizes = [8, 241], strides = [1, 1]} : vector<8x256xf32> to vector<8x241xf32>
    %73 = tpu.concatenate %71, %72 in 1 : vector<8x15xf32>, vector<8x241xf32> -> vector<8x256xf32>
    %74 = vector.broadcast %2 : vector<1x256xf32> to vector<8x256xf32>
    %75 = arith.mulf %73, %74 : vector<8x256xf32>
    %76 = vector.extract_strided_slice %59 {offsets = [0, 255], sizes = [8, 1], strides = [1, 1]} : vector<8x256xf32> to vector<8x1xf32>
    %77 = vector.extract_strided_slice %59 {offsets = [0, 0], sizes = [8, 255], strides = [1, 1]} : vector<8x256xf32> to vector<8x255xf32>
    %78 = tpu.concatenate %76, %77 in 1 : vector<8x1xf32>, vector<8x255xf32> -> vector<8x256xf32>
    %79 = vector.broadcast %3 : vector<1x256xf32> to vector<8x256xf32>
    %80 = arith.mulf %78, %79 : vector<8x256xf32>
    %81 = vector.extract_strided_slice %59 {offsets = [0, 1], sizes = [8, 255], strides = [1, 1]} : vector<8x256xf32> to vector<8x255xf32>
    %82 = vector.extract_strided_slice %59 {offsets = [0, 0], sizes = [8, 1], strides = [1, 1]} : vector<8x256xf32> to vector<8x1xf32>
    %83 = tpu.concatenate %81, %82 in 1 : vector<8x255xf32>, vector<8x1xf32> -> vector<8x256xf32>
    %84 = vector.broadcast %4 : vector<1x256xf32> to vector<8x256xf32>
    %85 = arith.mulf %83, %84 : vector<8x256xf32>
    %86 = vector.extract_strided_slice %59 {offsets = [0, 15], sizes = [8, 241], strides = [1, 1]} : vector<8x256xf32> to vector<8x241xf32>
    %87 = vector.extract_strided_slice %59 {offsets = [0, 0], sizes = [8, 15], strides = [1, 1]} : vector<8x256xf32> to vector<8x15xf32>
    %88 = tpu.concatenate %86, %87 in 1 : vector<8x241xf32>, vector<8x15xf32> -> vector<8x256xf32>
    %89 = vector.broadcast %5 : vector<1x256xf32> to vector<8x256xf32>
    %90 = arith.mulf %88, %89 : vector<8x256xf32>
    %91 = vector.extract_strided_slice %59 {offsets = [0, 16], sizes = [8, 240], strides = [1, 1]} : vector<8x256xf32> to vector<8x240xf32>
    %92 = vector.extract_strided_slice %59 {offsets = [0, 0], sizes = [8, 16], strides = [1, 1]} : vector<8x256xf32> to vector<8x16xf32>
    %93 = tpu.concatenate %91, %92 in 1 : vector<8x240xf32>, vector<8x16xf32> -> vector<8x256xf32>
    %94 = vector.broadcast %6 : vector<1x256xf32> to vector<8x256xf32>
    %95 = arith.mulf %93, %94 : vector<8x256xf32>
    %96 = vector.extract_strided_slice %59 {offsets = [0, 17], sizes = [8, 239], strides = [1, 1]} : vector<8x256xf32> to vector<8x239xf32>
    %97 = vector.extract_strided_slice %59 {offsets = [0, 0], sizes = [8, 17], strides = [1, 1]} : vector<8x256xf32> to vector<8x17xf32>
    %98 = tpu.concatenate %96, %97 in 1 : vector<8x239xf32>, vector<8x17xf32> -> vector<8x256xf32>
    %99 = vector.broadcast %7 : vector<1x256xf32> to vector<8x256xf32>
    %100 = arith.mulf %98, %99 : vector<8x256xf32>
    %101 = vector.extract_strided_slice %10 {offsets = [0, 0], sizes = [8, 1], strides = [1, 1]} : vector<8x9xf32> to vector<8x1xf32>
    %102 = vector.broadcast %101 : vector<8x1xf32> to vector<8x256xf32>
    %103 = arith.mulf %65, %102 : vector<8x256xf32>
    %104 = vector.extract_strided_slice %10 {offsets = [0, 1], sizes = [8, 1], strides = [1, 1]} : vector<8x9xf32> to vector<8x1xf32>
    %105 = vector.broadcast %104 : vector<8x1xf32> to vector<8x256xf32>
    %106 = arith.mulf %70, %105 : vector<8x256xf32>
    %107 = arith.addf %103, %106 : vector<8x256xf32>
    %108 = vector.extract_strided_slice %10 {offsets = [0, 2], sizes = [8, 1], strides = [1, 1]} : vector<8x9xf32> to vector<8x1xf32>
    %109 = vector.broadcast %108 : vector<8x1xf32> to vector<8x256xf32>
    %110 = arith.mulf %75, %109 : vector<8x256xf32>
    %111 = arith.addf %107, %110 : vector<8x256xf32>
    %112 = vector.extract_strided_slice %10 {offsets = [0, 3], sizes = [8, 1], strides = [1, 1]} : vector<8x9xf32> to vector<8x1xf32>
    %113 = vector.broadcast %112 : vector<8x1xf32> to vector<8x256xf32>
    %114 = arith.mulf %80, %113 : vector<8x256xf32>
    %115 = arith.addf %111, %114 : vector<8x256xf32>
    %116 = vector.extract_strided_slice %10 {offsets = [0, 4], sizes = [8, 1], strides = [1, 1]} : vector<8x9xf32> to vector<8x1xf32>
    %117 = vector.broadcast %116 : vector<8x1xf32> to vector<8x256xf32>
    %118 = arith.mulf %59, %117 : vector<8x256xf32>
    %119 = arith.addf %115, %118 : vector<8x256xf32>
    %120 = vector.extract_strided_slice %10 {offsets = [0, 5], sizes = [8, 1], strides = [1, 1]} : vector<8x9xf32> to vector<8x1xf32>
    %121 = vector.broadcast %120 : vector<8x1xf32> to vector<8x256xf32>
    %122 = arith.mulf %85, %121 : vector<8x256xf32>
    %123 = arith.addf %119, %122 : vector<8x256xf32>
    %124 = vector.extract_strided_slice %10 {offsets = [0, 6], sizes = [8, 1], strides = [1, 1]} : vector<8x9xf32> to vector<8x1xf32>
    %125 = vector.broadcast %124 : vector<8x1xf32> to vector<8x256xf32>
    %126 = arith.mulf %90, %125 : vector<8x256xf32>
    %127 = arith.addf %123, %126 : vector<8x256xf32>
    %128 = vector.extract_strided_slice %10 {offsets = [0, 7], sizes = [8, 1], strides = [1, 1]} : vector<8x9xf32> to vector<8x1xf32>
    %129 = vector.broadcast %128 : vector<8x1xf32> to vector<8x256xf32>
    %130 = arith.mulf %95, %129 : vector<8x256xf32>
    %131 = arith.addf %127, %130 : vector<8x256xf32>
    %132 = vector.extract_strided_slice %10 {offsets = [0, 8], sizes = [8, 1], strides = [1, 1]} : vector<8x9xf32> to vector<8x1xf32>
    %133 = vector.broadcast %132 : vector<8x1xf32> to vector<8x256xf32>
    %134 = arith.mulf %100, %133 : vector<8x256xf32>
    %135 = arith.addf %131, %134 : vector<8x256xf32>
    %cst_33 = arith.constant 0.707106769 : f32
    %136 = vector.broadcast %cst_33 : f32 to vector<8x256xf32>
    %137 = arith.mulf %135, %136 : vector<8x256xf32>
    %138 = math.absf %137 : vector<8x256xf32>
    %cst_34 = arith.constant 0.327591091 : f32
    %139 = vector.broadcast %cst_34 : f32 to vector<8x256xf32>
    %140 = arith.mulf %139, %138 : vector<8x256xf32>
    %cst_35 = arith.constant 1.000000e+00 : f32
    %141 = vector.broadcast %cst_35 : f32 to vector<8x256xf32>
    %142 = arith.addf %141, %140 : vector<8x256xf32>
    %cst_36 = arith.constant 1.000000e+00 : f32
    %143 = vector.broadcast %cst_36 : f32 to vector<8x256xf32>
    %144 = arith.divf %143, %142 : vector<8x256xf32>
    %cst_37 = arith.constant 1.06140542 : f32
    %145 = vector.broadcast %cst_37 : f32 to vector<8x256xf32>
    %146 = arith.mulf %145, %144 : vector<8x256xf32>
    %cst_38 = arith.constant 1.45315206 : f32
    %147 = vector.broadcast %cst_38 : f32 to vector<8x256xf32>
    %148 = arith.subf %146, %147 : vector<8x256xf32>
    %149 = arith.mulf %148, %144 : vector<8x256xf32>
    %cst_39 = arith.constant 1.42141378 : f32
    %150 = vector.broadcast %cst_39 : f32 to vector<8x256xf32>
    %151 = arith.addf %149, %150 : vector<8x256xf32>
    %152 = arith.mulf %151, %144 : vector<8x256xf32>
    %cst_40 = arith.constant 0.284496725 : f32
    %153 = vector.broadcast %cst_40 : f32 to vector<8x256xf32>
    %154 = arith.subf %152, %153 : vector<8x256xf32>
    %155 = arith.mulf %154, %144 : vector<8x256xf32>
    %cst_41 = arith.constant 0.254829586 : f32
    %156 = vector.broadcast %cst_41 : f32 to vector<8x256xf32>
    %157 = arith.addf %155, %156 : vector<8x256xf32>
    %158 = arith.mulf %157, %144 : vector<8x256xf32>
    %cst_42 = arith.constant 0.000000e+00 : f32
    %159 = vector.broadcast %cst_42 : f32 to vector<8x256xf32>
    %160 = arith.subf %159, %138 : vector<8x256xf32>
    %161 = arith.mulf %160, %138 : vector<8x256xf32>
    %162 = math.exp %161 : vector<8x256xf32>
    %163 = arith.mulf %158, %162 : vector<8x256xf32>
    %cst_43 = arith.constant 1.000000e+00 : f32
    %164 = vector.broadcast %cst_43 : f32 to vector<8x256xf32>
    %165 = arith.subf %164, %163 : vector<8x256xf32>
    %cst_44 = arith.constant 0.000000e+00 : f32
    %166 = vector.broadcast %cst_44 : f32 to vector<8x256xf32>
    %167 = arith.cmpf olt, %137, %166 : vector<8x256xf32>
    %cst_45 = arith.constant 0.000000e+00 : f32
    %168 = vector.broadcast %cst_45 : f32 to vector<8x256xf32>
    %169 = arith.subf %168, %165 : vector<8x256xf32>
    %170 = arith.select %167, %169, %165 : vector<8x256xi1>, vector<8x256xf32>
    %cst_46 = arith.constant 5.000000e-01 : f32
    %171 = vector.broadcast %cst_46 : f32 to vector<8x256xf32>
    %172 = arith.mulf %171, %135 : vector<8x256xf32>
    %cst_47 = arith.constant 1.000000e+00 : f32
    %173 = vector.broadcast %cst_47 : f32 to vector<8x256xf32>
    %174 = arith.addf %173, %170 : vector<8x256xf32>
    %175 = arith.mulf %172, %174 : vector<8x256xf32>
    %cst_48 = arith.constant dense<0.000000e+00> : vector<12x256xf32>
    %176 = tpu.matmul %11, %175, %cst_48 {dimension_numbers = #tpu.dot_dimension_numbers<[1], [0], [0], [1], [0, 0, 1, 1], [], []>, precision = #tpu.contract_precision<fp32>} : vector<12x8xf32>, vector<8x256xf32>, vector<12x256xf32> -> vector<12x256xf32>
    %cst_49 = arith.constant 0.707106769 : f32
    %177 = vector.broadcast %cst_49 : f32 to vector<12x256xf32>
    %178 = arith.mulf %176, %177 : vector<12x256xf32>
    %179 = math.absf %178 : vector<12x256xf32>
    %cst_50 = arith.constant 0.327591091 : f32
    %180 = vector.broadcast %cst_50 : f32 to vector<12x256xf32>
    %181 = arith.mulf %180, %179 : vector<12x256xf32>
    %cst_51 = arith.constant 1.000000e+00 : f32
    %182 = vector.broadcast %cst_51 : f32 to vector<12x256xf32>
    %183 = arith.addf %182, %181 : vector<12x256xf32>
    %cst_52 = arith.constant 1.000000e+00 : f32
    %184 = vector.broadcast %cst_52 : f32 to vector<12x256xf32>
    %185 = arith.divf %184, %183 : vector<12x256xf32>
    %cst_53 = arith.constant 1.06140542 : f32
    %186 = vector.broadcast %cst_53 : f32 to vector<12x256xf32>
    %187 = arith.mulf %186, %185 : vector<12x256xf32>
    %cst_54 = arith.constant 1.45315206 : f32
    %188 = vector.broadcast %cst_54 : f32 to vector<12x256xf32>
    %189 = arith.subf %187, %188 : vector<12x256xf32>
    %190 = arith.mulf %189, %185 : vector<12x256xf32>
    %cst_55 = arith.constant 1.42141378 : f32
    %191 = vector.broadcast %cst_55 : f32 to vector<12x256xf32>
    %192 = arith.addf %190, %191 : vector<12x256xf32>
    %193 = arith.mulf %192, %185 : vector<12x256xf32>
    %cst_56 = arith.constant 0.284496725 : f32
    %194 = vector.broadcast %cst_56 : f32 to vector<12x256xf32>
    %195 = arith.subf %193, %194 : vector<12x256xf32>
    %196 = arith.mulf %195, %185 : vector<12x256xf32>
    %cst_57 = arith.constant 0.254829586 : f32
    %197 = vector.broadcast %cst_57 : f32 to vector<12x256xf32>
    %198 = arith.addf %196, %197 : vector<12x256xf32>
    %199 = arith.mulf %198, %185 : vector<12x256xf32>
    %cst_58 = arith.constant 0.000000e+00 : f32
    %200 = vector.broadcast %cst_58 : f32 to vector<12x256xf32>
    %201 = arith.subf %200, %179 : vector<12x256xf32>
    %202 = arith.mulf %201, %179 : vector<12x256xf32>
    %203 = math.exp %202 : vector<12x256xf32>
    %204 = arith.mulf %199, %203 : vector<12x256xf32>
    %cst_59 = arith.constant 1.000000e+00 : f32
    %205 = vector.broadcast %cst_59 : f32 to vector<12x256xf32>
    %206 = arith.subf %205, %204 : vector<12x256xf32>
    %cst_60 = arith.constant 0.000000e+00 : f32
    %207 = vector.broadcast %cst_60 : f32 to vector<12x256xf32>
    %208 = arith.cmpf olt, %178, %207 : vector<12x256xf32>
    %cst_61 = arith.constant 0.000000e+00 : f32
    %209 = vector.broadcast %cst_61 : f32 to vector<12x256xf32>
    %210 = arith.subf %209, %206 : vector<12x256xf32>
    %211 = arith.select %208, %210, %206 : vector<12x256xi1>, vector<12x256xf32>
    %cst_62 = arith.constant 5.000000e-01 : f32
    %212 = vector.broadcast %cst_62 : f32 to vector<12x256xf32>
    %213 = arith.mulf %212, %176 : vector<12x256xf32>
    %cst_63 = arith.constant 1.000000e+00 : f32
    %214 = vector.broadcast %cst_63 : f32 to vector<12x256xf32>
    %215 = arith.addf %214, %211 : vector<12x256xf32>
    %216 = arith.mulf %213, %215 : vector<12x256xf32>
    %217 = vector.extract_strided_slice %216 {offsets = [0, 0], sizes = [6, 256], strides = [1, 1]} : vector<12x256xf32> to vector<6x256xf32>
    %218 = vector.extract_strided_slice %216 {offsets = [6, 0], sizes = [6, 256], strides = [1, 1]} : vector<12x256xf32> to vector<6x256xf32>
    %219 = vector.extract_strided_slice %218 {offsets = [0, 239], sizes = [6, 17], strides = [1, 1]} : vector<6x256xf32> to vector<6x17xf32>
    %220 = vector.extract_strided_slice %218 {offsets = [0, 0], sizes = [6, 239], strides = [1, 1]} : vector<6x256xf32> to vector<6x239xf32>
    %221 = tpu.concatenate %219, %220 in 1 : vector<6x17xf32>, vector<6x239xf32> -> vector<6x256xf32>
    %222 = vector.broadcast %0 : vector<1x256xf32> to vector<6x256xf32>
    %223 = arith.mulf %221, %222 : vector<6x256xf32>
    %224 = vector.extract_strided_slice %218 {offsets = [0, 240], sizes = [6, 16], strides = [1, 1]} : vector<6x256xf32> to vector<6x16xf32>
    %225 = vector.extract_strided_slice %218 {offsets = [0, 0], sizes = [6, 240], strides = [1, 1]} : vector<6x256xf32> to vector<6x240xf32>
    %226 = tpu.concatenate %224, %225 in 1 : vector<6x16xf32>, vector<6x240xf32> -> vector<6x256xf32>
    %227 = vector.broadcast %1 : vector<1x256xf32> to vector<6x256xf32>
    %228 = arith.mulf %226, %227 : vector<6x256xf32>
    %229 = vector.extract_strided_slice %218 {offsets = [0, 241], sizes = [6, 15], strides = [1, 1]} : vector<6x256xf32> to vector<6x15xf32>
    %230 = vector.extract_strided_slice %218 {offsets = [0, 0], sizes = [6, 241], strides = [1, 1]} : vector<6x256xf32> to vector<6x241xf32>
    %231 = tpu.concatenate %229, %230 in 1 : vector<6x15xf32>, vector<6x241xf32> -> vector<6x256xf32>
    %232 = vector.broadcast %2 : vector<1x256xf32> to vector<6x256xf32>
    %233 = arith.mulf %231, %232 : vector<6x256xf32>
    %234 = vector.extract_strided_slice %218 {offsets = [0, 255], sizes = [6, 1], strides = [1, 1]} : vector<6x256xf32> to vector<6x1xf32>
    %235 = vector.extract_strided_slice %218 {offsets = [0, 0], sizes = [6, 255], strides = [1, 1]} : vector<6x256xf32> to vector<6x255xf32>
    %236 = tpu.concatenate %234, %235 in 1 : vector<6x1xf32>, vector<6x255xf32> -> vector<6x256xf32>
    %237 = vector.broadcast %3 : vector<1x256xf32> to vector<6x256xf32>
    %238 = arith.mulf %236, %237 : vector<6x256xf32>
    %239 = vector.extract_strided_slice %218 {offsets = [0, 1], sizes = [6, 255], strides = [1, 1]} : vector<6x256xf32> to vector<6x255xf32>
    %240 = vector.extract_strided_slice %218 {offsets = [0, 0], sizes = [6, 1], strides = [1, 1]} : vector<6x256xf32> to vector<6x1xf32>
    %241 = tpu.concatenate %239, %240 in 1 : vector<6x255xf32>, vector<6x1xf32> -> vector<6x256xf32>
    %242 = vector.broadcast %4 : vector<1x256xf32> to vector<6x256xf32>
    %243 = arith.mulf %241, %242 : vector<6x256xf32>
    %244 = vector.extract_strided_slice %218 {offsets = [0, 15], sizes = [6, 241], strides = [1, 1]} : vector<6x256xf32> to vector<6x241xf32>
    %245 = vector.extract_strided_slice %218 {offsets = [0, 0], sizes = [6, 15], strides = [1, 1]} : vector<6x256xf32> to vector<6x15xf32>
    %246 = tpu.concatenate %244, %245 in 1 : vector<6x241xf32>, vector<6x15xf32> -> vector<6x256xf32>
    %247 = vector.broadcast %5 : vector<1x256xf32> to vector<6x256xf32>
    %248 = arith.mulf %246, %247 : vector<6x256xf32>
    %249 = vector.extract_strided_slice %218 {offsets = [0, 16], sizes = [6, 240], strides = [1, 1]} : vector<6x256xf32> to vector<6x240xf32>
    %250 = vector.extract_strided_slice %218 {offsets = [0, 0], sizes = [6, 16], strides = [1, 1]} : vector<6x256xf32> to vector<6x16xf32>
    %251 = tpu.concatenate %249, %250 in 1 : vector<6x240xf32>, vector<6x16xf32> -> vector<6x256xf32>
    %252 = vector.broadcast %6 : vector<1x256xf32> to vector<6x256xf32>
    %253 = arith.mulf %251, %252 : vector<6x256xf32>
    %254 = vector.extract_strided_slice %218 {offsets = [0, 17], sizes = [6, 239], strides = [1, 1]} : vector<6x256xf32> to vector<6x239xf32>
    %255 = vector.extract_strided_slice %218 {offsets = [0, 0], sizes = [6, 17], strides = [1, 1]} : vector<6x256xf32> to vector<6x17xf32>
    %256 = tpu.concatenate %254, %255 in 1 : vector<6x239xf32>, vector<6x17xf32> -> vector<6x256xf32>
    %257 = vector.broadcast %7 : vector<1x256xf32> to vector<6x256xf32>
    %258 = arith.mulf %256, %257 : vector<6x256xf32>
    %259 = vector.extract_strided_slice %12 {offsets = [0, 0], sizes = [6, 1], strides = [1, 1]} : vector<6x9xf32> to vector<6x1xf32>
    %260 = vector.broadcast %259 : vector<6x1xf32> to vector<6x256xf32>
    %261 = arith.mulf %223, %260 : vector<6x256xf32>
    %262 = vector.extract_strided_slice %12 {offsets = [0, 1], sizes = [6, 1], strides = [1, 1]} : vector<6x9xf32> to vector<6x1xf32>
    %263 = vector.broadcast %262 : vector<6x1xf32> to vector<6x256xf32>
    %264 = arith.mulf %228, %263 : vector<6x256xf32>
    %265 = arith.addf %261, %264 : vector<6x256xf32>
    %266 = vector.extract_strided_slice %12 {offsets = [0, 2], sizes = [6, 1], strides = [1, 1]} : vector<6x9xf32> to vector<6x1xf32>
    %267 = vector.broadcast %266 : vector<6x1xf32> to vector<6x256xf32>
    %268 = arith.mulf %233, %267 : vector<6x256xf32>
    %269 = arith.addf %265, %268 : vector<6x256xf32>
    %270 = vector.extract_strided_slice %12 {offsets = [0, 3], sizes = [6, 1], strides = [1, 1]} : vector<6x9xf32> to vector<6x1xf32>
    %271 = vector.broadcast %270 : vector<6x1xf32> to vector<6x256xf32>
    %272 = arith.mulf %238, %271 : vector<6x256xf32>
    %273 = arith.addf %269, %272 : vector<6x256xf32>
    %274 = vector.extract_strided_slice %12 {offsets = [0, 4], sizes = [6, 1], strides = [1, 1]} : vector<6x9xf32> to vector<6x1xf32>
    %275 = vector.broadcast %274 : vector<6x1xf32> to vector<6x256xf32>
    %276 = arith.mulf %218, %275 : vector<6x256xf32>
    %277 = arith.addf %273, %276 : vector<6x256xf32>
    %278 = vector.extract_strided_slice %12 {offsets = [0, 5], sizes = [6, 1], strides = [1, 1]} : vector<6x9xf32> to vector<6x1xf32>
    %279 = vector.broadcast %278 : vector<6x1xf32> to vector<6x256xf32>
    %280 = arith.mulf %243, %279 : vector<6x256xf32>
    %281 = arith.addf %277, %280 : vector<6x256xf32>
    %282 = vector.extract_strided_slice %12 {offsets = [0, 6], sizes = [6, 1], strides = [1, 1]} : vector<6x9xf32> to vector<6x1xf32>
    %283 = vector.broadcast %282 : vector<6x1xf32> to vector<6x256xf32>
    %284 = arith.mulf %248, %283 : vector<6x256xf32>
    %285 = arith.addf %281, %284 : vector<6x256xf32>
    %286 = vector.extract_strided_slice %12 {offsets = [0, 7], sizes = [6, 1], strides = [1, 1]} : vector<6x9xf32> to vector<6x1xf32>
    %287 = vector.broadcast %286 : vector<6x1xf32> to vector<6x256xf32>
    %288 = arith.mulf %253, %287 : vector<6x256xf32>
    %289 = arith.addf %285, %288 : vector<6x256xf32>
    %290 = vector.extract_strided_slice %12 {offsets = [0, 8], sizes = [6, 1], strides = [1, 1]} : vector<6x9xf32> to vector<6x1xf32>
    %291 = vector.broadcast %290 : vector<6x1xf32> to vector<6x256xf32>
    %292 = arith.mulf %258, %291 : vector<6x256xf32>
    %293 = arith.addf %289, %292 : vector<6x256xf32>
    %cst_64 = arith.constant 0.707106769 : f32
    %294 = vector.broadcast %cst_64 : f32 to vector<6x256xf32>
    %295 = arith.mulf %293, %294 : vector<6x256xf32>
    %296 = math.absf %295 : vector<6x256xf32>
    %cst_65 = arith.constant 0.327591091 : f32
    %297 = vector.broadcast %cst_65 : f32 to vector<6x256xf32>
    %298 = arith.mulf %297, %296 : vector<6x256xf32>
    %cst_66 = arith.constant 1.000000e+00 : f32
    %299 = vector.broadcast %cst_66 : f32 to vector<6x256xf32>
    %300 = arith.addf %299, %298 : vector<6x256xf32>
    %cst_67 = arith.constant 1.000000e+00 : f32
    %301 = vector.broadcast %cst_67 : f32 to vector<6x256xf32>
    %302 = arith.divf %301, %300 : vector<6x256xf32>
    %cst_68 = arith.constant 1.06140542 : f32
    %303 = vector.broadcast %cst_68 : f32 to vector<6x256xf32>
    %304 = arith.mulf %303, %302 : vector<6x256xf32>
    %cst_69 = arith.constant 1.45315206 : f32
    %305 = vector.broadcast %cst_69 : f32 to vector<6x256xf32>
    %306 = arith.subf %304, %305 : vector<6x256xf32>
    %307 = arith.mulf %306, %302 : vector<6x256xf32>
    %cst_70 = arith.constant 1.42141378 : f32
    %308 = vector.broadcast %cst_70 : f32 to vector<6x256xf32>
    %309 = arith.addf %307, %308 : vector<6x256xf32>
    %310 = arith.mulf %309, %302 : vector<6x256xf32>
    %cst_71 = arith.constant 0.284496725 : f32
    %311 = vector.broadcast %cst_71 : f32 to vector<6x256xf32>
    %312 = arith.subf %310, %311 : vector<6x256xf32>
    %313 = arith.mulf %312, %302 : vector<6x256xf32>
    %cst_72 = arith.constant 0.254829586 : f32
    %314 = vector.broadcast %cst_72 : f32 to vector<6x256xf32>
    %315 = arith.addf %313, %314 : vector<6x256xf32>
    %316 = arith.mulf %315, %302 : vector<6x256xf32>
    %cst_73 = arith.constant 0.000000e+00 : f32
    %317 = vector.broadcast %cst_73 : f32 to vector<6x256xf32>
    %318 = arith.subf %317, %296 : vector<6x256xf32>
    %319 = arith.mulf %318, %296 : vector<6x256xf32>
    %320 = math.exp %319 : vector<6x256xf32>
    %321 = arith.mulf %316, %320 : vector<6x256xf32>
    %cst_74 = arith.constant 1.000000e+00 : f32
    %322 = vector.broadcast %cst_74 : f32 to vector<6x256xf32>
    %323 = arith.subf %322, %321 : vector<6x256xf32>
    %cst_75 = arith.constant 0.000000e+00 : f32
    %324 = vector.broadcast %cst_75 : f32 to vector<6x256xf32>
    %325 = arith.cmpf olt, %295, %324 : vector<6x256xf32>
    %cst_76 = arith.constant 0.000000e+00 : f32
    %326 = vector.broadcast %cst_76 : f32 to vector<6x256xf32>
    %327 = arith.subf %326, %323 : vector<6x256xf32>
    %328 = arith.select %325, %327, %323 : vector<6x256xi1>, vector<6x256xf32>
    %cst_77 = arith.constant 5.000000e-01 : f32
    %329 = vector.broadcast %cst_77 : f32 to vector<6x256xf32>
    %330 = arith.mulf %329, %293 : vector<6x256xf32>
    %cst_78 = arith.constant 1.000000e+00 : f32
    %331 = vector.broadcast %cst_78 : f32 to vector<6x256xf32>
    %332 = arith.addf %331, %328 : vector<6x256xf32>
    %333 = arith.mulf %330, %332 : vector<6x256xf32>
    %cst_79 = arith.constant dense<0.000000e+00> : vector<6x256xf32>
    %334 = tpu.matmul %13, %333, %cst_79 {dimension_numbers = #tpu.dot_dimension_numbers<[1], [0], [0], [1], [0, 0, 1, 1], [], []>, precision = #tpu.contract_precision<fp32>} : vector<6x6xf32>, vector<6x256xf32>, vector<6x256xf32> -> vector<6x256xf32>
    %cst_80 = arith.constant 0.707106769 : f32
    %335 = vector.broadcast %cst_80 : f32 to vector<6x256xf32>
    %336 = arith.mulf %334, %335 : vector<6x256xf32>
    %337 = math.absf %336 : vector<6x256xf32>
    %cst_81 = arith.constant 0.327591091 : f32
    %338 = vector.broadcast %cst_81 : f32 to vector<6x256xf32>
    %339 = arith.mulf %338, %337 : vector<6x256xf32>
    %cst_82 = arith.constant 1.000000e+00 : f32
    %340 = vector.broadcast %cst_82 : f32 to vector<6x256xf32>
    %341 = arith.addf %340, %339 : vector<6x256xf32>
    %cst_83 = arith.constant 1.000000e+00 : f32
    %342 = vector.broadcast %cst_83 : f32 to vector<6x256xf32>
    %343 = arith.divf %342, %341 : vector<6x256xf32>
    %cst_84 = arith.constant 1.06140542 : f32
    %344 = vector.broadcast %cst_84 : f32 to vector<6x256xf32>
    %345 = arith.mulf %344, %343 : vector<6x256xf32>
    %cst_85 = arith.constant 1.45315206 : f32
    %346 = vector.broadcast %cst_85 : f32 to vector<6x256xf32>
    %347 = arith.subf %345, %346 : vector<6x256xf32>
    %348 = arith.mulf %347, %343 : vector<6x256xf32>
    %cst_86 = arith.constant 1.42141378 : f32
    %349 = vector.broadcast %cst_86 : f32 to vector<6x256xf32>
    %350 = arith.addf %348, %349 : vector<6x256xf32>
    %351 = arith.mulf %350, %343 : vector<6x256xf32>
    %cst_87 = arith.constant 0.284496725 : f32
    %352 = vector.broadcast %cst_87 : f32 to vector<6x256xf32>
    %353 = arith.subf %351, %352 : vector<6x256xf32>
    %354 = arith.mulf %353, %343 : vector<6x256xf32>
    %cst_88 = arith.constant 0.254829586 : f32
    %355 = vector.broadcast %cst_88 : f32 to vector<6x256xf32>
    %356 = arith.addf %354, %355 : vector<6x256xf32>
    %357 = arith.mulf %356, %343 : vector<6x256xf32>
    %cst_89 = arith.constant 0.000000e+00 : f32
    %358 = vector.broadcast %cst_89 : f32 to vector<6x256xf32>
    %359 = arith.subf %358, %337 : vector<6x256xf32>
    %360 = arith.mulf %359, %337 : vector<6x256xf32>
    %361 = math.exp %360 : vector<6x256xf32>
    %362 = arith.mulf %357, %361 : vector<6x256xf32>
    %cst_90 = arith.constant 1.000000e+00 : f32
    %363 = vector.broadcast %cst_90 : f32 to vector<6x256xf32>
    %364 = arith.subf %363, %362 : vector<6x256xf32>
    %cst_91 = arith.constant 0.000000e+00 : f32
    %365 = vector.broadcast %cst_91 : f32 to vector<6x256xf32>
    %366 = arith.cmpf olt, %336, %365 : vector<6x256xf32>
    %cst_92 = arith.constant 0.000000e+00 : f32
    %367 = vector.broadcast %cst_92 : f32 to vector<6x256xf32>
    %368 = arith.subf %367, %364 : vector<6x256xf32>
    %369 = arith.select %366, %368, %364 : vector<6x256xi1>, vector<6x256xf32>
    %cst_93 = arith.constant 5.000000e-01 : f32
    %370 = vector.broadcast %cst_93 : f32 to vector<6x256xf32>
    %371 = arith.mulf %370, %334 : vector<6x256xf32>
    %cst_94 = arith.constant 1.000000e+00 : f32
    %372 = vector.broadcast %cst_94 : f32 to vector<6x256xf32>
    %373 = arith.addf %372, %369 : vector<6x256xf32>
    %374 = arith.mulf %371, %373 : vector<6x256xf32>
    %375 = vector.extract_strided_slice %60 {offsets = [0, 239], sizes = [6, 17], strides = [1, 1]} : vector<6x256xf32> to vector<6x17xf32>
    %376 = vector.extract_strided_slice %60 {offsets = [0, 0], sizes = [6, 239], strides = [1, 1]} : vector<6x256xf32> to vector<6x239xf32>
    %377 = tpu.concatenate %375, %376 in 1 : vector<6x17xf32>, vector<6x239xf32> -> vector<6x256xf32>
    %378 = vector.broadcast %0 : vector<1x256xf32> to vector<6x256xf32>
    %379 = arith.mulf %377, %378 : vector<6x256xf32>
    %380 = vector.extract_strided_slice %60 {offsets = [0, 240], sizes = [6, 16], strides = [1, 1]} : vector<6x256xf32> to vector<6x16xf32>
    %381 = vector.extract_strided_slice %60 {offsets = [0, 0], sizes = [6, 240], strides = [1, 1]} : vector<6x256xf32> to vector<6x240xf32>
    %382 = tpu.concatenate %380, %381 in 1 : vector<6x16xf32>, vector<6x240xf32> -> vector<6x256xf32>
    %383 = vector.broadcast %1 : vector<1x256xf32> to vector<6x256xf32>
    %384 = arith.mulf %382, %383 : vector<6x256xf32>
    %385 = vector.extract_strided_slice %60 {offsets = [0, 241], sizes = [6, 15], strides = [1, 1]} : vector<6x256xf32> to vector<6x15xf32>
    %386 = vector.extract_strided_slice %60 {offsets = [0, 0], sizes = [6, 241], strides = [1, 1]} : vector<6x256xf32> to vector<6x241xf32>
    %387 = tpu.concatenate %385, %386 in 1 : vector<6x15xf32>, vector<6x241xf32> -> vector<6x256xf32>
    %388 = vector.broadcast %2 : vector<1x256xf32> to vector<6x256xf32>
    %389 = arith.mulf %387, %388 : vector<6x256xf32>
    %390 = vector.extract_strided_slice %60 {offsets = [0, 255], sizes = [6, 1], strides = [1, 1]} : vector<6x256xf32> to vector<6x1xf32>
    %391 = vector.extract_strided_slice %60 {offsets = [0, 0], sizes = [6, 255], strides = [1, 1]} : vector<6x256xf32> to vector<6x255xf32>
    %392 = tpu.concatenate %390, %391 in 1 : vector<6x1xf32>, vector<6x255xf32> -> vector<6x256xf32>
    %393 = vector.broadcast %3 : vector<1x256xf32> to vector<6x256xf32>
    %394 = arith.mulf %392, %393 : vector<6x256xf32>
    %395 = vector.extract_strided_slice %60 {offsets = [0, 1], sizes = [6, 255], strides = [1, 1]} : vector<6x256xf32> to vector<6x255xf32>
    %396 = vector.extract_strided_slice %60 {offsets = [0, 0], sizes = [6, 1], strides = [1, 1]} : vector<6x256xf32> to vector<6x1xf32>
    %397 = tpu.concatenate %395, %396 in 1 : vector<6x255xf32>, vector<6x1xf32> -> vector<6x256xf32>
    %398 = vector.broadcast %4 : vector<1x256xf32> to vector<6x256xf32>
    %399 = arith.mulf %397, %398 : vector<6x256xf32>
    %400 = vector.extract_strided_slice %60 {offsets = [0, 15], sizes = [6, 241], strides = [1, 1]} : vector<6x256xf32> to vector<6x241xf32>
    %401 = vector.extract_strided_slice %60 {offsets = [0, 0], sizes = [6, 15], strides = [1, 1]} : vector<6x256xf32> to vector<6x15xf32>
    %402 = tpu.concatenate %400, %401 in 1 : vector<6x241xf32>, vector<6x15xf32> -> vector<6x256xf32>
    %403 = vector.broadcast %5 : vector<1x256xf32> to vector<6x256xf32>
    %404 = arith.mulf %402, %403 : vector<6x256xf32>
    %405 = vector.extract_strided_slice %60 {offsets = [0, 16], sizes = [6, 240], strides = [1, 1]} : vector<6x256xf32> to vector<6x240xf32>
    %406 = vector.extract_strided_slice %60 {offsets = [0, 0], sizes = [6, 16], strides = [1, 1]} : vector<6x256xf32> to vector<6x16xf32>
    %407 = tpu.concatenate %405, %406 in 1 : vector<6x240xf32>, vector<6x16xf32> -> vector<6x256xf32>
    %408 = vector.broadcast %6 : vector<1x256xf32> to vector<6x256xf32>
    %409 = arith.mulf %407, %408 : vector<6x256xf32>
    %410 = vector.extract_strided_slice %60 {offsets = [0, 17], sizes = [6, 239], strides = [1, 1]} : vector<6x256xf32> to vector<6x239xf32>
    %411 = vector.extract_strided_slice %60 {offsets = [0, 0], sizes = [6, 17], strides = [1, 1]} : vector<6x256xf32> to vector<6x17xf32>
    %412 = tpu.concatenate %410, %411 in 1 : vector<6x239xf32>, vector<6x17xf32> -> vector<6x256xf32>
    %413 = vector.broadcast %7 : vector<1x256xf32> to vector<6x256xf32>
    %414 = arith.mulf %412, %413 : vector<6x256xf32>
    %415 = arith.addf %379, %384 : vector<6x256xf32>
    %416 = arith.addf %415, %389 : vector<6x256xf32>
    %417 = arith.addf %416, %394 : vector<6x256xf32>
    %418 = arith.addf %417, %60 : vector<6x256xf32>
    %419 = arith.addf %418, %399 : vector<6x256xf32>
    %420 = arith.addf %419, %404 : vector<6x256xf32>
    %421 = arith.addf %420, %409 : vector<6x256xf32>
    %422 = arith.addf %421, %414 : vector<6x256xf32>
    %423 = vector.broadcast %8 : vector<1x256xf32> to vector<6x256xf32>
    %424 = arith.mulf %422, %423 : vector<6x256xf32>
    %cst_95 = arith.constant 0.707106769 : f32
    %425 = vector.broadcast %cst_95 : f32 to vector<6x256xf32>
    %426 = arith.mulf %424, %425 : vector<6x256xf32>
    %427 = math.absf %426 : vector<6x256xf32>
    %cst_96 = arith.constant 0.327591091 : f32
    %428 = vector.broadcast %cst_96 : f32 to vector<6x256xf32>
    %429 = arith.mulf %428, %427 : vector<6x256xf32>
    %cst_97 = arith.constant 1.000000e+00 : f32
    %430 = vector.broadcast %cst_97 : f32 to vector<6x256xf32>
    %431 = arith.addf %430, %429 : vector<6x256xf32>
    %cst_98 = arith.constant 1.000000e+00 : f32
    %432 = vector.broadcast %cst_98 : f32 to vector<6x256xf32>
    %433 = arith.divf %432, %431 : vector<6x256xf32>
    %cst_99 = arith.constant 1.06140542 : f32
    %434 = vector.broadcast %cst_99 : f32 to vector<6x256xf32>
    %435 = arith.mulf %434, %433 : vector<6x256xf32>
    %cst_100 = arith.constant 1.45315206 : f32
    %436 = vector.broadcast %cst_100 : f32 to vector<6x256xf32>
    %437 = arith.subf %435, %436 : vector<6x256xf32>
    %438 = arith.mulf %437, %433 : vector<6x256xf32>
    %cst_101 = arith.constant 1.42141378 : f32
    %439 = vector.broadcast %cst_101 : f32 to vector<6x256xf32>
    %440 = arith.addf %438, %439 : vector<6x256xf32>
    %441 = arith.mulf %440, %433 : vector<6x256xf32>
    %cst_102 = arith.constant 0.284496725 : f32
    %442 = vector.broadcast %cst_102 : f32 to vector<6x256xf32>
    %443 = arith.subf %441, %442 : vector<6x256xf32>
    %444 = arith.mulf %443, %433 : vector<6x256xf32>
    %cst_103 = arith.constant 0.254829586 : f32
    %445 = vector.broadcast %cst_103 : f32 to vector<6x256xf32>
    %446 = arith.addf %444, %445 : vector<6x256xf32>
    %447 = arith.mulf %446, %433 : vector<6x256xf32>
    %cst_104 = arith.constant 0.000000e+00 : f32
    %448 = vector.broadcast %cst_104 : f32 to vector<6x256xf32>
    %449 = arith.subf %448, %427 : vector<6x256xf32>
    %450 = arith.mulf %449, %427 : vector<6x256xf32>
    %451 = math.exp %450 : vector<6x256xf32>
    %452 = arith.mulf %447, %451 : vector<6x256xf32>
    %cst_105 = arith.constant 1.000000e+00 : f32
    %453 = vector.broadcast %cst_105 : f32 to vector<6x256xf32>
    %454 = arith.subf %453, %452 : vector<6x256xf32>
    %cst_106 = arith.constant 0.000000e+00 : f32
    %455 = vector.broadcast %cst_106 : f32 to vector<6x256xf32>
    %456 = arith.cmpf olt, %426, %455 : vector<6x256xf32>
    %cst_107 = arith.constant 0.000000e+00 : f32
    %457 = vector.broadcast %cst_107 : f32 to vector<6x256xf32>
    %458 = arith.subf %457, %454 : vector<6x256xf32>
    %459 = arith.select %456, %458, %454 : vector<6x256xi1>, vector<6x256xf32>
    %cst_108 = arith.constant 5.000000e-01 : f32
    %460 = vector.broadcast %cst_108 : f32 to vector<6x256xf32>
    %461 = arith.mulf %460, %424 : vector<6x256xf32>
    %cst_109 = arith.constant 1.000000e+00 : f32
    %462 = vector.broadcast %cst_109 : f32 to vector<6x256xf32>
    %463 = arith.addf %462, %459 : vector<6x256xf32>
    %464 = arith.mulf %461, %463 : vector<6x256xf32>
    %465 = tpu.concatenate %58, %217, %374, %464 in 0 : vector<6x256xf32>, vector<6x256xf32>, vector<6x256xf32>, vector<6x256xf32> -> vector<24x256xf32>
    %c0_110 = arith.constant 0 : index
    %c0_111 = arith.constant 0 : index
    %c0_112 = arith.constant 0 : index
    %466 = vector.load %arg4[%c0_110, %c0_111, %c0_112] : memref<1x24x256xf32, #tpu.memory_space<vmem>>, vector<1x24x256xf32>
    %467 = vector.shape_cast %466 : vector<1x24x256xf32> to vector<24x256xf32>
    %468 = vector.shape_cast %465 : vector<24x256xf32> to vector<1x24x256xf32>
    tpu.vector_store %arg4[%c0_110, %c0_111, %c0_112], %468 {strides = array<i32>} : memref<1x24x256xf32, #tpu.memory_space<vmem>>, vector<1x24x256xf32>,
    return
  }
  func.func @transform_0(%arg0: i32) -> (i32, i32, i32) {
    %c0_i32 = arith.constant 0 : i32
    %c0_i32_0 = arith.constant 0 : i32
    %c0_i32_1 = arith.constant 0 : i32
    return %arg0, %c0_i32, %c0_i32_0 : i32, i32, i32
  }
  func.func @transform_1(%arg0: i32) -> (i32, i32) {
    %c0_i32 = arith.constant 0 : i32
    %c0_i32_0 = arith.constant 0 : i32
    %c0_i32_1 = arith.constant 0 : i32
    return %c0_i32, %c0_i32_0 : i32, i32
  }
  func.func @transform_2(%arg0: i32) -> (i32, i32) {
    %c0_i32 = arith.constant 0 : i32
    %c0_i32_0 = arith.constant 0 : i32
    %c0_i32_1 = arith.constant 0 : i32
    return %c0_i32, %c0_i32_0 : i32, i32
  }
  func.func @transform_3(%arg0: i32) -> (i32, i32, i32) {
    %c0_i32 = arith.constant 0 : i32
    %c0_i32_0 = arith.constant 0 : i32
    %c0_i32_1 = arith.constant 0 : i32
    return %arg0, %c0_i32, %c0_i32_0 : i32, i32, i32
  }
}

</mosaic_0001>

<llo_original>
// kernel: tpu_custom_call.1
$region0: #{tpu_custom_call.1}
  #allocation0 [shape = 'u32[]', space=smem, size = 0x4, offset = 0x4, fixed_abs, tag = 'smem constant byte address 0x4 - core index']
  #allocation1 [shape = 'u32[144,128]{1,0:T(1,128)}', space=vmem, size = 0x12000, scoped, tag = 'internal scratch']
  %s0 = inlined_call_operand.vmem [shape: f32[2,16,256], index: 0, kind: input, shape index: {}]
  %s1 = inlined_call_operand.hbm [shape: f32[9,256], index: 1, kind: input, shape index: {}]
  %s2 = inlined_call_operand.vmem [shape: f32[64,16], index: 2, kind: input, shape index: {}]
  %s3 = inlined_call_operand.hbm [shape: f32[2,24,256], index: 3, kind: output, shape index: {}]
  %s4 = sld [smem:[#allocation0]]
  $region49: #{tpu_custom_call.1} parent=0
    _
  %s6 = ssub.s32 1, %s4
  %s7 = scalar_select 0, %s6, %s4
  $region1: #{tpu_custom_call.1} parent=0
    #allocation2 [shape = 'u8[16384]{0}', space=vmem, size = 0x4000, scoped, tag = 'input window, operand 1, single buffered']
    #allocation3 [shape = 's32[2]{0}', space=sflag, size = 0x8, scoped, tag = 'scoped memory for tpu_custom_call.1']
    #allocation4 [shape = 's32[2]{0}', space=sflag, size = 0x8, scoped, tag = 'scoped memory for tpu_custom_call.1']
    #allocation5 [shape = 'u8[49152]{0}', space=vmem, size = 0xc000, scoped, tag = 'output window, operand 0']
    %8 = vsyncpa [#allocation3], 0
    %9 = vsyncpa [#allocation4], 0
    %s10 = scalar_lea.sflag [#allocation4], 1
    %11 = vsyncpa %s10, 0
    loop: start=0, step=1, limit=4
    $region2: #{tpu_custom_call.1} parent=1 // loop_pre_header
      _
    $region3: #{tpu_custom_call.1} parent=1 // loop_header
      %s13 = sphi 0, %s17
      %p14 = scmp.ge.s32.totalorder %s13, 4
      %s23 = sphi 0, %s25
      %s26 = sphi 0, %s23
      %s27 = sphi 0, %s26
      %s43 = sphi 0, %s27
      %s47 = sphi 0, %s47
      %s49 = sphi 0, %s47
      %s50 = sphi 0, %s49
      %s64 = sphi 0, %s50
      %s68 = sphi 0, %s68
      %s70 = sphi 0, %s68
      %s71 = sphi 0, %s70
      %s85 = sphi 0, %s71
      %s91 = sphi 0, %s93
      %s94 = sphi 0, %s91
      %s95 = sphi 0, %s94
      %s111 = sphi 0, %s95
    $region4: #{tpu_custom_call.1} parent=1 // loop_header_branch
      %16 = sbr.rel (%p14) target = $region8
    $region5: #{tpu_custom_call.1} parent=1 // loop_body
      %s18 = ssub.s32 %s13, 1
      %s19 = ssub.s32 %s13, 2
      %s20 = sadd.s32 %s13, 1
      %s21 = ssub.s32 %s13, %s20
      %p22 = scmp.eq.s32.totalorder %s21, 0
      %s24 = sadd.s32 %s23, 1
      %s25 = scalar_select %p22, %s23, %s24
      %p28 = pneg %p22
      %p29 = scmp.eq.s32.totalorder %s13, 1
      %p30 = por %p28, %p29
      %p31 = scmp.ne.s32.totalorder %s23, %s26
      %p32 = scmp.eq.s32.totalorder %s13, 0
      %p33 = por %p31, %p32
      %p34 = scmp.ne.s32.totalorder %s23, %s26
      %p35 = scmp.eq.s32.totalorder %s18, 1
      %p36 = por %p34, %p35
      %p37 = scmp.ne.s32.totalorder %s26, %s27
      %p38 = scmp.eq.s32.totalorder %s18, 0
      %p39 = por %p37, %p38
      %p40 = scmp.ne.s32.totalorder %s26, %s27
      %p41 = scmp.eq.s32.totalorder %s19, 1
      %p42 = por %p40, %p41
      %p44 = scmp.ne.s32.totalorder %s27, %s43
      %p45 = scmp.eq.s32.totalorder %s19, 0
      %p46 = por %p44, %p45
      %s48 = sadd.s32 %s47, 1
      %p51 = scmp.eq.s32.totalorder %s13, 1
      %p52 = scmp.ne.s32.totalorder %s47, %s49
      %p53 = scmp.eq.s32.totalorder %s13, 0
      %p54 = por %p52, %p53
      %p55 = scmp.ne.s32.totalorder %s47, %s49
      %p56 = scmp.eq.s32.totalorder %s18, 1
      %p57 = por %p55, %p56
      %p58 = scmp.ne.s32.totalorder %s49, %s50
      %p59 = scmp.eq.s32.totalorder %s18, 0
      %p60 = por %p58, %p59
      %p61 = scmp.ne.s32.totalorder %s49, %s50
      %p62 = scmp.eq.s32.totalorder %s19, 1
      %p63 = por %p61, %p62
      %p65 = scmp.ne.s32.totalorder %s50, %s64
      %p66 = scmp.eq.s32.totalorder %s19, 0
      %p67 = por %p65, %p66
      %s69 = sadd.s32 %s68, 1
      %p72 = scmp.eq.s32.totalorder %s13, 1
      %p73 = scmp.ne.s32.totalorder %s68, %s70
      %p74 = scmp.eq.s32.totalorder %s13, 0
      %p75 = por %p73, %p74
      %p76 = scmp.ne.s32.totalorder %s68, %s70
      %p77 = scmp.eq.s32.totalorder %s18, 1
      %p78 = por %p76, %p77
      %p79 = scmp.ne.s32.totalorder %s70, %s71
      %p80 = scmp.eq.s32.totalorder %s18, 0
      %p81 = por %p79, %p80
      %p82 = scmp.ne.s32.totalorder %s70, %s71
      %p83 = scmp.eq.s32.totalorder %s19, 1
      %p84 = por %p82, %p83
      %p86 = scmp.ne.s32.totalorder %s71, %s85
      %p87 = scmp.eq.s32.totalorder %s19, 0
      %p88 = por %p86, %p87
      %s89 = ssub.s32 %s13, %s20
      %p90 = scmp.eq.s32.totalorder %s89, 0
      %s92 = sadd.s32 %s91, 1
      %s93 = scalar_select %p90, %s91, %s92
      %p96 = pneg %p90
      %p97 = scmp.eq.s32.totalorder %s13, 1
      %p98 = por %p96, %p97
      %p99 = scmp.ne.s32.totalorder %s91, %s94
      %p100 = scmp.eq.s32.totalorder %s13, 0
      %p101 = por %p99, %p100
      %p102 = scmp.ne.s32.totalorder %s91, %s94
      %p103 = scmp.eq.s32.totalorder %s18, 1
      %p104 = por %p102, %p103
      %p105 = scmp.ne.s32.totalorder %s94, %s95
      %p106 = scmp.eq.s32.totalorder %s18, 0
      %p107 = por %p105, %p106
      %p108 = scmp.ne.s32.totalorder %s94, %s95
      %p109 = scmp.eq.s32.totalorder %s19, 1
      %p110 = por %p108, %p109
      %p112 = scmp.ne.s32.totalorder %s95, %s111
      %p113 = scmp.eq.s32.totalorder %s19, 0
      %p114 = por %p112, %p113
      %p115 = scmp.le.s32.totalorder 1, %s13
      %p116 = scmp.lt.s32.totalorder %s13, 3
      %p117 = pnand %p115, %p116
      %p118 = pneg %p117
      // Predicated region
      $region9: #{tpu_custom_call.1} parent=5 // pred_check
        _
      $region10: #{tpu_custom_call.1} parent=5 // pred_check_branch
        %120 = sbr.rel (%p117) target = $region12
      $region11: #{tpu_custom_call.1} parent=5 // pred_region
        %s121 = ssub.s32 %s13, 1
        // Predicated region
        $region13: #{tpu_custom_call.1} parent=11 // pred_check
          %p122 = pneg %p60
        $region14: #{tpu_custom_call.1} parent=11 // pred_check_branch
          %124 = sbr.rel (%p122) target = $region16
        $region15: #{tpu_custom_call.1} parent=11 // pred_region
          %s126 = ssub.s32 512, 512
          %127 = vsyncadd [#allocation3], %s126
          %s128 = sshll.u32 [#allocation2], 4
          %s129 = int_to_ptr.vmem [resolvable:$true] %s128
          %134 = dma.hbm_to_vmem [thread:$0]  %s1, 512, %s129, [#allocation3], 256, 256, 16
        $region16: #{tpu_custom_call.1} parent=11 // pred_fallthru
          _
        // Predicated region
        $region17: #{tpu_custom_call.1} parent=11 // pred_check
          %p135 = pneg %p81
        $region18: #{tpu_custom_call.1} parent=11 // pred_check_branch
          %137 = sbr.rel (%p135) target = $region20
        $region19: #{tpu_custom_call.1} parent=11 // pred_region
          _
        $region20: #{tpu_custom_call.1} parent=11 // pred_fallthru
          _
      $region12: #{tpu_custom_call.1} parent=5 // pred_fallthru
        _
      %p138 = scmp.lt.s32.totalorder %s13, 2
      // Predicated region
      $region21: #{tpu_custom_call.1} parent=5 // pred_check
        %p139 = pneg %p138
      $region22: #{tpu_custom_call.1} parent=5 // pred_check_branch
        %141 = sbr.rel (%p139) target = $region24
      $region23: #{tpu_custom_call.1} parent=5 // pred_region
        // Predicated region
        $region25: #{tpu_custom_call.1} parent=23 // pred_check
          %p142 = pneg %p33
        $region26: #{tpu_custom_call.1} parent=23 // pred_check_branch
          %144 = sbr.rel (%p142) target = $region28
        $region27: #{tpu_custom_call.1} parent=23 // pred_region
          %p145 = scmp.lt.s32.totalorder %s13, 1
          %s146 = scalar_select %p145, %s13, 1
          %s147 = smul.addr %s146, 4
          %s148 = smul.addr %s147, 8
          %s149 = scalar_lea.vmem %s0, %s148
        $region28: #{tpu_custom_call.1} parent=23 // pred_fallthru
          _
      $region24: #{tpu_custom_call.1} parent=5 // pred_fallthru
        _
      %p150 = scmp.le.s32.totalorder 1, %s13
      %p151 = scmp.lt.s32.totalorder %s13, 3
      %p152 = pnand %p150, %p151
      %p153 = pneg %p152
      // Predicated region
      $region29: #{tpu_custom_call.1} parent=5 // pred_check
        _
      $region30: #{tpu_custom_call.1} parent=5 // pred_check_branch
        %155 = sbr.rel (%p152) target = $region32
      $region31: #{tpu_custom_call.1} parent=5 // pred_region
        %s156 = ssub.s32 %s13, 1
        // Predicated region
        $region33: #{tpu_custom_call.1} parent=31 // pred_check
          %p157 = pneg %p60
        $region34: #{tpu_custom_call.1} parent=31 // pred_check_branch
          %159 = sbr.rel (%p157) target = $region36
        $region35: #{tpu_custom_call.1} parent=31 // pred_region
          %160 = dma.done [#allocation3], 512
        $region36: #{tpu_custom_call.1} parent=31 // pred_fallthru
          _
        %p161 = scmp.lt.s32.totalorder %s18, 1
        %s162 = scalar_select %p161, %s18, 1
        %s163 = smul.addr %s162, 4
        %s164 = smul.addr %s163, 8
        %s165 = scalar_lea.vmem %s0, %s164
        %p166 = pneg %p39
        %p167 = pneg %p36
        %p168 = pneg %p60
        %p169 = pneg %p57
        %p170 = pneg %p81
        %p171 = pneg %p78
        %p172 = pneg %p107
        %p173 = pneg %p104
        %s174 = sand.u32 %s94, 1
        %s175 = scalar_lea.sflag [#allocation4], %s174
        %s176 = sand.u32 %s94, 1
        %s177 = smul.addr %s176, 48
        %s178 = scalar_lea.vmem [#allocation5], %s177
        %p179 = scmp.lt.s32.totalorder %s18, 1
        %s180 = scalar_select %p179, %s18, 1
        %s181 = smul.addr %s180, 4
        %s182 = smul.addr %s181, 8
        %s183 = scalar_lea.vmem %s0, %s182
        %v184 = vld [vmem:[#allocation2] ss:$8 sm:$0x3]
        %s185 = scalar_lea.vmem [#allocation2], 1
        %v186 = vld [vmem:[%s185] ss:$8 sm:$0x3]
        %s187 = scalar_lea.vmem [#allocation2], 2
        %v188 = vld [vmem:[%s187] ss:$8 sm:$0x3]
        %s189 = scalar_lea.vmem [#allocation2], 3
        %v190 = vld [vmem:[%s189] ss:$8 sm:$0x3]
        %s191 = scalar_lea.vmem [#allocation2], 4
        %v192 = vld [vmem:[%s191] ss:$8 sm:$0x3]
        %s193 = scalar_lea.vmem [#allocation2], 5
        %v194 = vld [vmem:[%s193] ss:$8 sm:$0x3]
        %s195 = scalar_lea.vmem [#allocation2], 6
        %v196 = vld [vmem:[%s195] ss:$8 sm:$0x3]
        %s197 = scalar_lea.vmem [#allocation2], 7
        %v198 = vld [vmem:[%s197] ss:$8 sm:$0x3]
        %s199 = scalar_lea.vmem [#allocation2], 16
        %v200 = vld [vmem:[%s199] ss:$8 sm:$0x3]
        %v201 = vld [vmem:[%s2] sm:$0xff]
        %v202 = vld [vmem:[%s2 + $0x8] sm:$0xff]
        %v203 = vld [vmem:[%s2 + $0x10] sm:$0xf]
        %v204 = vld [vmem:[%s2 + $0x18] sm:$0xff]
        %v205 = vld [vmem:[%s2 + $0x20] sm:$0xff]
        %v206 = vld [vmem:[%s2 + $0x28] sm:$0xf]
        %v207 = vld [vmem:[%s2 + $0x30] sm:$0x3f]
        %v208 = vld [vmem:[%s2 + $0x38] sm:$0x3f]
        %v209 = vld [vmem:[%s183] sm:$0xff]
        %v210 = vld [vmem:[%s183 + $0x8] sm:$0xff]
        %v211 = vld [vmem:[%s183 + $0x10] sm:$0xff]
        %v212 = vld [vmem:[%s183 + $0x18] sm:$0xff]
        %vm213 = vcmask 130048
        %v215 = vsel %vm213, %v201, 0
        %v218 = vsel %vm213, %v202, 0
        %v221 = vsel %vm213, %v203, 0
        %v223 = vand.u32 %v210, 4294901760
        %224 = vmatprep.subr.mxu0 %v223
        %v225 = vand.u32 %v209, 4294901760
        %226 = vmatpush1.msra.mxu0 %v225
        %v227 = vand.u32 %v212, 4294901760
        %228 = vmatprep.subr.mxu0 %v227
        %v229 = vand.u32 %v211, 4294901760
        %230 = vmatpush1.msra.mxu0 %v229
        %231 = vmatprep.subr.mxu0 0.0
        %232 = vmatpush1.msra.mxu0 0.0
        %233 = vmatprep.subr.mxu0 0.0
        %234 = vmatpush1.msra.mxu0 0.0
        %235 = vmatprep.subr.mxu0 0.0
        %236 = vmatpush1.msra.mxu0 0.0
        %237 = vmatprep.subr.mxu0 0.0
        %238 = vmatpush1.msra.mxu0 0.0
        %239 = vmatprep.subr.mxu0 0.0
        %240 = vmatpush1.msra.mxu0 0.0
        %241 = vmatprep.subr.mxu0 0.0
        %242 = vmatpush1.msra.mxu0 0.0
        %243 = vmatprep.subr.mxu0 0.0
        %244 = vmatpush1.msra.mxu0 0.0
        %245 = vmatprep.subr.mxu0 0.0
        %246 = vmatpush1.msra.mxu0 0.0
        %247 = vmatprep.subr.mxu0 0.0
        %248 = vmatpush1.msra.mxu0 0.0
        %249 = vmatprep.subr.mxu0 0.0
        %250 = vmatpush1.msra.mxu0 0.0
        %251 = vmatprep.subr.mxu0 0.0
        %252 = vmatpush1.msra.mxu0 0.0
        %253 = vmatprep.subr.mxu0 0.0
        %254 = vmatpush1.msra.mxu0 0.0
        %255 = vmatprep.subr.mxu0 0.0
        %256 = vmatpush1.msra.mxu0 0.0
        %257 = vmatprep.subr.mxu0 0.0
        %258 = vmatpush1.msra.mxu0 0.0
        %259 = vmatprep.subr.mxu0 0.0
        %260 = vmatpush1.msra.mxu0 0.0
        %261 = vmatprep.subr.mxu0 0.0
        %262 = vmatpush1.msra.mxu0 0.0
        %263 = vmatprep.subr.mxu0 0.0
        %264 = vmatpush1.msra.mxu0 0.0
        %265 = vmatprep.subr.mxu0 0.0
        %266 = vmatpush1.msra.mxu0 0.0
        %267 = vmatprep.subr.mxu0 0.0
        %268 = vmatpush1.msra.mxu0 0.0
        %269 = vmatprep.subr.mxu0 0.0
        %270 = vmatpush1.msra.mxu0 0.0
        %271 = vmatprep.subr.mxu0 0.0
        %272 = vmatpush1.msra.mxu0 0.0
        %273 = vmatprep.subr.mxu0 0.0
        %274 = vmatpush1.msra.mxu0 0.0
        %275 = vmatprep.subr.mxu0 0.0
        %276 = vmatpush1.msra.mxu0 0.0
        %277 = vmatprep.subr.mxu0 0.0
        %278 = vmatpush1.msra.mxu0 0.0
        %279 = vmatprep.subr.mxu0 0.0
        %280 = vmatpush1.msra.mxu0 0.0
        %281 = vmatprep.subr.mxu0 0.0
        %282 = vmatpush1.msra.mxu0 0.0
        %283 = vmatprep.subr.mxu0 0.0
        %284 = vmatpush1.msra.mxu0 0.0
        %285 = vmatprep.subr.mxu0 0.0
        %286 = vmatpush1.msra.mxu0 0.0
        %287 = vmatprep.subr.mxu0 0.0
        %288 = vmatpush1.msra.mxu0 0.0
        %289 = vmatprep.subr.mxu0 0.0
        %290 = vmatpush1.msra.mxu0 0.0
        %291 = vmatprep.mubr.f32.mxu0 0.0
        %v292 = vand.u32 %v215, 4294901760
        %v293 = vsub.f32 %v215, %v292
        %v294 = vand.u32 %v293, 4294901760
        %v295 = vsub.f32 %v293, %v294
        %v296 = vand.u32 %v295, 4294901760
        %297 = vmatmul.mubr.f32.gmra.mrb[0].mxu0 %v296
        %v298 = vpop.f32.mrb[0].mxu0
        %v299 = vadd.f32 0.0, %v298
        %v300 = vpop.f32.mrb[0].mxu0
        %v301 = vadd.f32 0.0, %v300
        %302 = vmatprep.mubr.f32.mxu0 0.0
        %v303 = vand.u32 %v218, 4294901760
        %v304 = vsub.f32 %v218, %v303
        %v305 = vand.u32 %v304, 4294901760
        %v306 = vsub.f32 %v304, %v305
        %v307 = vand.u32 %v306, 4294901760
        %308 = vmatmul.mubr.f32.gmra.mrb[0].mxu0 %v307
        %v309 = vpop.f32.mrb[0].mxu0
        %v310 = vadd.f32 0.0, %v309
        %v311 = vpop.f32.mrb[0].mxu0
        %v312 = vadd.f32 0.0, %v311
        %313 = vmatprep.mubr.f32.mxu0 0.0
        %v314 = vand.u32 %v221, 4294901760
        %v315 = vsub.f32 %v221, %v314
        %v316 = vand.u32 %v315, 4294901760
        %v317 = vsub.f32 %v315, %v316
        %v318 = vand.u32 %v317, 4294901760
        %319 = vmatmul.mubr.f32.gmra.mrb[0].mxu0 %v318
        %v320 = vpop.f32.mrb[0].mxu0
        %v321 = vadd.f32 0.0, %v320
        %v322 = vpop.f32.mrb[0].mxu0
        %v323 = vadd.f32 0.0, %v322
        %324 = vdwg.mxu0
        %v325 = vand.u32 %v210, 4294901760
        %v326 = vsub.f32 %v210, %v325
        %v327 = vand.u32 %v326, 4294901760
        %v328 = vsub.f32 %v326, %v327
        %v329 = vand.u32 %v328, 4294901760
        %330 = vmatprep.subr.mxu0 %v329
        %v331 = vand.u32 %v209, 4294901760
        %v332 = vsub.f32 %v209, %v331
        %v333 = vand.u32 %v332, 4294901760
        %v334 = vsub.f32 %v332, %v333
        %v335 = vand.u32 %v334, 4294901760
        %336 = vmatpush1.msra.mxu0 %v335
        %v337 = vand.u32 %v212, 4294901760
        %v338 = vsub.f32 %v212, %v337
        %v339 = vand.u32 %v338, 4294901760
        %v340 = vsub.f32 %v338, %v339
        %v341 = vand.u32 %v340, 4294901760
        %342 = vmatprep.subr.mxu0 %v341
        %v343 = vand.u32 %v211, 4294901760
        %v344 = vsub.f32 %v211, %v343
        %v345 = vand.u32 %v344, 4294901760
        %v346 = vsub.f32 %v344, %v345
        %v347 = vand.u32 %v346, 4294901760
        %348 = vmatpush1.msra.mxu0 %v347
        %349 = vmatprep.subr.mxu0 0.0
        %350 = vmatpush1.msra.mxu0 0.0
        %351 = vmatprep.subr.mxu0 0.0
        %352 = vmatpush1.msra.mxu0 0.0
        %353 = vmatprep.subr.mxu0 0.0
        %354 = vmatpush1.msra.mxu0 0.0
        %355 = vmatprep.subr.mxu0 0.0
        %356 = vmatpush1.msra.mxu0 0.0
        %357 = vmatprep.subr.mxu0 0.0
        %358 = vmatpush1.msra.mxu0 0.0
        %359 = vmatprep.subr.mxu0 0.0
        %360 = vmatpush1.msra.mxu0 0.0
        %361 = vmatprep.subr.mxu0 0.0
        %362 = vmatpush1.msra.mxu0 0.0
        %363 = vmatprep.subr.mxu0 0.0
        %364 = vmatpush1.msra.mxu0 0.0
        %365 = vmatprep.subr.mxu0 0.0
        %366 = vmatpush1.msra.mxu0 0.0
        %367 = vmatprep.subr.mxu0 0.0
        %368 = vmatpush1.msra.mxu0 0.0
        %369 = vmatprep.subr.mxu0 0.0
        %370 = vmatpush1.msra.mxu0 0.0
        %371 = vmatprep.subr.mxu0 0.0
        %372 = vmatpush1.msra.mxu0 0.0
        %373 = vmatprep.subr.mxu0 0.0
        %374 = vmatpush1.msra.mxu0 0.0
        %375 = vmatprep.subr.mxu0 0.0
        %376 = vmatpush1.msra.mxu0 0.0
        %377 = vmatprep.subr.mxu0 0.0
        %378 = vmatpush1.msra.mxu0 0.0
        %379 = vmatprep.subr.mxu0 0.0
        %380 = vmatpush1.msra.mxu0 0.0
        %381 = vmatprep.subr.mxu0 0.0
        %382 = vmatpush1.msra.mxu0 0.0
        %383 = vmatprep.subr.mxu0 0.0
        %384 = vmatpush1.msra.mxu0 0.0
        %385 = vmatprep.subr.mxu0 0.0
        %386 = vmatpush1.msra.mxu0 0.0
        %387 = vmatprep.subr.mxu0 0.0
        %388 = vmatpush1.msra.mxu0 0.0
        %389 = vmatprep.subr.mxu0 0.0
        %390 = vmatpush1.msra.mxu0 0.0
        %391 = vmatprep.subr.mxu0 0.0
        %392 = vmatpush1.msra.mxu0 0.0
        %393 = vmatprep.subr.mxu0 0.0
        %394 = vmatpush1.msra.mxu0 0.0
        %395 = vmatprep.subr.mxu0 0.0
        %396 = vmatpush1.msra.mxu0 0.0
        %397 = vmatprep.subr.mxu0 0.0
        %398 = vmatpush1.msra.mxu0 0.0
        %399 = vmatprep.subr.mxu0 0.0
        %400 = vmatpush1.msra.mxu0 0.0
        %401 = vmatprep.subr.mxu0 0.0
        %402 = vmatpush1.msra.mxu0 0.0
        %403 = vmatprep.subr.mxu0 0.0
        %404 = vmatpush1.msra.mxu0 0.0
        %405 = vmatprep.subr.mxu0 0.0
        %406 = vmatpush1.msra.mxu0 0.0
        %407 = vmatprep.subr.mxu0 0.0
        %408 = vmatpush1.msra.mxu0 0.0
        %409 = vmatprep.mubr.f32.mxu0 0.0
        %v410 = vand.u32 %v215, 4294901760
        %411 = vmatmul.mubr.f32.gmra.mrb[0].mxu0 %v410
        %v412 = vpop.f32.mrb[0].mxu0
        %v413 = vadd.f32 %v299, %v412
        %v414 = vpop.f32.mrb[0].mxu0
        %v415 = vadd.f32 %v301, %v414
        %416 = vmatprep.mubr.f32.mxu0 0.0
        %v417 = vand.u32 %v218, 4294901760
        %418 = vmatmul.mubr.f32.gmra.mrb[0].mxu0 %v417
        %v419 = vpop.f32.mrb[0].mxu0
        %v420 = vadd.f32 %v310, %v419
        %v421 = vpop.f32.mrb[0].mxu0
        %v422 = vadd.f32 %v312, %v421
        %423 = vmatprep.mubr.f32.mxu0 0.0
        %v424 = vand.u32 %v221, 4294901760
        %425 = vmatmul.mubr.f32.gmra.mrb[0].mxu0 %v424
        %v426 = vpop.f32.mrb[0].mxu0
        %v427 = vadd.f32 %v321, %v426
        %v428 = vpop.f32.mrb[0].mxu0
        %v429 = vadd.f32 %v323, %v428
        %430 = vdwg.mxu0
        %v431 = vand.u32 %v210, 4294901760
        %v432 = vsub.f32 %v210, %v431
        %433 = vmatprep.subr.mxu0 %v432
        %v434 = vand.u32 %v209, 4294901760
        %v435 = vsub.f32 %v209, %v434
        %436 = vmatpush1.msra.mxu0 %v435
        %v437 = vand.u32 %v212, 4294901760
        %v438 = vsub.f32 %v212, %v437
        %439 = vmatprep.subr.mxu0 %v438
        %v440 = vand.u32 %v211, 4294901760
        %v441 = vsub.f32 %v211, %v440
        %442 = vmatpush1.msra.mxu0 %v441
        %443 = vmatprep.subr.mxu0 0.0
        %444 = vmatpush1.msra.mxu0 0.0
        %445 = vmatprep.subr.mxu0 0.0
        %446 = vmatpush1.msra.mxu0 0.0
        %447 = vmatprep.subr.mxu0 0.0
        %448 = vmatpush1.msra.mxu0 0.0
        %449 = vmatprep.subr.mxu0 0.0
        %450 = vmatpush1.msra.mxu0 0.0
        %451 = vmatprep.subr.mxu0 0.0
        %452 = vmatpush1.msra.mxu0 0.0
        %453 = vmatprep.subr.mxu0 0.0
        %454 = vmatpush1.msra.mxu0 0.0
        %455 = vmatprep.subr.mxu0 0.0
        %456 = vmatpush1.msra.mxu0 0.0
        %457 = vmatprep.subr.mxu0 0.0
        %458 = vmatpush1.msra.mxu0 0.0
        %459 = vmatprep.subr.mxu0 0.0
        %460 = vmatpush1.msra.mxu0 0.0
        %461 = vmatprep.subr.mxu0 0.0
        %462 = vmatpush1.msra.mxu0 0.0
        %463 = vmatprep.subr.mxu0 0.0
        %464 = vmatpush1.msra.mxu0 0.0
        %465 = vmatprep.subr.mxu0 0.0
        %466 = vmatpush1.msra.mxu0 0.0
        %467 = vmatprep.subr.mxu0 0.0
        %468 = vmatpush1.msra.mxu0 0.0
        %469 = vmatprep.subr.mxu0 0.0
        %470 = vmatpush1.msra.mxu0 0.0
        %471 = vmatprep.subr.mxu0 0.0
        %472 = vmatpush1.msra.mxu0 0.0
        %473 = vmatprep.subr.mxu0 0.0
        %474 = vmatpush1.msra.mxu0 0.0
        %475 = vmatprep.subr.mxu0 0.0
        %476 = vmatpush1.msra.mxu0 0.0
        %477 = vmatprep.subr.mxu0 0.0
        %478 = vmatpush1.msra.mxu0 0.0
        %479 = vmatprep.subr.mxu0 0.0
        %480 = vmatpush1.msra.mxu0 0.0
        %481 = vmatprep.subr.mxu0 0.0
        %482 = vmatpush1.msra.mxu0 0.0
        %483 = vmatprep.subr.mxu0 0.0
        %484 = vmatpush1.msra.mxu0 0.0
        %485 = vmatprep.subr.mxu0 0.0
        %486 = vmatpush1.msra.mxu0 0.0
        %487 = vmatprep.subr.mxu0 0.0
        %488 = vmatpush1.msra.mxu0 0.0
        %489 = vmatprep.subr.mxu0 0.0
        %490 = vmatpush1.msra.mxu0 0.0
        %491 = vmatprep.subr.mxu0 0.0
        %492 = vmatpush1.msra.mxu0 0.0
        %493 = vmatprep.subr.mxu0 0.0
        %494 = vmatpush1.msra.mxu0 0.0
        %495 = vmatprep.subr.mxu0 0.0
        %496 = vmatpush1.msra.mxu0 0.0
        %497 = vmatprep.subr.mxu0 0.0
        %498 = vmatpush1.msra.mxu0 0.0
        %499 = vmatprep.subr.mxu0 0.0
        %500 = vmatpush1.msra.mxu0 0.0
        %501 = vmatprep.subr.mxu0 0.0
        %502 = vmatpush1.msra.mxu0 0.0
        %503 = vmatprep.mubr.f32.mxu0 0.0
        %v504 = vand.u32 %v215, 4294901760
        %v505 = vsub.f32 %v215, %v504
        %506 = vmatmul.mubr.f32.gmra.mrb[0].mxu0 %v505
        %v507 = vpop.f32.mrb[0].mxu0
        %v508 = vadd.f32 %v413, %v507
        %v509 = vpop.f32.mrb[0].mxu0
        %v510 = vadd.f32 %v415, %v509
        %511 = vmatprep.mubr.f32.mxu0 0.0
        %v512 = vand.u32 %v218, 4294901760
        %v513 = vsub.f32 %v218, %v512
        %514 = vmatmul.mubr.f32.gmra.mrb[0].mxu0 %v513
        %v515 = vpop.f32.mrb[0].mxu0
        %v516 = vadd.f32 %v420, %v515
        %v517 = vpop.f32.mrb[0].mxu0
        %v518 = vadd.f32 %v422, %v517
        %519 = vmatprep.mubr.f32.mxu0 0.0
        %v520 = vand.u32 %v221, 4294901760
        %v521 = vsub.f32 %v221, %v520
        %522 = vmatmul.mubr.f32.gmra.mrb[0].mxu0 %v521
        %v523 = vpop.f32.mrb[0].mxu0
        %v524 = vadd.f32 %v427, %v523
        %v525 = vpop.f32.mrb[0].mxu0
        %v526 = vadd.f32 %v429, %v525
        %527 = vdwg.mxu0
        %v528 = vand.u32 %v210, 4294901760
        %529 = vmatprep.subr.mxu0 %v528
        %v530 = vand.u32 %v209, 4294901760
        %531 = vmatpush1.msra.mxu0 %v530
        %v532 = vand.u32 %v212, 4294901760
        %533 = vmatprep.subr.mxu0 %v532
        %v534 = vand.u32 %v211, 4294901760
        %535 = vmatpush1.msra.mxu0 %v534
        %536 = vmatprep.subr.mxu0 0.0
        %537 = vmatpush1.msra.mxu0 0.0
        %538 = vmatprep.subr.mxu0 0.0
        %539 = vmatpush1.msra.mxu0 0.0
        %540 = vmatprep.subr.mxu0 0.0
        %541 = vmatpush1.msra.mxu0 0.0
        %542 = vmatprep.subr.mxu0 0.0
        %543 = vmatpush1.msra.mxu0 0.0
        %544 = vmatprep.subr.mxu0 0.0
        %545 = vmatpush1.msra.mxu0 0.0
        %546 = vmatprep.subr.mxu0 0.0
        %547 = vmatpush1.msra.mxu0 0.0
        %548 = vmatprep.subr.mxu0 0.0
        %549 = vmatpush1.msra.mxu0 0.0
        %550 = vmatprep.subr.mxu0 0.0
        %551 = vmatpush1.msra.mxu0 0.0
        %552 = vmatprep.subr.mxu0 0.0
        %553 = vmatpush1.msra.mxu0 0.0
        %554 = vmatprep.subr.mxu0 0.0
        %555 = vmatpush1.msra.mxu0 0.0
        %556 = vmatprep.subr.mxu0 0.0
        %557 = vmatpush1.msra.mxu0 0.0
        %558 = vmatprep.subr.mxu0 0.0
        %559 = vmatpush1.msra.mxu0 0.0
        %560 = vmatprep.subr.mxu0 0.0
        %561 = vmatpush1.msra.mxu0 0.0
        %562 = vmatprep.subr.mxu0 0.0
        %563 = vmatpush1.msra.mxu0 0.0
        %564 = vmatprep.subr.mxu0 0.0
        %565 = vmatpush1.msra.mxu0 0.0
        %566 = vmatprep.subr.mxu0 0.0
        %567 = vmatpush1.msra.mxu0 0.0
        %568 = vmatprep.subr.mxu0 0.0
        %569 = vmatpush1.msra.mxu0 0.0
        %570 = vmatprep.subr.mxu0 0.0
        %571 = vmatpush1.msra.mxu0 0.0
        %572 = vmatprep.subr.mxu0 0.0
        %573 = vmatpush1.msra.mxu0 0.0
        %574 = vmatprep.subr.mxu0 0.0
        %575 = vmatpush1.msra.mxu0 0.0
        %576 = vmatprep.subr.mxu0 0.0
        %577 = vmatpush1.msra.mxu0 0.0
        %578 = vmatprep.subr.mxu0 0.0
        %579 = vmatpush1.msra.mxu0 0.0
        %580 = vmatprep.subr.mxu0 0.0
        %581 = vmatpush1.msra.mxu0 0.0
        %582 = vmatprep.subr.mxu0 0.0
        %583 = vmatpush1.msra.mxu0 0.0
        %584 = vmatprep.subr.mxu0 0.0
        %585 = vmatpush1.msra.mxu0 0.0
        %586 = vmatprep.subr.mxu0 0.0
        %587 = vmatpush1.msra.mxu0 0.0
        %588 = vmatprep.subr.mxu0 0.0
        %589 = vmatpush1.msra.mxu0 0.0
        %590 = vmatprep.subr.mxu0 0.0
        %591 = vmatpush1.msra.mxu0 0.0
        %592 = vmatprep.subr.mxu0 0.0
        %593 = vmatpush1.msra.mxu0 0.0
        %594 = vmatprep.subr.mxu0 0.0
        %595 = vmatpush1.msra.mxu0 0.0
        %596 = vmatprep.mubr.f32.mxu0 0.0
        %v597 = vand.u32 %v215, 4294901760
        %v598 = vsub.f32 %v215, %v597
        %v599 = vand.u32 %v598, 4294901760
        %600 = vmatmul.mubr.f32.gmra.mrb[0].mxu0 %v599
        %v601 = vpop.f32.mrb[0].mxu0
        %v602 = vadd.f32 %v508, %v601
        %v603 = vpop.f32.mrb[0].mxu0
        %v604 = vadd.f32 %v510, %v603
        %605 = vmatprep.mubr.f32.mxu0 0.0
        %v606 = vand.u32 %v218, 4294901760
        %v607 = vsub.f32 %v218, %v606
        %v608 = vand.u32 %v607, 4294901760
        %609 = vmatmul.mubr.f32.gmra.mrb[0].mxu0 %v608
        %v610 = vpop.f32.mrb[0].mxu0
        %v611 = vadd.f32 %v516, %v610
        %v612 = vpop.f32.mrb[0].mxu0
        %v613 = vadd.f32 %v518, %v612
        %614 = vmatprep.mubr.f32.mxu0 0.0
        %v615 = vand.u32 %v221, 4294901760
        %v616 = vsub.f32 %v221, %v615
        %v617 = vand.u32 %v616, 4294901760
        %618 = vmatmul.mubr.f32.gmra.mrb[0].mxu0 %v617
        %v619 = vpop.f32.mrb[0].mxu0
        %v620 = vadd.f32 %v524, %v619
        %v621 = vpop.f32.mrb[0].mxu0
        %v622 = vadd.f32 %v526, %v621
        %623 = vdwg.mxu0
        %v624 = vand.u32 %v210, 4294901760
        %v625 = vsub.f32 %v210, %v624
        %v626 = vand.u32 %v625, 4294901760
        %627 = vmatprep.subr.mxu0 %v626
        %v628 = vand.u32 %v209, 4294901760
        %v629 = vsub.f32 %v209, %v628
        %v630 = vand.u32 %v629, 4294901760
        %631 = vmatpush1.msra.mxu0 %v630
        %v632 = vand.u32 %v212, 4294901760
        %v633 = vsub.f32 %v212, %v632
        %v634 = vand.u32 %v633, 4294901760
        %635 = vmatprep.subr.mxu0 %v634
        %v636 = vand.u32 %v211, 4294901760
        %v637 = vsub.f32 %v211, %v636
        %v638 = vand.u32 %v637, 4294901760
        %639 = vmatpush1.msra.mxu0 %v638
        %640 = vmatprep.subr.mxu0 0.0
        %641 = vmatpush1.msra.mxu0 0.0
        %642 = vmatprep.subr.mxu0 0.0
        %643 = vmatpush1.msra.mxu0 0.0
        %644 = vmatprep.subr.mxu0 0.0
        %645 = vmatpush1.msra.mxu0 0.0
        %646 = vmatprep.subr.mxu0 0.0
        %647 = vmatpush1.msra.mxu0 0.0
        %648 = vmatprep.subr.mxu0 0.0
        %649 = vmatpush1.msra.mxu0 0.0
        %650 = vmatprep.subr.mxu0 0.0
        %651 = vmatpush1.msra.mxu0 0.0
        %652 = vmatprep.subr.mxu0 0.0
        %653 = vmatpush1.msra.mxu0 0.0
        %654 = vmatprep.subr.mxu0 0.0
        %655 = vmatpush1.msra.mxu0 0.0
        %656 = vmatprep.subr.mxu0 0.0
        %657 = vmatpush1.msra.mxu0 0.0
        %658 = vmatprep.subr.mxu0 0.0
        %659 = vmatpush1.msra.mxu0 0.0
        %660 = vmatprep.subr.mxu0 0.0
        %661 = vmatpush1.msra.mxu0 0.0
        %662 = vmatprep.subr.mxu0 0.0
        %663 = vmatpush1.msra.mxu0 0.0
        %664 = vmatprep.subr.mxu0 0.0
        %665 = vmatpush1.msra.mxu0 0.0
        %666 = vmatprep.subr.mxu0 0.0
        %667 = vmatpush1.msra.mxu0 0.0
        %668 = vmatprep.subr.mxu0 0.0
        %669 = vmatpush1.msra.mxu0 0.0
        %670 = vmatprep.subr.mxu0 0.0
        %671 = vmatpush1.msra.mxu0 0.0
        %672 = vmatprep.subr.mxu0 0.0
        %673 = vmatpush1.msra.mxu0 0.0
        %674 = vmatprep.subr.mxu0 0.0
        %675 = vmatpush1.msra.mxu0 0.0
        %676 = vmatprep.subr.mxu0 0.0
        %677 = vmatpush1.msra.mxu0 0.0
        %678 = vmatprep.subr.mxu0 0.0
        %679 = vmatpush1.msra.mxu0 0.0
        %680 = vmatprep.subr.mxu0 0.0
        %681 = vmatpush1.msra.mxu0 0.0
        %682 = vmatprep.subr.mxu0 0.0
        %683 = vmatpush1.msra.mxu0 0.0
        %684 = vmatprep.subr.mxu0 0.0
        %685 = vmatpush1.msra.mxu0 0.0
        %686 = vmatprep.subr.mxu0 0.0
        %687 = vmatpush1.msra.mxu0 0.0
        %688 = vmatprep.subr.mxu0 0.0
        %689 = vmatpush1.msra.mxu0 0.0
        %690 = vmatprep.subr.mxu0 0.0
        %691 = vmatpush1.msra.mxu0 0.0
        %692 = vmatprep.subr.mxu0 0.0
        %693 = vmatpush1.msra.mxu0 0.0
        %694 = vmatprep.subr.mxu0 0.0
        %695 = vmatpush1.msra.mxu0 0.0
        %696 = vmatprep.subr.mxu0 0.0
        %697 = vmatpush1.msra.mxu0 0.0
        %698 = vmatprep.subr.mxu0 0.0
        %699 = vmatpush1.msra.mxu0 0.0
        %700 = vmatprep.mubr.f32.mxu0 0.0
        %v701 = vand.u32 %v215, 4294901760
        %702 = vmatmul.mubr.f32.gmra.mrb[0].mxu0 %v701
        %v703 = vpop.f32.mrb[0].mxu0
        %v704 = vadd.f32 %v602, %v703
        %v705 = vpop.f32.mrb[0].mxu0
        %v706 = vadd.f32 %v604, %v705
        %707 = vmatprep.mubr.f32.mxu0 0.0
        %v708 = vand.u32 %v218, 4294901760
        %709 = vmatmul.mubr.f32.gmra.mrb[0].mxu0 %v708
        %v710 = vpop.f32.mrb[0].mxu0
        %v711 = vadd.f32 %v611, %v710
        %v712 = vpop.f32.mrb[0].mxu0
        %v713 = vadd.f32 %v613, %v712
        %714 = vmatprep.mubr.f32.mxu0 0.0
        %v715 = vand.u32 %v221, 4294901760
        %716 = vmatmul.mubr.f32.gmra.mrb[0].mxu0 %v715
        %v717 = vpop.f32.mrb[0].mxu0
        %v718 = vadd.f32 %v620, %v717
        %v719 = vpop.f32.mrb[0].mxu0
        %v720 = vadd.f32 %v622, %v719
        %721 = vdwg.mxu0
        %v722 = vand.u32 %v210, 4294901760
        %723 = vmatprep.subr.mxu0 %v722
        %v724 = vand.u32 %v209, 4294901760
        %725 = vmatpush1.msra.mxu0 %v724
        %v726 = vand.u32 %v212, 4294901760
        %727 = vmatprep.subr.mxu0 %v726
        %v728 = vand.u32 %v211, 4294901760
        %729 = vmatpush1.msra.mxu0 %v728
        %730 = vmatprep.subr.mxu0 0.0
        %731 = vmatpush1.msra.mxu0 0.0
        %732 = vmatprep.subr.mxu0 0.0
        %733 = vmatpush1.msra.mxu0 0.0
        %734 = vmatprep.subr.mxu0 0.0
        %735 = vmatpush1.msra.mxu0 0.0
        %736 = vmatprep.subr.mxu0 0.0
        %737 = vmatpush1.msra.mxu0 0.0
        %738 = vmatprep.subr.mxu0 0.0
        %739 = vmatpush1.msra.mxu0 0.0
        %740 = vmatprep.subr.mxu0 0.0
        %741 = vmatpush1.msra.mxu0 0.0
        %742 = vmatprep.subr.mxu0 0.0
        %743 = vmatpush1.msra.mxu0 0.0
        %744 = vmatprep.subr.mxu0 0.0
        %745 = vmatpush1.msra.mxu0 0.0
        %746 = vmatprep.subr.mxu0 0.0
        %747 = vmatpush1.msra.mxu0 0.0
        %748 = vmatprep.subr.mxu0 0.0
        %749 = vmatpush1.msra.mxu0 0.0
        %750 = vmatprep.subr.mxu0 0.0
        %751 = vmatpush1.msra.mxu0 0.0
        %752 = vmatprep.subr.mxu0 0.0
        %753 = vmatpush1.msra.mxu0 0.0
        %754 = vmatprep.subr.mxu0 0.0
        %755 = vmatpush1.msra.mxu0 0.0
        %756 = vmatprep.subr.mxu0 0.0
        %757 = vmatpush1.msra.mxu0 0.0
        %758 = vmatprep.subr.mxu0 0.0
        %759 = vmatpush1.msra.mxu0 0.0
        %760 = vmatprep.subr.mxu0 0.0
        %761 = vmatpush1.msra.mxu0 0.0
        %762 = vmatprep.subr.mxu0 0.0
        %763 = vmatpush1.msra.mxu0 0.0
        %764 = vmatprep.subr.mxu0 0.0
        %765 = vmatpush1.msra.mxu0 0.0
        %766 = vmatprep.subr.mxu0 0.0
        %767 = vmatpush1.msra.mxu0 0.0
        %768 = vmatprep.subr.mxu0 0.0
        %769 = vmatpush1.msra.mxu0 0.0
        %770 = vmatprep.subr.mxu0 0.0
        %771 = vmatpush1.msra.mxu0 0.0
        %772 = vmatprep.subr.mxu0 0.0
        %773 = vmatpush1.msra.mxu0 0.0
        %774 = vmatprep.subr.mxu0 0.0
        %775 = vmatpush1.msra.mxu0 0.0
        %776 = vmatprep.subr.mxu0 0.0
        %777 = vmatpush1.msra.mxu0 0.0
        %778 = vmatprep.subr.mxu0 0.0
        %779 = vmatpush1.msra.mxu0 0.0
        %780 = vmatprep.subr.mxu0 0.0
        %781 = vmatpush1.msra.mxu0 0.0
        %782 = vmatprep.subr.mxu0 0.0
        %783 = vmatpush1.msra.mxu0 0.0
        %784 = vmatprep.subr.mxu0 0.0
        %785 = vmatpush1.msra.mxu0 0.0
        %786 = vmatprep.subr.mxu0 0.0
        %787 = vmatpush1.msra.mxu0 0.0
        %788 = vmatprep.subr.mxu0 0.0
        %789 = vmatpush1.msra.mxu0 0.0
        %790 = vmatprep.mubr.f32.mxu0 0.0
        %v791 = vand.u32 %v215, 4294901760
        %792 = vmatmul.mubr.f32.gmra.mrb[0].mxu0 %v791
        %v793 = vpop.f32.mrb[0].mxu0
        %v794 = vadd.f32 %v704, %v793
        %v795 = vpop.f32.mrb[0].mxu0
        %v796 = vadd.f32 %v706, %v795
        %797 = vmatprep.mubr.f32.mxu0 0.0
        %v798 = vand.u32 %v218, 4294901760
        %799 = vmatmul.mubr.f32.gmra.mrb[0].mxu0 %v798
        %v800 = vpop.f32.mrb[0].mxu0
        %v801 = vadd.f32 %v711, %v800
        %v802 = vpop.f32.mrb[0].mxu0
        %v803 = vadd.f32 %v713, %v802
        %804 = vmatprep.mubr.f32.mxu0 0.0
        %v805 = vand.u32 %v221, 4294901760
        %806 = vmatmul.mubr.f32.gmra.mrb[0].mxu0 %v805
        %v807 = vpop.f32.mrb[0].mxu0
        %v808 = vadd.f32 %v718, %v807
        %v809 = vpop.f32.mrb[0].mxu0
        %v810 = vadd.f32 %v720, %v809
        %811 = vdwg.mxu0
        %v812 = vmul.f32 %v794, 0.70710677
        %v813 = vmul.f32 %v796, 0.70710677
        %v814 = vmul.f32 %v801, 0.70710677
        %v815 = vmul.f32 %v803, 0.70710677
        %v816 = vand.u32 2147483647, %v812
        %v817 = vand.u32 2147483647, %v813
        %v818 = vand.u32 2147483647, %v814
        %v819 = vand.u32 2147483647, %v815
        %v820 = vmul.f32 %v816, 0.3275911
        %v821 = vmul.f32 %v817, 0.3275911
        %v822 = vmul.f32 %v818, 0.3275911
        %v823 = vmul.f32 %v819, 0.3275911
        %v824 = vadd.f32 %v820, 1.0
        %v825 = vadd.f32 %v821, 1.0
        %v826 = vadd.f32 %v822, 1.0
        %v827 = vadd.f32 %v823, 1.0
        %v828 = vrcp.pop %v824
        %v829 = vmul.f32 1.0, %v828
        %v830 = vrcp.pop %v825
        %v831 = vmul.f32 1.0, %v830
        %v832 = vrcp.pop %v826
        %v833 = vmul.f32 1.0, %v832
        %v834 = vrcp.pop %v827
        %v835 = vmul.f32 1.0, %v834
        %v836 = vmul.f32 %v829, 1.0614054
        %v837 = vmul.f32 %v831, 1.0614054
        %v838 = vmul.f32 %v833, 1.0614054
        %v839 = vmul.f32 %v835, 1.0614054
        %v840 = vsub.f32 %v836, 1.4531521
        %v841 = vsub.f32 %v837, 1.4531521
        %v842 = vsub.f32 %v838, 1.4531521
        %v843 = vsub.f32 %v839, 1.4531521
        %v844 = vmul.f32 %v840, %v829
        %v845 = vmul.f32 %v841, %v831
        %v846 = vmul.f32 %v842, %v833
        %v847 = vmul.f32 %v843, %v835
        %v848 = vadd.f32 %v844, 1.4214138
        %v849 = vadd.f32 %v845, 1.4214138
        %v850 = vadd.f32 %v846, 1.4214138
        %v851 = vadd.f32 %v847, 1.4214138
        %v852 = vmul.f32 %v848, %v829
        %v853 = vmul.f32 %v849, %v831
        %v854 = vmul.f32 %v850, %v833
        %v855 = vmul.f32 %v851, %v835
        %v856 = vsub.f32 %v852, 0.28449672
        %v857 = vsub.f32 %v853, 0.28449672
        %v858 = vsub.f32 %v854, 0.28449672
        %v859 = vsub.f32 %v855, 0.28449672
        %v860 = vmul.f32 %v856, %v829
        %v861 = vmul.f32 %v857, %v831
        %v862 = vmul.f32 %v858, %v833
        %v863 = vmul.f32 %v859, %v835
        %v864 = vadd.f32 %v860, 0.2548296
        %v865 = vadd.f32 %v861, 0.2548296
        %v866 = vadd.f32 %v862, 0.2548296
        %v867 = vadd.f32 %v863, 0.2548296
        %v868 = vmul.f32 %v864, %v829
        %v869 = vmul.f32 %v865, %v831
        %v870 = vmul.f32 %v866, %v833
        %v871 = vmul.f32 %v867, %v835
        %v872 = vsub.f32 0.0, %v816
        %v873 = vsub.f32 0.0, %v817
        %v874 = vsub.f32 0.0, %v818
        %v875 = vsub.f32 0.0, %v819
        %v876 = vmul.f32 %v872, %v816
        %v877 = vmul.f32 %v873, %v817
        %v878 = vmul.f32 %v874, %v818
        %v879 = vmul.f32 %v875, %v819
        %v880 = vmul.f32 %v876, 1.442695
        %v881 = vpow.pop %v880
        %v882 = vmul.f32 %v877, 1.442695
        %v883 = vpow.pop %v882
        %v884 = vmul.f32 %v878, 1.442695
        %v885 = vpow.pop %v884
        %v886 = vmul.f32 %v879, 1.442695
        %v887 = vpow.pop %v886
        %v888 = vmul.f32 %v868, %v881
        %v889 = vmul.f32 %v869, %v883
        %v890 = vmul.f32 %v870, %v885
        %v891 = vmul.f32 %v871, %v887
        %v892 = vsub.f32 1.0, %v888
        %v893 = vsub.f32 1.0, %v889
        %v894 = vsub.f32 1.0, %v890
        %v895 = vsub.f32 1.0, %v891
        %vm896 = vcmp.lt.f32.partialorder %v812, 0.0
        %vm897 = vcmp.lt.f32.partialorder %v813, 0.0
        %vm898 = vcmp.lt.f32.partialorder %v814, 0.0
        %vm899 = vcmp.lt.f32.partialorder %v815, 0.0
        %v900 = vsub.f32 0.0, %v892
        %v901 = vsub.f32 0.0, %v893
        %v902 = vsub.f32 0.0, %v894
        %v903 = vsub.f32 0.0, %v895
        %v904 = vsel %vm896, %v900, %v892
        %v905 = vsel %vm897, %v901, %v893
        %v906 = vsel %vm898, %v902, %v894
        %v907 = vsel %vm899, %v903, %v895
        %v908 = vmul.f32 %v794, 0.5
        %v909 = vmul.f32 %v796, 0.5
        %v910 = vmul.f32 %v801, 0.5
        %v911 = vmul.f32 %v803, 0.5
        %v912 = vadd.f32 %v904, 1.0
        %v913 = vadd.f32 %v905, 1.0
        %v914 = vadd.f32 %v906, 1.0
        %v915 = vadd.f32 %v907, 1.0
        %v916 = vmul.f32 %v908, %v912
        %v917 = vmul.f32 %v909, %v913
        %v918 = vmul.f32 %v910, %v914
        %v919 = vmul.f32 %v911, %v915
        %922 = vrot.lane.b32.xlu0 %v917, 17
        %v923 = vpop.permute.xlu0 %922
        %924 = vrot.lane.b32.xlu0 %v919, 17
        %v925 = vpop.permute.xlu0 %924
        %930 = vrot.lane.b32.xlu0 %v916, 17
        %v931 = vpop.permute.xlu0 %930
        %932 = vrot.lane.b32.xlu0 %v918, 17
        %v933 = vpop.permute.xlu0 %932
        %vm934 = vcmask 138240
        %v935 = vsel %vm934, %v931, %v923
        %v936 = vsel %vm934, %v933, %v925
        %v941 = vsel %vm934, %v923, %v931
        %v942 = vsel %vm934, %v925, %v933
        %v944 = vlaneseq
        %v945 = vshrl.u32 %v944, 7
        %v946 = vsub.s32 0, %v945
        %v947 = vrot.slane %v184, %v946
        %v948 = vlaneseq
        %v949 = vshrl.u32 %v948, 7
        %v950 = vsub.s32 1, %v949
        %v951 = vrot.slane %v184, %v950
        %v954 = vmul.f32 %v941, %v947
        %v955 = vmul.f32 %v935, %v951
        %v956 = vmul.f32 %v942, %v947
        %v957 = vmul.f32 %v936, %v951
        %958 = vrot.lane.b32.xlu0 %v917, 16
        %v959 = vpop.permute.xlu0 %958
        %960 = vrot.lane.b32.xlu0 %v919, 16
        %v961 = vpop.permute.xlu0 %960
        %964 = vrot.lane.b32.xlu0 %v916, 16
        %v965 = vpop.permute.xlu0 %964
        %966 = vrot.lane.b32.xlu0 %v918, 16
        %v967 = vpop.permute.xlu0 %966
        %v968 = vsel %vm213, %v965, %v959
        %v969 = vsel %vm213, %v967, %v961
        %v974 = vsel %vm213, %v959, %v965
        %v975 = vsel %vm213, %v961, %v967
        %v977 = vlaneseq
        %v978 = vshrl.u32 %v977, 7
        %v979 = vsub.s32 0, %v978
        %v980 = vrot.slane %v186, %v979
        %v981 = vlaneseq
        %v982 = vshrl.u32 %v981, 7
        %v983 = vsub.s32 1, %v982
        %v984 = vrot.slane %v186, %v983
        %v987 = vmul.f32 %v974, %v980
        %v988 = vmul.f32 %v968, %v984
        %v989 = vmul.f32 %v975, %v980
        %v990 = vmul.f32 %v969, %v984
        %991 = vrot.lane.b32.xlu0 %v917, 15
        %v992 = vpop.permute.xlu0 %991
        %993 = vrot.lane.b32.xlu0 %v919, 15
        %v994 = vpop.permute.xlu0 %993
        %997 = vrot.lane.b32.xlu0 %v916, 15
        %v998 = vpop.permute.xlu0 %997
        %999 = vrot.lane.b32.xlu0 %v918, 15
        %v1000 = vpop.permute.xlu0 %999
        %vm1001 = vcmask 121856
        %v1002 = vsel %vm1001, %v998, %v992
        %v1003 = vsel %vm1001, %v1000, %v994
        %v1008 = vsel %vm1001, %v992, %v998
        %v1009 = vsel %vm1001, %v994, %v1000
        %v1011 = vlaneseq
        %v1012 = vshrl.u32 %v1011, 7
        %v1013 = vsub.s32 0, %v1012
        %v1014 = vrot.slane %v188, %v1013
        %v1015 = vlaneseq
        %v1016 = vshrl.u32 %v1015, 7
        %v1017 = vsub.s32 1, %v1016
        %v1018 = vrot.slane %v188, %v1017
        %v1021 = vmul.f32 %v1008, %v1014
        %v1022 = vmul.f32 %v1002, %v1018
        %v1023 = vmul.f32 %v1009, %v1014
        %v1024 = vmul.f32 %v1003, %v1018
        %1025 = vrot.lane.b32.xlu0 %v917, 1
        %v1026 = vpop.permute.xlu0 %1025
        %1027 = vrot.lane.b32.xlu0 %v919, 1
        %v1028 = vpop.permute.xlu0 %1027
        %1031 = vrot.lane.b32.xlu0 %v916, 1
        %v1032 = vpop.permute.xlu0 %1031
        %1033 = vrot.lane.b32.xlu0 %v918, 1
        %v1034 = vpop.permute.xlu0 %1033
        %vm1035 = vcmask 7168
        %v1036 = vsel %vm1035, %v1032, %v1026
        %v1037 = vsel %vm1035, %v1034, %v1028
        %v1042 = vsel %vm1035, %v1026, %v1032
        %v1043 = vsel %vm1035, %v1028, %v1034
        %v1045 = vlaneseq
        %v1046 = vshrl.u32 %v1045, 7
        %v1047 = vsub.s32 0, %v1046
        %v1048 = vrot.slane %v190, %v1047
        %v1049 = vlaneseq
        %v1050 = vshrl.u32 %v1049, 7
        %v1051 = vsub.s32 1, %v1050
        %v1052 = vrot.slane %v190, %v1051
        %v1055 = vmul.f32 %v1042, %v1048
        %v1056 = vmul.f32 %v1036, %v1052
        %v1057 = vmul.f32 %v1043, %v1048
        %v1058 = vmul.f32 %v1037, %v1052
        %1059 = vrot.lane.b32.xlu0 %v916, 127
        %v1060 = vpop.permute.xlu0 %1059
        %1061 = vrot.lane.b32.xlu0 %v917, 127
        %v1062 = vpop.permute.xlu0 %1061
        %1063 = vrot.lane.b32.xlu0 %v918, 127
        %v1064 = vpop.permute.xlu0 %1063
        %1065 = vrot.lane.b32.xlu0 %v919, 127
        %v1066 = vpop.permute.xlu0 %1065
        %vm1067 = vcmask 1039360
        %v1068 = vsel %vm1067, %v1060, %v1062
        %v1069 = vsel %vm1067, %v1064, %v1066
        %v1076 = vsel %vm1067, %v1062, %v1060
        %v1077 = vsel %vm1067, %v1066, %v1064
        %v1079 = vlaneseq
        %v1080 = vshrl.u32 %v1079, 7
        %v1081 = vsub.s32 0, %v1080
        %v1082 = vrot.slane %v192, %v1081
        %v1083 = vlaneseq
        %v1084 = vshrl.u32 %v1083, 7
        %v1085 = vsub.s32 1, %v1084
        %v1086 = vrot.slane %v192, %v1085
        %v1089 = vmul.f32 %v1068, %v1082
        %v1090 = vmul.f32 %v1076, %v1086
        %v1091 = vmul.f32 %v1069, %v1082
        %v1092 = vmul.f32 %v1077, %v1086
        %1093 = vrot.lane.b32.xlu0 %v916, 113
        %v1094 = vpop.permute.xlu0 %1093
        %1095 = vrot.lane.b32.xlu0 %v917, 113
        %v1096 = vpop.permute.xlu0 %1095
        %1097 = vrot.lane.b32.xlu0 %v918, 113
        %v1098 = vpop.permute.xlu0 %1097
        %1099 = vrot.lane.b32.xlu0 %v919, 113
        %v1100 = vpop.permute.xlu0 %1099
        %vm1101 = vcmask 924672
        %v1102 = vsel %vm1101, %v1094, %v1096
        %v1103 = vsel %vm1101, %v1098, %v1100
        %v1110 = vsel %vm1101, %v1096, %v1094
        %v1111 = vsel %vm1101, %v1100, %v1098
        %v1113 = vlaneseq
        %v1114 = vshrl.u32 %v1113, 7
        %v1115 = vsub.s32 0, %v1114
        %v1116 = vrot.slane %v194, %v1115
        %v1117 = vlaneseq
        %v1118 = vshrl.u32 %v1117, 7
        %v1119 = vsub.s32 1, %v1118
        %v1120 = vrot.slane %v194, %v1119
        %v1123 = vmul.f32 %v1102, %v1116
        %v1124 = vmul.f32 %v1110, %v1120
        %v1125 = vmul.f32 %v1103, %v1116
        %v1126 = vmul.f32 %v1111, %v1120
        %1127 = vrot.lane.b32.xlu0 %v916, 112
        %v1128 = vpop.permute.xlu0 %1127
        %1129 = vrot.lane.b32.xlu0 %v917, 112
        %v1130 = vpop.permute.xlu0 %1129
        %1131 = vrot.lane.b32.xlu0 %v918, 112
        %v1132 = vpop.permute.xlu0 %1131
        %1133 = vrot.lane.b32.xlu0 %v919, 112
        %v1134 = vpop.permute.xlu0 %1133
        %vm1135 = vcmask 916480
        %v1136 = vsel %vm1135, %v1128, %v1130
        %v1137 = vsel %vm1135, %v1132, %v1134
        %v1144 = vsel %vm1135, %v1130, %v1128
        %v1145 = vsel %vm1135, %v1134, %v1132
        %v1147 = vlaneseq
        %v1148 = vshrl.u32 %v1147, 7
        %v1149 = vsub.s32 0, %v1148
        %v1150 = vrot.slane %v196, %v1149
        %v1151 = vlaneseq
        %v1152 = vshrl.u32 %v1151, 7
        %v1153 = vsub.s32 1, %v1152
        %v1154 = vrot.slane %v196, %v1153
        %v1157 = vmul.f32 %v1136, %v1150
        %v1158 = vmul.f32 %v1144, %v1154
        %v1159 = vmul.f32 %v1137, %v1150
        %v1160 = vmul.f32 %v1145, %v1154
        %1161 = vrot.lane.b32.xlu0 %v916, 111
        %v1162 = vpop.permute.xlu0 %1161
        %1163 = vrot.lane.b32.xlu0 %v917, 111
        %v1164 = vpop.permute.xlu0 %1163
        %1165 = vrot.lane.b32.xlu0 %v918, 111
        %v1166 = vpop.permute.xlu0 %1165
        %1167 = vrot.lane.b32.xlu0 %v919, 111
        %v1168 = vpop.permute.xlu0 %1167
        %vm1169 = vcmask 908288
        %v1170 = vsel %vm1169, %v1162, %v1164
        %v1171 = vsel %vm1169, %v1166, %v1168
        %v1178 = vsel %vm1169, %v1164, %v1162
        %v1179 = vsel %vm1169, %v1168, %v1166
        %v1181 = vlaneseq
        %v1182 = vshrl.u32 %v1181, 7
        %v1183 = vsub.s32 0, %v1182
        %v1184 = vrot.slane %v198, %v1183
        %v1185 = vlaneseq
        %v1186 = vshrl.u32 %v1185, 7
        %v1187 = vsub.s32 1, %v1186
        %v1188 = vrot.slane %v198, %v1187
        %v1191 = vmul.f32 %v1170, %v1184
        %v1192 = vmul.f32 %v1178, %v1188
        %v1193 = vmul.f32 %v1171, %v1184
        %v1194 = vmul.f32 %v1179, %v1188
        %1196 = vset.pattern.permute.xlu0 0
        %1197 = vperm.xlu0 %1196, %v204
        %v1198 = vpop.permute.xlu0 %1197
        %v1199 = vrot.slane %v1198, 2
        %v1201 = vmul.f32 %v954, %v1199
        %v1202 = vmul.f32 %v955, %v1199
        %v1203 = vmul.f32 %v956, %v1199
        %v1204 = vmul.f32 %v957, %v1199
        %1205 = vset.pattern.permute.xlu0 1
        %1206 = vperm.xlu0 %1205, %v204
        %v1207 = vpop.permute.xlu0 %1206
        %v1208 = vrot.slane %v1207, 2
        %v1210 = vmul.f32 %v987, %v1208
        %v1211 = vmul.f32 %v988, %v1208
        %v1212 = vmul.f32 %v989, %v1208
        %v1213 = vmul.f32 %v990, %v1208
        %v1214 = vadd.f32 %v1201, %v1210
        %v1215 = vadd.f32 %v1202, %v1211
        %v1216 = vadd.f32 %v1203, %v1212
        %v1217 = vadd.f32 %v1204, %v1213
        %1218 = vset.pattern.permute.xlu0 2
        %1219 = vperm.xlu0 %1218, %v204
        %v1220 = vpop.permute.xlu0 %1219
        %v1221 = vrot.slane %v1220, 2
        %v1223 = vmul.f32 %v1021, %v1221
        %v1224 = vmul.f32 %v1022, %v1221
        %v1225 = vmul.f32 %v1023, %v1221
        %v1226 = vmul.f32 %v1024, %v1221
        %v1227 = vadd.f32 %v1214, %v1223
        %v1228 = vadd.f32 %v1215, %v1224
        %v1229 = vadd.f32 %v1216, %v1225
        %v1230 = vadd.f32 %v1217, %v1226
        %1231 = vset.pattern.permute.xlu0 3
        %1232 = vperm.xlu0 %1231, %v204
        %v1233 = vpop.permute.xlu0 %1232
        %v1234 = vrot.slane %v1233, 2
        %v1236 = vmul.f32 %v1055, %v1234
        %v1237 = vmul.f32 %v1056, %v1234
        %v1238 = vmul.f32 %v1057, %v1234
        %v1239 = vmul.f32 %v1058, %v1234
        %v1240 = vadd.f32 %v1227, %v1236
        %v1241 = vadd.f32 %v1228, %v1237
        %v1242 = vadd.f32 %v1229, %v1238
        %v1243 = vadd.f32 %v1230, %v1239
        %1244 = vset.pattern.permute.xlu0 4
        %1245 = vperm.xlu0 %1244, %v204
        %v1246 = vpop.permute.xlu0 %1245
        %v1247 = vrot.slane %v1246, 2
        %v1249 = vmul.f32 %v916, %v1247
        %v1250 = vmul.f32 %v917, %v1247
        %v1251 = vmul.f32 %v918, %v1247
        %v1252 = vmul.f32 %v919, %v1247
        %v1253 = vadd.f32 %v1240, %v1249
        %v1254 = vadd.f32 %v1241, %v1250
        %v1255 = vadd.f32 %v1242, %v1251
        %v1256 = vadd.f32 %v1243, %v1252
        %1257 = vset.pattern.permute.xlu0 5
        %1258 = vperm.xlu0 %1257, %v204
        %v1259 = vpop.permute.xlu0 %1258
        %v1260 = vrot.slane %v1259, 2
        %v1262 = vmul.f32 %v1089, %v1260
        %v1263 = vmul.f32 %v1090, %v1260
        %v1264 = vmul.f32 %v1091, %v1260
        %v1265 = vmul.f32 %v1092, %v1260
        %v1266 = vadd.f32 %v1253, %v1262
        %v1267 = vadd.f32 %v1254, %v1263
        %v1268 = vadd.f32 %v1255, %v1264
        %v1269 = vadd.f32 %v1256, %v1265
        %1270 = vset.pattern.permute.xlu0 6
        %1271 = vperm.xlu0 %1270, %v204
        %v1272 = vpop.permute.xlu0 %1271
        %v1273 = vrot.slane %v1272, 2
        %v1275 = vmul.f32 %v1123, %v1273
        %v1276 = vmul.f32 %v1124, %v1273
        %v1277 = vmul.f32 %v1125, %v1273
        %v1278 = vmul.f32 %v1126, %v1273
        %v1279 = vadd.f32 %v1266, %v1275
        %v1280 = vadd.f32 %v1267, %v1276
        %v1281 = vadd.f32 %v1268, %v1277
        %v1282 = vadd.f32 %v1269, %v1278
        %1283 = vset.pattern.permute.xlu0 7
        %1284 = vperm.xlu0 %1283, %v204
        %v1285 = vpop.permute.xlu0 %1284
        %v1286 = vrot.slane %v1285, 2
        %v1288 = vmul.f32 %v1157, %v1286
        %v1289 = vmul.f32 %v1158, %v1286
        %v1290 = vmul.f32 %v1159, %v1286
        %v1291 = vmul.f32 %v1160, %v1286
        %v1292 = vadd.f32 %v1279, %v1288
        %v1293 = vadd.f32 %v1280, %v1289
        %v1294 = vadd.f32 %v1281, %v1290
        %v1295 = vadd.f32 %v1282, %v1291
        %1296 = vset.pattern.permute.xlu0 8
        %1297 = vperm.xlu0 %1296, %v204
        %v1298 = vpop.permute.xlu0 %1297
        %v1299 = vrot.slane %v1298, 2
        %v1301 = vmul.f32 %v1191, %v1299
        %v1302 = vmul.f32 %v1192, %v1299
        %v1303 = vmul.f32 %v1193, %v1299
        %v1304 = vmul.f32 %v1194, %v1299
        %v1305 = vadd.f32 %v1292, %v1301
        %v1306 = vadd.f32 %v1293, %v1302
        %v1307 = vadd.f32 %v1294, %v1303
        %v1308 = vadd.f32 %v1295, %v1304
        %v1309 = vmul.f32 %v1305, 0.70710677
        %v1310 = vmul.f32 %v1306, 0.70710677
        %v1311 = vmul.f32 %v1307, 0.70710677
        %v1312 = vmul.f32 %v1308, 0.70710677
        %v1313 = vand.u32 2147483647, %v1309
        %v1314 = vand.u32 2147483647, %v1310
        %v1315 = vand.u32 2147483647, %v1311
        %v1316 = vand.u32 2147483647, %v1312
        %v1317 = vmul.f32 %v1313, 0.3275911
        %v1318 = vmul.f32 %v1314, 0.3275911
        %v1319 = vmul.f32 %v1315, 0.3275911
        %v1320 = vmul.f32 %v1316, 0.3275911
        %v1321 = vadd.f32 %v1317, 1.0
        %v1322 = vadd.f32 %v1318, 1.0
        %v1323 = vadd.f32 %v1319, 1.0
        %v1324 = vadd.f32 %v1320, 1.0
        %v1325 = vrcp.pop %v1321
        %v1326 = vmul.f32 1.0, %v1325
        %v1327 = vrcp.pop %v1322
        %v1328 = vmul.f32 1.0, %v1327
        %v1329 = vrcp.pop %v1323
        %v1330 = vmul.f32 1.0, %v1329
        %v1331 = vrcp.pop %v1324
        %v1332 = vmul.f32 1.0, %v1331
        %v1333 = vmul.f32 %v1326, 1.0614054
        %v1334 = vmul.f32 %v1328, 1.0614054
        %v1335 = vmul.f32 %v1330, 1.0614054
        %v1336 = vmul.f32 %v1332, 1.0614054
        %v1337 = vsub.f32 %v1333, 1.4531521
        %v1338 = vsub.f32 %v1334, 1.4531521
        %v1339 = vsub.f32 %v1335, 1.4531521
        %v1340 = vsub.f32 %v1336, 1.4531521
        %v1341 = vmul.f32 %v1337, %v1326
        %v1342 = vmul.f32 %v1338, %v1328
        %v1343 = vmul.f32 %v1339, %v1330
        %v1344 = vmul.f32 %v1340, %v1332
        %v1345 = vadd.f32 %v1341, 1.4214138
        %v1346 = vadd.f32 %v1342, 1.4214138
        %v1347 = vadd.f32 %v1343, 1.4214138
        %v1348 = vadd.f32 %v1344, 1.4214138
        %v1349 = vmul.f32 %v1345, %v1326
        %v1350 = vmul.f32 %v1346, %v1328
        %v1351 = vmul.f32 %v1347, %v1330
        %v1352 = vmul.f32 %v1348, %v1332
        %v1353 = vsub.f32 %v1349, 0.28449672
        %v1354 = vsub.f32 %v1350, 0.28449672
        %v1355 = vsub.f32 %v1351, 0.28449672
        %v1356 = vsub.f32 %v1352, 0.28449672
        %v1357 = vmul.f32 %v1353, %v1326
        %v1358 = vmul.f32 %v1354, %v1328
        %v1359 = vmul.f32 %v1355, %v1330
        %v1360 = vmul.f32 %v1356, %v1332
        %v1361 = vadd.f32 %v1357, 0.2548296
        %v1362 = vadd.f32 %v1358, 0.2548296
        %v1363 = vadd.f32 %v1359, 0.2548296
        %v1364 = vadd.f32 %v1360, 0.2548296
        %v1365 = vmul.f32 %v1361, %v1326
        %v1366 = vmul.f32 %v1362, %v1328
        %v1367 = vmul.f32 %v1363, %v1330
        %v1368 = vmul.f32 %v1364, %v1332
        %v1369 = vsub.f32 0.0, %v1313
        %v1370 = vsub.f32 0.0, %v1314
        %v1371 = vsub.f32 0.0, %v1315
        %v1372 = vsub.f32 0.0, %v1316
        %v1373 = vmul.f32 %v1369, %v1313
        %v1374 = vmul.f32 %v1370, %v1314
        %v1375 = vmul.f32 %v1371, %v1315
        %v1376 = vmul.f32 %v1372, %v1316
        %v1377 = vmul.f32 %v1373, 1.442695
        %v1378 = vpow.pop %v1377
        %v1379 = vmul.f32 %v1374, 1.442695
        %v1380 = vpow.pop %v1379
        %v1381 = vmul.f32 %v1375, 1.442695
        %v1382 = vpow.pop %v1381
        %v1383 = vmul.f32 %v1376, 1.442695
        %v1384 = vpow.pop %v1383
        %v1385 = vmul.f32 %v1365, %v1378
        %v1386 = vmul.f32 %v1366, %v1380
        %v1387 = vmul.f32 %v1367, %v1382
        %v1388 = vmul.f32 %v1368, %v1384
        %v1389 = vsub.f32 1.0, %v1385
        %v1390 = vsub.f32 1.0, %v1386
        %v1391 = vsub.f32 1.0, %v1387
        %v1392 = vsub.f32 1.0, %v1388
        %vm1393 = vcmp.lt.f32.partialorder %v1309, 0.0
        %vm1394 = vcmp.lt.f32.partialorder %v1310, 0.0
        %vm1395 = vcmp.lt.f32.partialorder %v1311, 0.0
        %vm1396 = vcmp.lt.f32.partialorder %v1312, 0.0
        %v1397 = vsub.f32 0.0, %v1389
        %v1398 = vsub.f32 0.0, %v1390
        %v1399 = vsub.f32 0.0, %v1391
        %v1400 = vsub.f32 0.0, %v1392
        %v1401 = vsel %vm1393, %v1397, %v1389
        %v1402 = vsel %vm1394, %v1398, %v1390
        %v1403 = vsel %vm1395, %v1399, %v1391
        %v1404 = vsel %vm1396, %v1400, %v1392
        %v1405 = vmul.f32 %v1305, 0.5
        %v1406 = vmul.f32 %v1306, 0.5
        %v1407 = vmul.f32 %v1307, 0.5
        %v1408 = vmul.f32 %v1308, 0.5
        %v1409 = vadd.f32 %v1401, 1.0
        %v1410 = vadd.f32 %v1402, 1.0
        %v1411 = vadd.f32 %v1403, 1.0
        %v1412 = vadd.f32 %v1404, 1.0
        %v1413 = vmul.f32 %v1405, %v1409
        %v1414 = vmul.f32 %v1406, %v1410
        %v1415 = vmul.f32 %v1407, %v1411
        %v1416 = vmul.f32 %v1408, %v1412
        %vm1421 = vcmask 1041408
        %v1422 = vrot.slane %v1413, 6
        %v1423 = vrot.slane %v1415, 6
        %v1424 = vsel %vm1421, %v1422, %v1423
        %v1425 = vrot.slane %v1414, 6
        %v1426 = vrot.slane %v1416, 6
        %v1427 = vsel %vm1421, %v1425, %v1426
        %vm1430 = vcmask 64512
        %v1432 = vsel %vm1430, %v205, 0
        %v1435 = vsel %vm1430, %v206, 0
        %v1437 = vand.u32 %v1427, 4294901760
        %1438 = vmatprep.subr.mxu0 %v1437
        %v1439 = vand.u32 %v1424, 4294901760
        %1440 = vmatpush1.msra.mxu0 %v1439
        %1441 = vmatprep.subr.mxu0 0.0
        %1442 = vmatpush1.msra.mxu0 0.0
        %1443 = vmatprep.subr.mxu0 0.0
        %1444 = vmatpush1.msra.mxu0 0.0
        %1445 = vmatprep.subr.mxu0 0.0
        %1446 = vmatpush1.msra.mxu0 0.0
        %1447 = vmatprep.subr.mxu0 0.0
        %1448 = vmatpush1.msra.mxu0 0.0
        %1449 = vmatprep.subr.mxu0 0.0
        %1450 = vmatpush1.msra.mxu0 0.0
        %1451 = vmatprep.subr.mxu0 0.0
        %1452 = vmatpush1.msra.mxu0 0.0
        %1453 = vmatprep.subr.mxu0 0.0
        %1454 = vmatpush1.msra.mxu0 0.0
        %1455 = vmatprep.subr.mxu0 0.0
        %1456 = vmatpush1.msra.mxu0 0.0
        %1457 = vmatprep.subr.mxu0 0.0
        %1458 = vmatpush1.msra.mxu0 0.0
        %1459 = vmatprep.subr.mxu0 0.0
        %1460 = vmatpush1.msra.mxu0 0.0
        %1461 = vmatprep.subr.mxu0 0.0
        %1462 = vmatpush1.msra.mxu0 0.0
        %1463 = vmatprep.subr.mxu0 0.0
        %1464 = vmatpush1.msra.mxu0 0.0
        %1465 = vmatprep.subr.mxu0 0.0
        %1466 = vmatpush1.msra.mxu0 0.0
        %1467 = vmatprep.subr.mxu0 0.0
        %1468 = vmatpush1.msra.mxu0 0.0
        %1469 = vmatprep.subr.mxu0 0.0
        %1470 = vmatpush1.msra.mxu0 0.0
        %1471 = vmatprep.subr.mxu0 0.0
        %1472 = vmatpush1.msra.mxu0 0.0
        %1473 = vmatprep.subr.mxu0 0.0
        %1474 = vmatpush1.msra.mxu0 0.0
        %1475 = vmatprep.subr.mxu0 0.0
        %1476 = vmatpush1.msra.mxu0 0.0
        %1477 = vmatprep.subr.mxu0 0.0
        %1478 = vmatpush1.msra.mxu0 0.0
        %1479 = vmatprep.subr.mxu0 0.0
        %1480 = vmatpush1.msra.mxu0 0.0
        %1481 = vmatprep.subr.mxu0 0.0
        %1482 = vmatpush1.msra.mxu0 0.0
        %1483 = vmatprep.subr.mxu0 0.0
        %1484 = vmatpush1.msra.mxu0 0.0
        %1485 = vmatprep.subr.mxu0 0.0
        %1486 = vmatpush1.msra.mxu0 0.0
        %1487 = vmatprep.subr.mxu0 0.0
        %1488 = vmatpush1.msra.mxu0 0.0
        %1489 = vmatprep.subr.mxu0 0.0
        %1490 = vmatpush1.msra.mxu0 0.0
        %1491 = vmatprep.subr.mxu0 0.0
        %1492 = vmatpush1.msra.mxu0 0.0
        %1493 = vmatprep.subr.mxu0 0.0
        %1494 = vmatpush1.msra.mxu0 0.0
        %1495 = vmatprep.subr.mxu0 0.0
        %1496 = vmatpush1.msra.mxu0 0.0
        %1497 = vmatprep.subr.mxu0 0.0
        %1498 = vmatpush1.msra.mxu0 0.0
        %1499 = vmatprep.subr.mxu0 0.0
        %1500 = vmatpush1.msra.mxu0 0.0
        %1501 = vmatprep.subr.mxu0 0.0
        %1502 = vmatpush1.msra.mxu0 0.0
        %1503 = vmatprep.mubr.f32.mxu0 0.0
        %v1504 = vand.u32 %v1432, 4294901760
        %v1505 = vsub.f32 %v1432, %v1504
        %v1506 = vand.u32 %v1505, 4294901760
        %v1507 = vsub.f32 %v1505, %v1506
        %v1508 = vand.u32 %v1507, 4294901760
        %1509 = vmatmul.mubr.f32.gmra.mrb[0].mxu0 %v1508
        %v1510 = vpop.f32.mrb[0].mxu0
        %v1511 = vadd.f32 0.0, %v1510
        %v1512 = vpop.f32.mrb[0].mxu0
        %v1513 = vadd.f32 0.0, %v1512
        %1514 = vmatprep.mubr.f32.mxu0 0.0
        %v1515 = vand.u32 %v1435, 4294901760
        %v1516 = vsub.f32 %v1435, %v1515
        %v1517 = vand.u32 %v1516, 4294901760
        %v1518 = vsub.f32 %v1516, %v1517
        %v1519 = vand.u32 %v1518, 4294901760
        %1520 = vmatmul.mubr.f32.gmra.mrb[0].mxu0 %v1519
        %v1521 = vpop.f32.mrb[0].mxu0
        %v1522 = vadd.f32 0.0, %v1521
        %v1523 = vpop.f32.mrb[0].mxu0
        %v1524 = vadd.f32 0.0, %v1523
        %1525 = vdwg.mxu0
        %v1526 = vand.u32 %v1427, 4294901760
        %v1527 = vsub.f32 %v1427, %v1526
        %v1528 = vand.u32 %v1527, 4294901760
        %v1529 = vsub.f32 %v1527, %v1528
        %v1530 = vand.u32 %v1529, 4294901760
        %1531 = vmatprep.subr.mxu0 %v1530
        %v1532 = vand.u32 %v1424, 4294901760
        %v1533 = vsub.f32 %v1424, %v1532
        %v1534 = vand.u32 %v1533, 4294901760
        %v1535 = vsub.f32 %v1533, %v1534
        %v1536 = vand.u32 %v1535, 4294901760
        %1537 = vmatpush1.msra.mxu0 %v1536
        %1538 = vmatprep.subr.mxu0 0.0
        %1539 = vmatpush1.msra.mxu0 0.0
        %1540 = vmatprep.subr.mxu0 0.0
        %1541 = vmatpush1.msra.mxu0 0.0
        %1542 = vmatprep.subr.mxu0 0.0
        %1543 = vmatpush1.msra.mxu0 0.0
        %1544 = vmatprep.subr.mxu0 0.0
        %1545 = vmatpush1.msra.mxu0 0.0
        %1546 = vmatprep.subr.mxu0 0.0
        %1547 = vmatpush1.msra.mxu0 0.0
        %1548 = vmatprep.subr.mxu0 0.0
        %1549 = vmatpush1.msra.mxu0 0.0
        %1550 = vmatprep.subr.mxu0 0.0
        %1551 = vmatpush1.msra.mxu0 0.0
        %1552 = vmatprep.subr.mxu0 0.0
        %1553 = vmatpush1.msra.mxu0 0.0
        %1554 = vmatprep.subr.mxu0 0.0
        %1555 = vmatpush1.msra.mxu0 0.0
        %1556 = vmatprep.subr.mxu0 0.0
        %1557 = vmatpush1.msra.mxu0 0.0
        %1558 = vmatprep.subr.mxu0 0.0
        %1559 = vmatpush1.msra.mxu0 0.0
        %1560 = vmatprep.subr.mxu0 0.0
        %1561 = vmatpush1.msra.mxu0 0.0
        %1562 = vmatprep.subr.mxu0 0.0
        %1563 = vmatpush1.msra.mxu0 0.0
        %1564 = vmatprep.subr.mxu0 0.0
        %1565 = vmatpush1.msra.mxu0 0.0
        %1566 = vmatprep.subr.mxu0 0.0
        %1567 = vmatpush1.msra.mxu0 0.0
        %1568 = vmatprep.subr.mxu0 0.0
        %1569 = vmatpush1.msra.mxu0 0.0
        %1570 = vmatprep.subr.mxu0 0.0
        %1571 = vmatpush1.msra.mxu0 0.0
        %1572 = vmatprep.subr.mxu0 0.0
        %1573 = vmatpush1.msra.mxu0 0.0
        %1574 = vmatprep.subr.mxu0 0.0
        %1575 = vmatpush1.msra.mxu0 0.0
        %1576 = vmatprep.subr.mxu0 0.0
        %1577 = vmatpush1.msra.mxu0 0.0
        %1578 = vmatprep.subr.mxu0 0.0
        %1579 = vmatpush1.msra.mxu0 0.0
        %1580 = vmatprep.subr.mxu0 0.0
        %1581 = vmatpush1.msra.mxu0 0.0
        %1582 = vmatprep.subr.mxu0 0.0
        %1583 = vmatpush1.msra.mxu0 0.0
        %1584 = vmatprep.subr.mxu0 0.0
        %1585 = vmatpush1.msra.mxu0 0.0
        %1586 = vmatprep.subr.mxu0 0.0
        %1587 = vmatpush1.msra.mxu0 0.0
        %1588 = vmatprep.subr.mxu0 0.0
        %1589 = vmatpush1.msra.mxu0 0.0
        %1590 = vmatprep.subr.mxu0 0.0
        %1591 = vmatpush1.msra.mxu0 0.0
        %1592 = vmatprep.subr.mxu0 0.0
        %1593 = vmatpush1.msra.mxu0 0.0
        %1594 = vmatprep.subr.mxu0 0.0
        %1595 = vmatpush1.msra.mxu0 0.0
        %1596 = vmatprep.subr.mxu0 0.0
        %1597 = vmatpush1.msra.mxu0 0.0
        %1598 = vmatprep.subr.mxu0 0.0
        %1599 = vmatpush1.msra.mxu0 0.0
        %1600 = vmatprep.mubr.f32.mxu0 0.0
        %v1601 = vand.u32 %v1432, 4294901760
        %1602 = vmatmul.mubr.f32.gmra.mrb[0].mxu0 %v1601
        %v1603 = vpop.f32.mrb[0].mxu0
        %v1604 = vadd.f32 %v1511, %v1603
        %v1605 = vpop.f32.mrb[0].mxu0
        %v1606 = vadd.f32 %v1513, %v1605
        %1607 = vmatprep.mubr.f32.mxu0 0.0
        %v1608 = vand.u32 %v1435, 4294901760
        %1609 = vmatmul.mubr.f32.gmra.mrb[0].mxu0 %v1608
        %v1610 = vpop.f32.mrb[0].mxu0
        %v1611 = vadd.f32 %v1522, %v1610
        %v1612 = vpop.f32.mrb[0].mxu0
        %v1613 = vadd.f32 %v1524, %v1612
        %1614 = vdwg.mxu0
        %v1615 = vand.u32 %v1427, 4294901760
        %v1616 = vsub.f32 %v1427, %v1615
        %1617 = vmatprep.subr.mxu0 %v1616
        %v1618 = vand.u32 %v1424, 4294901760
        %v1619 = vsub.f32 %v1424, %v1618
        %1620 = vmatpush1.msra.mxu0 %v1619
        %1621 = vmatprep.subr.mxu0 0.0
        %1622 = vmatpush1.msra.mxu0 0.0
        %1623 = vmatprep.subr.mxu0 0.0
        %1624 = vmatpush1.msra.mxu0 0.0
        %1625 = vmatprep.subr.mxu0 0.0
        %1626 = vmatpush1.msra.mxu0 0.0
        %1627 = vmatprep.subr.mxu0 0.0
        %1628 = vmatpush1.msra.mxu0 0.0
        %1629 = vmatprep.subr.mxu0 0.0
        %1630 = vmatpush1.msra.mxu0 0.0
        %1631 = vmatprep.subr.mxu0 0.0
        %1632 = vmatpush1.msra.mxu0 0.0
        %1633 = vmatprep.subr.mxu0 0.0
        %1634 = vmatpush1.msra.mxu0 0.0
        %1635 = vmatprep.subr.mxu0 0.0
        %1636 = vmatpush1.msra.mxu0 0.0
        %1637 = vmatprep.subr.mxu0 0.0
        %1638 = vmatpush1.msra.mxu0 0.0
        %1639 = vmatprep.subr.mxu0 0.0
        %1640 = vmatpush1.msra.mxu0 0.0
        %1641 = vmatprep.subr.mxu0 0.0
        %1642 = vmatpush1.msra.mxu0 0.0
        %1643 = vmatprep.subr.mxu0 0.0
        %1644 = vmatpush1.msra.mxu0 0.0
        %1645 = vmatprep.subr.mxu0 0.0
        %1646 = vmatpush1.msra.mxu0 0.0
        %1647 = vmatprep.subr.mxu0 0.0
        %1648 = vmatpush1.msra.mxu0 0.0
        %1649 = vmatprep.subr.mxu0 0.0
        %1650 = vmatpush1.msra.mxu0 0.0
        %1651 = vmatprep.subr.mxu0 0.0
        %1652 = vmatpush1.msra.mxu0 0.0
        %1653 = vmatprep.subr.mxu0 0.0
        %1654 = vmatpush1.msra.mxu0 0.0
        %1655 = vmatprep.subr.mxu0 0.0
        %1656 = vmatpush1.msra.mxu0 0.0
        %1657 = vmatprep.subr.mxu0 0.0
        %1658 = vmatpush1.msra.mxu0 0.0
        %1659 = vmatprep.subr.mxu0 0.0
        %1660 = vmatpush1.msra.mxu0 0.0
        %1661 = vmatprep.subr.mxu0 0.0
        %1662 = vmatpush1.msra.mxu0 0.0
        %1663 = vmatprep.subr.mxu0 0.0
        %1664 = vmatpush1.msra.mxu0 0.0
        %1665 = vmatprep.subr.mxu0 0.0
        %1666 = vmatpush1.msra.mxu0 0.0
        %1667 = vmatprep.subr.mxu0 0.0
        %1668 = vmatpush1.msra.mxu0 0.0
        %1669 = vmatprep.subr.mxu0 0.0
        %1670 = vmatpush1.msra.mxu0 0.0
        %1671 = vmatprep.subr.mxu0 0.0
        %1672 = vmatpush1.msra.mxu0 0.0
        %1673 = vmatprep.subr.mxu0 0.0
        %1674 = vmatpush1.msra.mxu0 0.0
        %1675 = vmatprep.subr.mxu0 0.0
        %1676 = vmatpush1.msra.mxu0 0.0
        %1677 = vmatprep.subr.mxu0 0.0
        %1678 = vmatpush1.msra.mxu0 0.0
        %1679 = vmatprep.subr.mxu0 0.0
        %1680 = vmatpush1.msra.mxu0 0.0
        %1681 = vmatprep.subr.mxu0 0.0
        %1682 = vmatpush1.msra.mxu0 0.0
        %1683 = vmatprep.mubr.f32.mxu0 0.0
        %v1684 = vand.u32 %v1432, 4294901760
        %v1685 = vsub.f32 %v1432, %v1684
        %1686 = vmatmul.mubr.f32.gmra.mrb[0].mxu0 %v1685
        %v1687 = vpop.f32.mrb[0].mxu0
        %v1688 = vadd.f32 %v1604, %v1687
        %v1689 = vpop.f32.mrb[0].mxu0
        %v1690 = vadd.f32 %v1606, %v1689
        %1691 = vmatprep.mubr.f32.mxu0 0.0
        %v1692 = vand.u32 %v1435, 4294901760
        %v1693 = vsub.f32 %v1435, %v1692
        %1694 = vmatmul.mubr.f32.gmra.mrb[0].mxu0 %v1693
        %v1695 = vpop.f32.mrb[0].mxu0
        %v1696 = vadd.f32 %v1611, %v1695
        %v1697 = vpop.f32.mrb[0].mxu0
        %v1698 = vadd.f32 %v1613, %v1697
        %1699 = vdwg.mxu0
        %v1700 = vand.u32 %v1427, 4294901760
        %1701 = vmatprep.subr.mxu0 %v1700
        %v1702 = vand.u32 %v1424, 4294901760
        %1703 = vmatpush1.msra.mxu0 %v1702
        %1704 = vmatprep.subr.mxu0 0.0
        %1705 = vmatpush1.msra.mxu0 0.0
        %1706 = vmatprep.subr.mxu0 0.0
        %1707 = vmatpush1.msra.mxu0 0.0
        %1708 = vmatprep.subr.mxu0 0.0
        %1709 = vmatpush1.msra.mxu0 0.0
        %1710 = vmatprep.subr.mxu0 0.0
        %1711 = vmatpush1.msra.mxu0 0.0
        %1712 = vmatprep.subr.mxu0 0.0
        %1713 = vmatpush1.msra.mxu0 0.0
        %1714 = vmatprep.subr.mxu0 0.0
        %1715 = vmatpush1.msra.mxu0 0.0
        %1716 = vmatprep.subr.mxu0 0.0
        %1717 = vmatpush1.msra.mxu0 0.0
        %1718 = vmatprep.subr.mxu0 0.0
        %1719 = vmatpush1.msra.mxu0 0.0
        %1720 = vmatprep.subr.mxu0 0.0
        %1721 = vmatpush1.msra.mxu0 0.0
        %1722 = vmatprep.subr.mxu0 0.0
        %1723 = vmatpush1.msra.mxu0 0.0
        %1724 = vmatprep.subr.mxu0 0.0
        %1725 = vmatpush1.msra.mxu0 0.0
        %1726 = vmatprep.subr.mxu0 0.0
        %1727 = vmatpush1.msra.mxu0 0.0
        %1728 = vmatprep.subr.mxu0 0.0
        %1729 = vmatpush1.msra.mxu0 0.0
        %1730 = vmatprep.subr.mxu0 0.0
        %1731 = vmatpush1.msra.mxu0 0.0
        %1732 = vmatprep.subr.mxu0 0.0
        %1733 = vmatpush1.msra.mxu0 0.0
        %1734 = vmatprep.subr.mxu0 0.0
        %1735 = vmatpush1.msra.mxu0 0.0
        %1736 = vmatprep.subr.mxu0 0.0
        %1737 = vmatpush1.msra.mxu0 0.0
        %1738 = vmatprep.subr.mxu0 0.0
        %1739 = vmatpush1.msra.mxu0 0.0
        %1740 = vmatprep.subr.mxu0 0.0
        %1741 = vmatpush1.msra.mxu0 0.0
        %1742 = vmatprep.subr.mxu0 0.0
        %1743 = vmatpush1.msra.mxu0 0.0
        %1744 = vmatprep.subr.mxu0 0.0
        %1745 = vmatpush1.msra.mxu0 0.0
        %1746 = vmatprep.subr.mxu0 0.0
        %1747 = vmatpush1.msra.mxu0 0.0
        %1748 = vmatprep.subr.mxu0 0.0
        %1749 = vmatpush1.msra.mxu0 0.0
        %1750 = vmatprep.subr.mxu0 0.0
        %1751 = vmatpush1.msra.mxu0 0.0
        %1752 = vmatprep.subr.mxu0 0.0
        %1753 = vmatpush1.msra.mxu0 0.0
        %1754 = vmatprep.subr.mxu0 0.0
        %1755 = vmatpush1.msra.mxu0 0.0
        %1756 = vmatprep.subr.mxu0 0.0
        %1757 = vmatpush1.msra.mxu0 0.0
        %1758 = vmatprep.subr.mxu0 0.0
        %1759 = vmatpush1.msra.mxu0 0.0
        %1760 = vmatprep.subr.mxu0 0.0
        %1761 = vmatpush1.msra.mxu0 0.0
        %1762 = vmatprep.subr.mxu0 0.0
        %1763 = vmatpush1.msra.mxu0 0.0
        %1764 = vmatprep.subr.mxu0 0.0
        %1765 = vmatpush1.msra.mxu0 0.0
        %1766 = vmatprep.mubr.f32.mxu0 0.0
        %v1767 = vand.u32 %v1432, 4294901760
        %v1768 = vsub.f32 %v1432, %v1767
        %v1769 = vand.u32 %v1768, 4294901760
        %1770 = vmatmul.mubr.f32.gmra.mrb[0].mxu0 %v1769
        %v1771 = vpop.f32.mrb[0].mxu0
        %v1772 = vadd.f32 %v1688, %v1771
        %v1773 = vpop.f32.mrb[0].mxu0
        %v1774 = vadd.f32 %v1690, %v1773
        %1775 = vmatprep.mubr.f32.mxu0 0.0
        %v1776 = vand.u32 %v1435, 4294901760
        %v1777 = vsub.f32 %v1435, %v1776
        %v1778 = vand.u32 %v1777, 4294901760
        %1779 = vmatmul.mubr.f32.gmra.mrb[0].mxu0 %v1778
        %v1780 = vpop.f32.mrb[0].mxu0
        %v1781 = vadd.f32 %v1696, %v1780
        %v1782 = vpop.f32.mrb[0].mxu0
        %v1783 = vadd.f32 %v1698, %v1782
        %1784 = vdwg.mxu0
        %v1785 = vand.u32 %v1427, 4294901760
        %v1786 = vsub.f32 %v1427, %v1785
        %v1787 = vand.u32 %v1786, 4294901760
        %1788 = vmatprep.subr.mxu0 %v1787
        %v1789 = vand.u32 %v1424, 4294901760
        %v1790 = vsub.f32 %v1424, %v1789
        %v1791 = vand.u32 %v1790, 4294901760
        %1792 = vmatpush1.msra.mxu0 %v1791
        %1793 = vmatprep.subr.mxu0 0.0
        %1794 = vmatpush1.msra.mxu0 0.0
        %1795 = vmatprep.subr.mxu0 0.0
        %1796 = vmatpush1.msra.mxu0 0.0
        %1797 = vmatprep.subr.mxu0 0.0
        %1798 = vmatpush1.msra.mxu0 0.0
        %1799 = vmatprep.subr.mxu0 0.0
        %1800 = vmatpush1.msra.mxu0 0.0
        %1801 = vmatprep.subr.mxu0 0.0
        %1802 = vmatpush1.msra.mxu0 0.0
        %1803 = vmatprep.subr.mxu0 0.0
        %1804 = vmatpush1.msra.mxu0 0.0
        %1805 = vmatprep.subr.mxu0 0.0
        %1806 = vmatpush1.msra.mxu0 0.0
        %1807 = vmatprep.subr.mxu0 0.0
        %1808 = vmatpush1.msra.mxu0 0.0
        %1809 = vmatprep.subr.mxu0 0.0
        %1810 = vmatpush1.msra.mxu0 0.0
        %1811 = vmatprep.subr.mxu0 0.0
        %1812 = vmatpush1.msra.mxu0 0.0
        %1813 = vmatprep.subr.mxu0 0.0
        %1814 = vmatpush1.msra.mxu0 0.0
        %1815 = vmatprep.subr.mxu0 0.0
        %1816 = vmatpush1.msra.mxu0 0.0
        %1817 = vmatprep.subr.mxu0 0.0
        %1818 = vmatpush1.msra.mxu0 0.0
        %1819 = vmatprep.subr.mxu0 0.0
        %1820 = vmatpush1.msra.mxu0 0.0
        %1821 = vmatprep.subr.mxu0 0.0
        %1822 = vmatpush1.msra.mxu0 0.0
        %1823 = vmatprep.subr.mxu0 0.0
        %1824 = vmatpush1.msra.mxu0 0.0
        %1825 = vmatprep.subr.mxu0 0.0
        %1826 = vmatpush1.msra.mxu0 0.0
        %1827 = vmatprep.subr.mxu0 0.0
        %1828 = vmatpush1.msra.mxu0 0.0
        %1829 = vmatprep.subr.mxu0 0.0
        %1830 = vmatpush1.msra.mxu0 0.0
        %1831 = vmatprep.subr.mxu0 0.0
        %1832 = vmatpush1.msra.mxu0 0.0
        %1833 = vmatprep.subr.mxu0 0.0
        %1834 = vmatpush1.msra.mxu0 0.0
        %1835 = vmatprep.subr.mxu0 0.0
        %1836 = vmatpush1.msra.mxu0 0.0
        %1837 = vmatprep.subr.mxu0 0.0
        %1838 = vmatpush1.msra.mxu0 0.0
        %1839 = vmatprep.subr.mxu0 0.0
        %1840 = vmatpush1.msra.mxu0 0.0
        %1841 = vmatprep.subr.mxu0 0.0
        %1842 = vmatpush1.msra.mxu0 0.0
        %1843 = vmatprep.subr.mxu0 0.0
        %1844 = vmatpush1.msra.mxu0 0.0
        %1845 = vmatprep.subr.mxu0 0.0
        %1846 = vmatpush1.msra.mxu0 0.0
        %1847 = vmatprep.subr.mxu0 0.0
        %1848 = vmatpush1.msra.mxu0 0.0
        %1849 = vmatprep.subr.mxu0 0.0
        %1850 = vmatpush1.msra.mxu0 0.0
        %1851 = vmatprep.subr.mxu0 0.0
        %1852 = vmatpush1.msra.mxu0 0.0
        %1853 = vmatprep.subr.mxu0 0.0
        %1854 = vmatpush1.msra.mxu0 0.0
        %1855 = vmatprep.mubr.f32.mxu0 0.0
        %v1856 = vand.u32 %v1432, 4294901760
        %1857 = vmatmul.mubr.f32.gmra.mrb[0].mxu0 %v1856
        %v1858 = vpop.f32.mrb[0].mxu0
        %v1859 = vadd.f32 %v1772, %v1858
        %v1860 = vpop.f32.mrb[0].mxu0
        %v1861 = vadd.f32 %v1774, %v1860
        %1862 = vmatprep.mubr.f32.mxu0 0.0
        %v1863 = vand.u32 %v1435, 4294901760
        %1864 = vmatmul.mubr.f32.gmra.mrb[0].mxu0 %v1863
        %v1865 = vpop.f32.mrb[0].mxu0
        %v1866 = vadd.f32 %v1781, %v1865
        %v1867 = vpop.f32.mrb[0].mxu0
        %v1868 = vadd.f32 %v1783, %v1867
        %1869 = vdwg.mxu0
        %v1870 = vand.u32 %v1427, 4294901760
        %1871 = vmatprep.subr.mxu0 %v1870
        %v1872 = vand.u32 %v1424, 4294901760
        %1873 = vmatpush1.msra.mxu0 %v1872
        %1874 = vmatprep.subr.mxu0 0.0
        %1875 = vmatpush1.msra.mxu0 0.0
        %1876 = vmatprep.subr.mxu0 0.0
        %1877 = vmatpush1.msra.mxu0 0.0
        %1878 = vmatprep.subr.mxu0 0.0
        %1879 = vmatpush1.msra.mxu0 0.0
        %1880 = vmatprep.subr.mxu0 0.0
        %1881 = vmatpush1.msra.mxu0 0.0
        %1882 = vmatprep.subr.mxu0 0.0
        %1883 = vmatpush1.msra.mxu0 0.0
        %1884 = vmatprep.subr.mxu0 0.0
        %1885 = vmatpush1.msra.mxu0 0.0
        %1886 = vmatprep.subr.mxu0 0.0
        %1887 = vmatpush1.msra.mxu0 0.0
        %1888 = vmatprep.subr.mxu0 0.0
        %1889 = vmatpush1.msra.mxu0 0.0
        %1890 = vmatprep.subr.mxu0 0.0
        %1891 = vmatpush1.msra.mxu0 0.0
        %1892 = vmatprep.subr.mxu0 0.0
        %1893 = vmatpush1.msra.mxu0 0.0
        %1894 = vmatprep.subr.mxu0 0.0
        %1895 = vmatpush1.msra.mxu0 0.0
        %1896 = vmatprep.subr.mxu0 0.0
        %1897 = vmatpush1.msra.mxu0 0.0
        %1898 = vmatprep.subr.mxu0 0.0
        %1899 = vmatpush1.msra.mxu0 0.0
        %1900 = vmatprep.subr.mxu0 0.0
        %1901 = vmatpush1.msra.mxu0 0.0
        %1902 = vmatprep.subr.mxu0 0.0
        %1903 = vmatpush1.msra.mxu0 0.0
        %1904 = vmatprep.subr.mxu0 0.0
        %1905 = vmatpush1.msra.mxu0 0.0
        %1906 = vmatprep.subr.mxu0 0.0
        %1907 = vmatpush1.msra.mxu0 0.0
        %1908 = vmatprep.subr.mxu0 0.0
        %1909 = vmatpush1.msra.mxu0 0.0
        %1910 = vmatprep.subr.mxu0 0.0
        %1911 = vmatpush1.msra.mxu0 0.0
        %1912 = vmatprep.subr.mxu0 0.0
        %1913 = vmatpush1.msra.mxu0 0.0
        %1914 = vmatprep.subr.mxu0 0.0
        %1915 = vmatpush1.msra.mxu0 0.0
        %1916 = vmatprep.subr.mxu0 0.0
        %1917 = vmatpush1.msra.mxu0 0.0
        %1918 = vmatprep.subr.mxu0 0.0
        %1919 = vmatpush1.msra.mxu0 0.0
        %1920 = vmatprep.subr.mxu0 0.0
        %1921 = vmatpush1.msra.mxu0 0.0
        %1922 = vmatprep.subr.mxu0 0.0
        %1923 = vmatpush1.msra.mxu0 0.0
        %1924 = vmatprep.subr.mxu0 0.0
        %1925 = vmatpush1.msra.mxu0 0.0
        %1926 = vmatprep.subr.mxu0 0.0
        %1927 = vmatpush1.msra.mxu0 0.0
        %1928 = vmatprep.subr.mxu0 0.0
        %1929 = vmatpush1.msra.mxu0 0.0
        %1930 = vmatprep.subr.mxu0 0.0
        %1931 = vmatpush1.msra.mxu0 0.0
        %1932 = vmatprep.subr.mxu0 0.0
        %1933 = vmatpush1.msra.mxu0 0.0
        %1934 = vmatprep.subr.mxu0 0.0
        %1935 = vmatpush1.msra.mxu0 0.0
        %1936 = vmatprep.mubr.f32.mxu0 0.0
        %v1937 = vand.u32 %v1432, 4294901760
        %1938 = vmatmul.mubr.f32.gmra.mrb[0].mxu0 %v1937
        %v1939 = vpop.f32.mrb[0].mxu0
        %v1940 = vadd.f32 %v1859, %v1939
        %v1941 = vpop.f32.mrb[0].mxu0
        %v1942 = vadd.f32 %v1861, %v1941
        %1943 = vmatprep.mubr.f32.mxu0 0.0
        %v1944 = vand.u32 %v1435, 4294901760
        %1945 = vmatmul.mubr.f32.gmra.mrb[0].mxu0 %v1944
        %v1946 = vpop.f32.mrb[0].mxu0
        %v1947 = vadd.f32 %v1866, %v1946
        %v1948 = vpop.f32.mrb[0].mxu0
        %v1949 = vadd.f32 %v1868, %v1948
        %1950 = vdwg.mxu0
        %v1951 = vmul.f32 %v1940, 0.70710677
        %v1952 = vmul.f32 %v1942, 0.70710677
        %v1953 = vmul.f32 %v1947, 0.70710677
        %v1954 = vmul.f32 %v1949, 0.70710677
        %v1955 = vand.u32 2147483647, %v1951
        %v1956 = vand.u32 2147483647, %v1952
        %v1957 = vand.u32 2147483647, %v1953
        %v1958 = vand.u32 2147483647, %v1954
        %v1959 = vmul.f32 %v1955, 0.3275911
        %v1960 = vmul.f32 %v1956, 0.3275911
        %v1961 = vmul.f32 %v1957, 0.3275911
        %v1962 = vmul.f32 %v1958, 0.3275911
        %v1963 = vadd.f32 %v1959, 1.0
        %v1964 = vadd.f32 %v1960, 1.0
        %v1965 = vadd.f32 %v1961, 1.0
        %v1966 = vadd.f32 %v1962, 1.0
        %v1967 = vrcp.pop %v1963
        %v1968 = vmul.f32 1.0, %v1967
        %v1969 = vrcp.pop %v1964
        %v1970 = vmul.f32 1.0, %v1969
        %v1971 = vrcp.pop %v1965
        %v1972 = vmul.f32 1.0, %v1971
        %v1973 = vrcp.pop %v1966
        %v1974 = vmul.f32 1.0, %v1973
        %v1975 = vmul.f32 %v1968, 1.0614054
        %v1976 = vmul.f32 %v1970, 1.0614054
        %v1977 = vmul.f32 %v1972, 1.0614054
        %v1978 = vmul.f32 %v1974, 1.0614054
        %v1979 = vsub.f32 %v1975, 1.4531521
        %v1980 = vsub.f32 %v1976, 1.4531521
        %v1981 = vsub.f32 %v1977, 1.4531521
        %v1982 = vsub.f32 %v1978, 1.4531521
        %v1983 = vmul.f32 %v1979, %v1968
        %v1984 = vmul.f32 %v1980, %v1970
        %v1985 = vmul.f32 %v1981, %v1972
        %v1986 = vmul.f32 %v1982, %v1974
        %v1987 = vadd.f32 %v1983, 1.4214138
        %v1988 = vadd.f32 %v1984, 1.4214138
        %v1989 = vadd.f32 %v1985, 1.4214138
        %v1990 = vadd.f32 %v1986, 1.4214138
        %v1991 = vmul.f32 %v1987, %v1968
        %v1992 = vmul.f32 %v1988, %v1970
        %v1993 = vmul.f32 %v1989, %v1972
        %v1994 = vmul.f32 %v1990, %v1974
        %v1995 = vsub.f32 %v1991, 0.28449672
        %v1996 = vsub.f32 %v1992, 0.28449672
        %v1997 = vsub.f32 %v1993, 0.28449672
        %v1998 = vsub.f32 %v1994, 0.28449672
        %v1999 = vmul.f32 %v1995, %v1968
        %v2000 = vmul.f32 %v1996, %v1970
        %v2001 = vmul.f32 %v1997, %v1972
        %v2002 = vmul.f32 %v1998, %v1974
        %v2003 = vadd.f32 %v1999, 0.2548296
        %v2004 = vadd.f32 %v2000, 0.2548296
        %v2005 = vadd.f32 %v2001, 0.2548296
        %v2006 = vadd.f32 %v2002, 0.2548296
        %v2007 = vmul.f32 %v2003, %v1968
        %v2008 = vmul.f32 %v2004, %v1970
        %v2009 = vmul.f32 %v2005, %v1972
        %v2010 = vmul.f32 %v2006, %v1974
        %v2011 = vsub.f32 0.0, %v1955
        %v2012 = vsub.f32 0.0, %v1956
        %v2013 = vsub.f32 0.0, %v1957
        %v2014 = vsub.f32 0.0, %v1958
        %v2015 = vmul.f32 %v2011, %v1955
        %v2016 = vmul.f32 %v2012, %v1956
        %v2017 = vmul.f32 %v2013, %v1957
        %v2018 = vmul.f32 %v2014, %v1958
        %v2019 = vmul.f32 %v2015, 1.442695
        %v2020 = vpow.pop %v2019
        %v2021 = vmul.f32 %v2016, 1.442695
        %v2022 = vpow.pop %v2021
        %v2023 = vmul.f32 %v2017, 1.442695
        %v2024 = vpow.pop %v2023
        %v2025 = vmul.f32 %v2018, 1.442695
        %v2026 = vpow.pop %v2025
        %v2027 = vmul.f32 %v2007, %v2020
        %v2028 = vmul.f32 %v2008, %v2022
        %v2029 = vmul.f32 %v2009, %v2024
        %v2030 = vmul.f32 %v2010, %v2026
        %v2031 = vsub.f32 1.0, %v2027
        %v2032 = vsub.f32 1.0, %v2028
        %v2033 = vsub.f32 1.0, %v2029
        %v2034 = vsub.f32 1.0, %v2030
        %vm2035 = vcmp.lt.f32.partialorder %v1951, 0.0
        %vm2036 = vcmp.lt.f32.partialorder %v1952, 0.0
        %vm2037 = vcmp.lt.f32.partialorder %v1953, 0.0
        %vm2038 = vcmp.lt.f32.partialorder %v1954, 0.0
        %v2039 = vsub.f32 0.0, %v2031
        %v2040 = vsub.f32 0.0, %v2032
        %v2041 = vsub.f32 0.0, %v2033
        %v2042 = vsub.f32 0.0, %v2034
        %v2043 = vsel %vm2035, %v2039, %v2031
        %v2044 = vsel %vm2036, %v2040, %v2032
        %v2045 = vsel %vm2037, %v2041, %v2033
        %v2046 = vsel %vm2038, %v2042, %v2034
        %v2047 = vmul.f32 %v1940, 0.5
        %v2048 = vmul.f32 %v1942, 0.5
        %v2049 = vmul.f32 %v1947, 0.5
        %v2050 = vmul.f32 %v1949, 0.5
        %v2051 = vadd.f32 %v2043, 1.0
        %v2052 = vadd.f32 %v2044, 1.0
        %v2053 = vadd.f32 %v2045, 1.0
        %v2054 = vadd.f32 %v2046, 1.0
        %v2055 = vmul.f32 %v2047, %v2051
        %v2056 = vmul.f32 %v2048, %v2052
        %v2057 = vmul.f32 %v2049, %v2053
        %v2058 = vmul.f32 %v2050, %v2054
        %2061 = vrot.lane.b32.xlu0 %v2056, 17
        %v2062 = vpop.permute.xlu0 %2061
        %2063 = vrot.lane.b32.xlu0 %v2058, 17
        %v2064 = vpop.permute.xlu0 %2063
        %2069 = vrot.lane.b32.xlu0 %v2055, 17
        %v2070 = vpop.permute.xlu0 %2069
        %2071 = vrot.lane.b32.xlu0 %v2057, 17
        %v2072 = vpop.permute.xlu0 %2071
        %v2073 = vsel %vm934, %v2070, %v2062
        %v2074 = vsel %vm934, %v2072, %v2064
        %v2079 = vsel %vm934, %v2062, %v2070
        %v2080 = vsel %vm934, %v2064, %v2072
        %v2081 = vmul.f32 %v2079, %v947
        %v2082 = vmul.f32 %v2073, %v951
        %v2083 = vmul.f32 %v2080, %v947
        %v2084 = vmul.f32 %v2074, %v951
        %2085 = vrot.lane.b32.xlu0 %v2056, 16
        %v2086 = vpop.permute.xlu0 %2085
        %2087 = vrot.lane.b32.xlu0 %v2058, 16
        %v2088 = vpop.permute.xlu0 %2087
        %2091 = vrot.lane.b32.xlu0 %v2055, 16
        %v2092 = vpop.permute.xlu0 %2091
        %2093 = vrot.lane.b32.xlu0 %v2057, 16
        %v2094 = vpop.permute.xlu0 %2093
        %v2095 = vsel %vm213, %v2092, %v2086
        %v2096 = vsel %vm213, %v2094, %v2088
        %v2101 = vsel %vm213, %v2086, %v2092
        %v2102 = vsel %vm213, %v2088, %v2094
        %v2103 = vmul.f32 %v2101, %v980
        %v2104 = vmul.f32 %v2095, %v984
        %v2105 = vmul.f32 %v2102, %v980
        %v2106 = vmul.f32 %v2096, %v984
        %2107 = vrot.lane.b32.xlu0 %v2056, 15
        %v2108 = vpop.permute.xlu0 %2107
        %2109 = vrot.lane.b32.xlu0 %v2058, 15
        %v2110 = vpop.permute.xlu0 %2109
        %2113 = vrot.lane.b32.xlu0 %v2055, 15
        %v2114 = vpop.permute.xlu0 %2113
        %2115 = vrot.lane.b32.xlu0 %v2057, 15
        %v2116 = vpop.permute.xlu0 %2115
        %v2117 = vsel %vm1001, %v2114, %v2108
        %v2118 = vsel %vm1001, %v2116, %v2110
        %v2123 = vsel %vm1001, %v2108, %v2114
        %v2124 = vsel %vm1001, %v2110, %v2116
        %v2125 = vmul.f32 %v2123, %v1014
        %v2126 = vmul.f32 %v2117, %v1018
        %v2127 = vmul.f32 %v2124, %v1014
        %v2128 = vmul.f32 %v2118, %v1018
        %2129 = vrot.lane.b32.xlu0 %v2056, 1
        %v2130 = vpop.permute.xlu0 %2129
        %2131 = vrot.lane.b32.xlu0 %v2058, 1
        %v2132 = vpop.permute.xlu0 %2131
        %2135 = vrot.lane.b32.xlu0 %v2055, 1
        %v2136 = vpop.permute.xlu0 %2135
        %2137 = vrot.lane.b32.xlu0 %v2057, 1
        %v2138 = vpop.permute.xlu0 %2137
        %v2139 = vsel %vm1035, %v2136, %v2130
        %v2140 = vsel %vm1035, %v2138, %v2132
        %v2145 = vsel %vm1035, %v2130, %v2136
        %v2146 = vsel %vm1035, %v2132, %v2138
        %v2147 = vmul.f32 %v2145, %v1048
        %v2148 = vmul.f32 %v2139, %v1052
        %v2149 = vmul.f32 %v2146, %v1048
        %v2150 = vmul.f32 %v2140, %v1052
        %2151 = vrot.lane.b32.xlu0 %v2055, 127
        %v2152 = vpop.permute.xlu0 %2151
        %2153 = vrot.lane.b32.xlu0 %v2056, 127
        %v2154 = vpop.permute.xlu0 %2153
        %2155 = vrot.lane.b32.xlu0 %v2057, 127
        %v2156 = vpop.permute.xlu0 %2155
        %2157 = vrot.lane.b32.xlu0 %v2058, 127
        %v2158 = vpop.permute.xlu0 %2157
        %v2159 = vsel %vm1067, %v2152, %v2154
        %v2160 = vsel %vm1067, %v2156, %v2158
        %v2167 = vsel %vm1067, %v2154, %v2152
        %v2168 = vsel %vm1067, %v2158, %v2156
        %v2169 = vmul.f32 %v2159, %v1082
        %v2170 = vmul.f32 %v2167, %v1086
        %v2171 = vmul.f32 %v2160, %v1082
        %v2172 = vmul.f32 %v2168, %v1086
        %2173 = vrot.lane.b32.xlu0 %v2055, 113
        %v2174 = vpop.permute.xlu0 %2173
        %2175 = vrot.lane.b32.xlu0 %v2056, 113
        %v2176 = vpop.permute.xlu0 %2175
        %2177 = vrot.lane.b32.xlu0 %v2057, 113
        %v2178 = vpop.permute.xlu0 %2177
        %2179 = vrot.lane.b32.xlu0 %v2058, 113
        %v2180 = vpop.permute.xlu0 %2179
        %v2181 = vsel %vm1101, %v2174, %v2176
        %v2182 = vsel %vm1101, %v2178, %v2180
        %v2189 = vsel %vm1101, %v2176, %v2174
        %v2190 = vsel %vm1101, %v2180, %v2178
        %v2191 = vmul.f32 %v2181, %v1116
        %v2192 = vmul.f32 %v2189, %v1120
        %v2193 = vmul.f32 %v2182, %v1116
        %v2194 = vmul.f32 %v2190, %v1120
        %2195 = vrot.lane.b32.xlu0 %v2055, 112
        %v2196 = vpop.permute.xlu0 %2195
        %2197 = vrot.lane.b32.xlu0 %v2056, 112
        %v2198 = vpop.permute.xlu0 %2197
        %2199 = vrot.lane.b32.xlu0 %v2057, 112
        %v2200 = vpop.permute.xlu0 %2199
        %2201 = vrot.lane.b32.xlu0 %v2058, 112
        %v2202 = vpop.permute.xlu0 %2201
        %v2203 = vsel %vm1135, %v2196, %v2198
        %v2204 = vsel %vm1135, %v2200, %v2202
        %v2211 = vsel %vm1135, %v2198, %v2196
        %v2212 = vsel %vm1135, %v2202, %v2200
        %v2213 = vmul.f32 %v2203, %v1150
        %v2214 = vmul.f32 %v2211, %v1154
        %v2215 = vmul.f32 %v2204, %v1150
        %v2216 = vmul.f32 %v2212, %v1154
        %2217 = vrot.lane.b32.xlu0 %v2055, 111
        %v2218 = vpop.permute.xlu0 %2217
        %2219 = vrot.lane.b32.xlu0 %v2056, 111
        %v2220 = vpop.permute.xlu0 %2219
        %2221 = vrot.lane.b32.xlu0 %v2057, 111
        %v2222 = vpop.permute.xlu0 %2221
        %2223 = vrot.lane.b32.xlu0 %v2058, 111
        %v2224 = vpop.permute.xlu0 %2223
        %v2225 = vsel %vm1169, %v2218, %v2220
        %v2226 = vsel %vm1169, %v2222, %v2224
        %v2233 = vsel %vm1169, %v2220, %v2218
        %v2234 = vsel %vm1169, %v2224, %v2222
        %v2235 = vmul.f32 %v2225, %v1184
        %v2236 = vmul.f32 %v2233, %v1188
        %v2237 = vmul.f32 %v2226, %v1184
        %v2238 = vmul.f32 %v2234, %v1188
        %2240 = vset.pattern.permute.xlu0 0
        %2241 = vperm.xlu0 %2240, %v207
        %v2242 = vpop.permute.xlu0 %2241
        %v2243 = vrot.slane %v2242, 2
        %v2245 = vmul.f32 %v2081, %v2243
        %v2246 = vmul.f32 %v2082, %v2243
        %v2247 = vmul.f32 %v2083, %v2243
        %v2248 = vmul.f32 %v2084, %v2243
        %2249 = vset.pattern.permute.xlu0 1
        %2250 = vperm.xlu0 %2249, %v207
        %v2251 = vpop.permute.xlu0 %2250
        %v2252 = vrot.slane %v2251, 2
        %v2254 = vmul.f32 %v2103, %v2252
        %v2255 = vmul.f32 %v2104, %v2252
        %v2256 = vmul.f32 %v2105, %v2252
        %v2257 = vmul.f32 %v2106, %v2252
        %v2258 = vadd.f32 %v2245, %v2254
        %v2259 = vadd.f32 %v2246, %v2255
        %v2260 = vadd.f32 %v2247, %v2256
        %v2261 = vadd.f32 %v2248, %v2257
        %2262 = vset.pattern.permute.xlu0 2
        %2263 = vperm.xlu0 %2262, %v207
        %v2264 = vpop.permute.xlu0 %2263
        %v2265 = vrot.slane %v2264, 2
        %v2267 = vmul.f32 %v2125, %v2265
        %v2268 = vmul.f32 %v2126, %v2265
        %v2269 = vmul.f32 %v2127, %v2265
        %v2270 = vmul.f32 %v2128, %v2265
        %v2271 = vadd.f32 %v2258, %v2267
        %v2272 = vadd.f32 %v2259, %v2268
        %v2273 = vadd.f32 %v2260, %v2269
        %v2274 = vadd.f32 %v2261, %v2270
        %2275 = vset.pattern.permute.xlu0 3
        %2276 = vperm.xlu0 %2275, %v207
        %v2277 = vpop.permute.xlu0 %2276
        %v2278 = vrot.slane %v2277, 2
        %v2280 = vmul.f32 %v2147, %v2278
        %v2281 = vmul.f32 %v2148, %v2278
        %v2282 = vmul.f32 %v2149, %v2278
        %v2283 = vmul.f32 %v2150, %v2278
        %v2284 = vadd.f32 %v2271, %v2280
        %v2285 = vadd.f32 %v2272, %v2281
        %v2286 = vadd.f32 %v2273, %v2282
        %v2287 = vadd.f32 %v2274, %v2283
        %2288 = vset.pattern.permute.xlu0 4
        %2289 = vperm.xlu0 %2288, %v207
        %v2290 = vpop.permute.xlu0 %2289
        %v2291 = vrot.slane %v2290, 2
        %v2293 = vmul.f32 %v2055, %v2291
        %v2294 = vmul.f32 %v2056, %v2291
        %v2295 = vmul.f32 %v2057, %v2291
        %v2296 = vmul.f32 %v2058, %v2291
        %v2297 = vadd.f32 %v2284, %v2293
        %v2298 = vadd.f32 %v2285, %v2294
        %v2299 = vadd.f32 %v2286, %v2295
        %v2300 = vadd.f32 %v2287, %v2296
        %2301 = vset.pattern.permute.xlu0 5
        %2302 = vperm.xlu0 %2301, %v207
        %v2303 = vpop.permute.xlu0 %2302
        %v2304 = vrot.slane %v2303, 2
        %v2306 = vmul.f32 %v2169, %v2304
        %v2307 = vmul.f32 %v2170, %v2304
        %v2308 = vmul.f32 %v2171, %v2304
        %v2309 = vmul.f32 %v2172, %v2304
        %v2310 = vadd.f32 %v2297, %v2306
        %v2311 = vadd.f32 %v2298, %v2307
        %v2312 = vadd.f32 %v2299, %v2308
        %v2313 = vadd.f32 %v2300, %v2309
        %2314 = vset.pattern.permute.xlu0 6
        %2315 = vperm.xlu0 %2314, %v207
        %v2316 = vpop.permute.xlu0 %2315
        %v2317 = vrot.slane %v2316, 2
        %v2319 = vmul.f32 %v2191, %v2317
        %v2320 = vmul.f32 %v2192, %v2317
        %v2321 = vmul.f32 %v2193, %v2317
        %v2322 = vmul.f32 %v2194, %v2317
        %v2323 = vadd.f32 %v2310, %v2319
        %v2324 = vadd.f32 %v2311, %v2320
        %v2325 = vadd.f32 %v2312, %v2321
        %v2326 = vadd.f32 %v2313, %v2322
        %2327 = vset.pattern.permute.xlu0 7
        %2328 = vperm.xlu0 %2327, %v207
        %v2329 = vpop.permute.xlu0 %2328
        %v2330 = vrot.slane %v2329, 2
        %v2332 = vmul.f32 %v2213, %v2330
        %v2333 = vmul.f32 %v2214, %v2330
        %v2334 = vmul.f32 %v2215, %v2330
        %v2335 = vmul.f32 %v2216, %v2330
        %v2336 = vadd.f32 %v2323, %v2332
        %v2337 = vadd.f32 %v2324, %v2333
        %v2338 = vadd.f32 %v2325, %v2334
        %v2339 = vadd.f32 %v2326, %v2335
        %2340 = vset.pattern.permute.xlu0 8
        %2341 = vperm.xlu0 %2340, %v207
        %v2342 = vpop.permute.xlu0 %2341
        %v2343 = vrot.slane %v2342, 2
        %v2345 = vmul.f32 %v2235, %v2343
        %v2346 = vmul.f32 %v2236, %v2343
        %v2347 = vmul.f32 %v2237, %v2343
        %v2348 = vmul.f32 %v2238, %v2343
        %v2349 = vadd.f32 %v2336, %v2345
        %v2350 = vadd.f32 %v2337, %v2346
        %v2351 = vadd.f32 %v2338, %v2347
        %v2352 = vadd.f32 %v2339, %v2348
        %v2353 = vmul.f32 %v2349, 0.70710677
        %v2354 = vmul.f32 %v2350, 0.70710677
        %v2355 = vmul.f32 %v2351, 0.70710677
        %v2356 = vmul.f32 %v2352, 0.70710677
        %v2357 = vand.u32 2147483647, %v2353
        %v2358 = vand.u32 2147483647, %v2354
        %v2359 = vand.u32 2147483647, %v2355
        %v2360 = vand.u32 2147483647, %v2356
        %v2361 = vmul.f32 %v2357, 0.3275911
        %v2362 = vmul.f32 %v2358, 0.3275911
        %v2363 = vmul.f32 %v2359, 0.3275911
        %v2364 = vmul.f32 %v2360, 0.3275911
        %v2365 = vadd.f32 %v2361, 1.0
        %v2366 = vadd.f32 %v2362, 1.0
        %v2367 = vadd.f32 %v2363, 1.0
        %v2368 = vadd.f32 %v2364, 1.0
        %v2369 = vrcp.pop %v2365
        %v2370 = vmul.f32 1.0, %v2369
        %v2371 = vrcp.pop %v2366
        %v2372 = vmul.f32 1.0, %v2371
        %v2373 = vrcp.pop %v2367
        %v2374 = vmul.f32 1.0, %v2373
        %v2375 = vrcp.pop %v2368
        %v2376 = vmul.f32 1.0, %v2375
        %v2377 = vmul.f32 %v2370, 1.0614054
        %v2378 = vmul.f32 %v2372, 1.0614054
        %v2379 = vmul.f32 %v2374, 1.0614054
        %v2380 = vmul.f32 %v2376, 1.0614054
        %v2381 = vsub.f32 %v2377, 1.4531521
        %v2382 = vsub.f32 %v2378, 1.4531521
        %v2383 = vsub.f32 %v2379, 1.4531521
        %v2384 = vsub.f32 %v2380, 1.4531521
        %v2385 = vmul.f32 %v2381, %v2370
        %v2386 = vmul.f32 %v2382, %v2372
        %v2387 = vmul.f32 %v2383, %v2374
        %v2388 = vmul.f32 %v2384, %v2376
        %v2389 = vadd.f32 %v2385, 1.4214138
        %v2390 = vadd.f32 %v2386, 1.4214138
        %v2391 = vadd.f32 %v2387, 1.4214138
        %v2392 = vadd.f32 %v2388, 1.4214138
        %v2393 = vmul.f32 %v2389, %v2370
        %v2394 = vmul.f32 %v2390, %v2372
        %v2395 = vmul.f32 %v2391, %v2374
        %v2396 = vmul.f32 %v2392, %v2376
        %v2397 = vsub.f32 %v2393, 0.28449672
        %v2398 = vsub.f32 %v2394, 0.28449672
        %v2399 = vsub.f32 %v2395, 0.28449672
        %v2400 = vsub.f32 %v2396, 0.28449672
        %v2401 = vmul.f32 %v2397, %v2370
        %v2402 = vmul.f32 %v2398, %v2372
        %v2403 = vmul.f32 %v2399, %v2374
        %v2404 = vmul.f32 %v2400, %v2376
        %v2405 = vadd.f32 %v2401, 0.2548296
        %v2406 = vadd.f32 %v2402, 0.2548296
        %v2407 = vadd.f32 %v2403, 0.2548296
        %v2408 = vadd.f32 %v2404, 0.2548296
        %v2409 = vmul.f32 %v2405, %v2370
        %v2410 = vmul.f32 %v2406, %v2372
        %v2411 = vmul.f32 %v2407, %v2374
        %v2412 = vmul.f32 %v2408, %v2376
        %v2413 = vsub.f32 0.0, %v2357
        %v2414 = vsub.f32 0.0, %v2358
        %v2415 = vsub.f32 0.0, %v2359
        %v2416 = vsub.f32 0.0, %v2360
        %v2417 = vmul.f32 %v2413, %v2357
        %v2418 = vmul.f32 %v2414, %v2358
        %v2419 = vmul.f32 %v2415, %v2359
        %v2420 = vmul.f32 %v2416, %v2360
        %v2421 = vmul.f32 %v2417, 1.442695
        %v2422 = vpow.pop %v2421
        %v2423 = vmul.f32 %v2418, 1.442695
        %v2424 = vpow.pop %v2423
        %v2425 = vmul.f32 %v2419, 1.442695
        %v2426 = vpow.pop %v2425
        %v2427 = vmul.f32 %v2420, 1.442695
        %v2428 = vpow.pop %v2427
        %v2429 = vmul.f32 %v2409, %v2422
        %v2430 = vmul.f32 %v2410, %v2424
        %v2431 = vmul.f32 %v2411, %v2426
        %v2432 = vmul.f32 %v2412, %v2428
        %v2433 = vsub.f32 1.0, %v2429
        %v2434 = vsub.f32 1.0, %v2430
        %v2435 = vsub.f32 1.0, %v2431
        %v2436 = vsub.f32 1.0, %v2432
        %vm2437 = vcmp.lt.f32.partialorder %v2353, 0.0
        %vm2438 = vcmp.lt.f32.partialorder %v2354, 0.0
        %vm2439 = vcmp.lt.f32.partialorder %v2355, 0.0
        %vm2440 = vcmp.lt.f32.partialorder %v2356, 0.0
        %v2441 = vsub.f32 0.0, %v2433
        %v2442 = vsub.f32 0.0, %v2434
        %v2443 = vsub.f32 0.0, %v2435
        %v2444 = vsub.f32 0.0, %v2436
        %v2445 = vsel %vm2437, %v2441, %v2433
        %v2446 = vsel %vm2438, %v2442, %v2434
        %v2447 = vsel %vm2439, %v2443, %v2435
        %v2448 = vsel %vm2440, %v2444, %v2436
        %v2449 = vmul.f32 %v2349, 0.5
        %v2450 = vmul.f32 %v2350, 0.5
        %v2451 = vmul.f32 %v2351, 0.5
        %v2452 = vmul.f32 %v2352, 0.5
        %v2453 = vadd.f32 %v2445, 1.0
        %v2454 = vadd.f32 %v2446, 1.0
        %v2455 = vadd.f32 %v2447, 1.0
        %v2456 = vadd.f32 %v2448, 1.0
        %v2457 = vmul.f32 %v2449, %v2453
        %v2458 = vmul.f32 %v2450, %v2454
        %v2459 = vmul.f32 %v2451, %v2455
        %v2460 = vmul.f32 %v2452, %v2456
        %v2465 = vrot.slane %v2457, 6
        %v2466 = vrot.slane %v2459, 6
        %v2467 = vsel %vm1421, %v2465, %v2466
        %v2468 = vrot.slane %v2458, 6
        %v2469 = vrot.slane %v2460, 6
        %v2470 = vsel %vm1421, %v2468, %v2469
        %vm2471 = vcmask 48128
        %v2473 = vsel %vm2471, %v208, 0
        %vm2475 = vcmask 1045504
        %v2476 = vsel %vm2475, %v2467, 0
        %v2478 = vsel %vm2475, %v2470, 0
        %v2480 = vand.u32 %v2478, 4294901760
        %2481 = vmatprep.subr.mxu0 %v2480
        %v2482 = vand.u32 %v2476, 4294901760
        %2483 = vmatpush1.msra.mxu0 %v2482
        %2484 = vmatprep.subr.mxu0 0.0
        %2485 = vmatpush1.msra.mxu0 0.0
        %2486 = vmatprep.subr.mxu0 0.0
        %2487 = vmatpush1.msra.mxu0 0.0
        %2488 = vmatprep.subr.mxu0 0.0
        %2489 = vmatpush1.msra.mxu0 0.0
        %2490 = vmatprep.subr.mxu0 0.0
        %2491 = vmatpush1.msra.mxu0 0.0
        %2492 = vmatprep.subr.mxu0 0.0
        %2493 = vmatpush1.msra.mxu0 0.0
        %2494 = vmatprep.subr.mxu0 0.0
        %2495 = vmatpush1.msra.mxu0 0.0
        %2496 = vmatprep.subr.mxu0 0.0
        %2497 = vmatpush1.msra.mxu0 0.0
        %2498 = vmatprep.subr.mxu0 0.0
        %2499 = vmatpush1.msra.mxu0 0.0
        %2500 = vmatprep.subr.mxu0 0.0
        %2501 = vmatpush1.msra.mxu0 0.0
        %2502 = vmatprep.subr.mxu0 0.0
        %2503 = vmatpush1.msra.mxu0 0.0
        %2504 = vmatprep.subr.mxu0 0.0
        %2505 = vmatpush1.msra.mxu0 0.0
        %2506 = vmatprep.subr.mxu0 0.0
        %2507 = vmatpush1.msra.mxu0 0.0
        %2508 = vmatprep.subr.mxu0 0.0
        %2509 = vmatpush1.msra.mxu0 0.0
        %2510 = vmatprep.subr.mxu0 0.0
        %2511 = vmatpush1.msra.mxu0 0.0
        %2512 = vmatprep.subr.mxu0 0.0
        %2513 = vmatpush1.msra.mxu0 0.0
        %2514 = vmatprep.subr.mxu0 0.0
        %2515 = vmatpush1.msra.mxu0 0.0
        %2516 = vmatprep.subr.mxu0 0.0
        %2517 = vmatpush1.msra.mxu0 0.0
        %2518 = vmatprep.subr.mxu0 0.0
        %2519 = vmatpush1.msra.mxu0 0.0
        %2520 = vmatprep.subr.mxu0 0.0
        %2521 = vmatpush1.msra.mxu0 0.0
        %2522 = vmatprep.subr.mxu0 0.0
        %2523 = vmatpush1.msra.mxu0 0.0
        %2524 = vmatprep.subr.mxu0 0.0
        %2525 = vmatpush1.msra.mxu0 0.0
        %2526 = vmatprep.subr.mxu0 0.0
        %2527 = vmatpush1.msra.mxu0 0.0
        %2528 = vmatprep.subr.mxu0 0.0
        %2529 = vmatpush1.msra.mxu0 0.0
        %2530 = vmatprep.subr.mxu0 0.0
        %2531 = vmatpush1.msra.mxu0 0.0
        %2532 = vmatprep.subr.mxu0 0.0
        %2533 = vmatpush1.msra.mxu0 0.0
        %2534 = vmatprep.subr.mxu0 0.0
        %2535 = vmatpush1.msra.mxu0 0.0
        %2536 = vmatprep.subr.mxu0 0.0
        %2537 = vmatpush1.msra.mxu0 0.0
        %2538 = vmatprep.subr.mxu0 0.0
        %2539 = vmatpush1.msra.mxu0 0.0
        %2540 = vmatprep.subr.mxu0 0.0
        %2541 = vmatpush1.msra.mxu0 0.0
        %2542 = vmatprep.subr.mxu0 0.0
        %2543 = vmatpush1.msra.mxu0 0.0
        %2544 = vmatprep.subr.mxu0 0.0
        %2545 = vmatpush1.msra.mxu0 0.0
        %2546 = vmatprep.mubr.f32.mxu0 0.0
        %v2547 = vand.u32 %v2473, 4294901760
        %v2548 = vsub.f32 %v2473, %v2547
        %v2549 = vand.u32 %v2548, 4294901760
        %v2550 = vsub.f32 %v2548, %v2549
        %v2551 = vand.u32 %v2550, 4294901760
        %2552 = vmatmul.mubr.f32.gmra.mrb[0].mxu0 %v2551
        %v2553 = vpop.f32.mrb[0].mxu0
        %v2554 = vadd.f32 0.0, %v2553
        %v2555 = vpop.f32.mrb[0].mxu0
        %v2556 = vadd.f32 0.0, %v2555
        %2557 = vdwg.mxu0
        %v2558 = vand.u32 %v2478, 4294901760
        %v2559 = vsub.f32 %v2478, %v2558
        %v2560 = vand.u32 %v2559, 4294901760
        %v2561 = vsub.f32 %v2559, %v2560
        %v2562 = vand.u32 %v2561, 4294901760
        %2563 = vmatprep.subr.mxu0 %v2562
        %v2564 = vand.u32 %v2476, 4294901760
        %v2565 = vsub.f32 %v2476, %v2564
        %v2566 = vand.u32 %v2565, 4294901760
        %v2567 = vsub.f32 %v2565, %v2566
        %v2568 = vand.u32 %v2567, 4294901760
        %2569 = vmatpush1.msra.mxu0 %v2568
        %2570 = vmatprep.subr.mxu0 0.0
        %2571 = vmatpush1.msra.mxu0 0.0
        %2572 = vmatprep.subr.mxu0 0.0
        %2573 = vmatpush1.msra.mxu0 0.0
        %2574 = vmatprep.subr.mxu0 0.0
        %2575 = vmatpush1.msra.mxu0 0.0
        %2576 = vmatprep.subr.mxu0 0.0
        %2577 = vmatpush1.msra.mxu0 0.0
        %2578 = vmatprep.subr.mxu0 0.0
        %2579 = vmatpush1.msra.mxu0 0.0
        %2580 = vmatprep.subr.mxu0 0.0
        %2581 = vmatpush1.msra.mxu0 0.0
        %2582 = vmatprep.subr.mxu0 0.0
        %2583 = vmatpush1.msra.mxu0 0.0
        %2584 = vmatprep.subr.mxu0 0.0
        %2585 = vmatpush1.msra.mxu0 0.0
        %2586 = vmatprep.subr.mxu0 0.0
        %2587 = vmatpush1.msra.mxu0 0.0
        %2588 = vmatprep.subr.mxu0 0.0
        %2589 = vmatpush1.msra.mxu0 0.0
        %2590 = vmatprep.subr.mxu0 0.0
        %2591 = vmatpush1.msra.mxu0 0.0
        %2592 = vmatprep.subr.mxu0 0.0
        %2593 = vmatpush1.msra.mxu0 0.0
        %2594 = vmatprep.subr.mxu0 0.0
        %2595 = vmatpush1.msra.mxu0 0.0
        %2596 = vmatprep.subr.mxu0 0.0
        %2597 = vmatpush1.msra.mxu0 0.0
        %2598 = vmatprep.subr.mxu0 0.0
        %2599 = vmatpush1.msra.mxu0 0.0
        %2600 = vmatprep.subr.mxu0 0.0
        %2601 = vmatpush1.msra.mxu0 0.0
        %2602 = vmatprep.subr.mxu0 0.0
        %2603 = vmatpush1.msra.mxu0 0.0
        %2604 = vmatprep.subr.mxu0 0.0
        %2605 = vmatpush1.msra.mxu0 0.0
        %2606 = vmatprep.subr.mxu0 0.0
        %2607 = vmatpush1.msra.mxu0 0.0
        %2608 = vmatprep.subr.mxu0 0.0
        %2609 = vmatpush1.msra.mxu0 0.0
        %2610 = vmatprep.subr.mxu0 0.0
        %2611 = vmatpush1.msra.mxu0 0.0
        %2612 = vmatprep.subr.mxu0 0.0
        %2613 = vmatpush1.msra.mxu0 0.0
        %2614 = vmatprep.subr.mxu0 0.0
        %2615 = vmatpush1.msra.mxu0 0.0
        %2616 = vmatprep.subr.mxu0 0.0
        %2617 = vmatpush1.msra.mxu0 0.0
        %2618 = vmatprep.subr.mxu0 0.0
        %2619 = vmatpush1.msra.mxu0 0.0
        %2620 = vmatprep.subr.mxu0 0.0
        %2621 = vmatpush1.msra.mxu0 0.0
        %2622 = vmatprep.subr.mxu0 0.0
        %2623 = vmatpush1.msra.mxu0 0.0
        %2624 = vmatprep.subr.mxu0 0.0
        %2625 = vmatpush1.msra.mxu0 0.0
        %2626 = vmatprep.subr.mxu0 0.0
        %2627 = vmatpush1.msra.mxu0 0.0
        %2628 = vmatprep.subr.mxu0 0.0
        %2629 = vmatpush1.msra.mxu0 0.0
        %2630 = vmatprep.subr.mxu0 0.0
        %2631 = vmatpush1.msra.mxu0 0.0
        %2632 = vmatprep.mubr.f32.mxu0 0.0
        %v2633 = vand.u32 %v2473, 4294901760
        %2634 = vmatmul.mubr.f32.gmra.mrb[0].mxu0 %v2633
        %v2635 = vpop.f32.mrb[0].mxu0
        %v2636 = vadd.f32 %v2554, %v2635
        %v2637 = vpop.f32.mrb[0].mxu0
        %v2638 = vadd.f32 %v2556, %v2637
        %2639 = vdwg.mxu0
        %v2640 = vand.u32 %v2478, 4294901760
        %v2641 = vsub.f32 %v2478, %v2640
        %2642 = vmatprep.subr.mxu0 %v2641
        %v2643 = vand.u32 %v2476, 4294901760
        %v2644 = vsub.f32 %v2476, %v2643
        %2645 = vmatpush1.msra.mxu0 %v2644
        %2646 = vmatprep.subr.mxu0 0.0
        %2647 = vmatpush1.msra.mxu0 0.0
        %2648 = vmatprep.subr.mxu0 0.0
        %2649 = vmatpush1.msra.mxu0 0.0
        %2650 = vmatprep.subr.mxu0 0.0
        %2651 = vmatpush1.msra.mxu0 0.0
        %2652 = vmatprep.subr.mxu0 0.0
        %2653 = vmatpush1.msra.mxu0 0.0
        %2654 = vmatprep.subr.mxu0 0.0
        %2655 = vmatpush1.msra.mxu0 0.0
        %2656 = vmatprep.subr.mxu0 0.0
        %2657 = vmatpush1.msra.mxu0 0.0
        %2658 = vmatprep.subr.mxu0 0.0
        %2659 = vmatpush1.msra.mxu0 0.0
        %2660 = vmatprep.subr.mxu0 0.0
        %2661 = vmatpush1.msra.mxu0 0.0
        %2662 = vmatprep.subr.mxu0 0.0
        %2663 = vmatpush1.msra.mxu0 0.0
        %2664 = vmatprep.subr.mxu0 0.0
        %2665 = vmatpush1.msra.mxu0 0.0
        %2666 = vmatprep.subr.mxu0 0.0
        %2667 = vmatpush1.msra.mxu0 0.0
        %2668 = vmatprep.subr.mxu0 0.0
        %2669 = vmatpush1.msra.mxu0 0.0
        %2670 = vmatprep.subr.mxu0 0.0
        %2671 = vmatpush1.msra.mxu0 0.0
        %2672 = vmatprep.subr.mxu0 0.0
        %2673 = vmatpush1.msra.mxu0 0.0
        %2674 = vmatprep.subr.mxu0 0.0
        %2675 = vmatpush1.msra.mxu0 0.0
        %2676 = vmatprep.subr.mxu0 0.0
        %2677 = vmatpush1.msra.mxu0 0.0
        %2678 = vmatprep.subr.mxu0 0.0
        %2679 = vmatpush1.msra.mxu0 0.0
        %2680 = vmatprep.subr.mxu0 0.0
        %2681 = vmatpush1.msra.mxu0 0.0
        %2682 = vmatprep.subr.mxu0 0.0
        %2683 = vmatpush1.msra.mxu0 0.0
        %2684 = vmatprep.subr.mxu0 0.0
        %2685 = vmatpush1.msra.mxu0 0.0
        %2686 = vmatprep.subr.mxu0 0.0
        %2687 = vmatpush1.msra.mxu0 0.0
        %2688 = vmatprep.subr.mxu0 0.0
        %2689 = vmatpush1.msra.mxu0 0.0
        %2690 = vmatprep.subr.mxu0 0.0
        %2691 = vmatpush1.msra.mxu0 0.0
        %2692 = vmatprep.subr.mxu0 0.0
        %2693 = vmatpush1.msra.mxu0 0.0
        %2694 = vmatprep.subr.mxu0 0.0
        %2695 = vmatpush1.msra.mxu0 0.0
        %2696 = vmatprep.subr.mxu0 0.0
        %2697 = vmatpush1.msra.mxu0 0.0
        %2698 = vmatprep.subr.mxu0 0.0
        %2699 = vmatpush1.msra.mxu0 0.0
        %2700 = vmatprep.subr.mxu0 0.0
        %2701 = vmatpush1.msra.mxu0 0.0
        %2702 = vmatprep.subr.mxu0 0.0
        %2703 = vmatpush1.msra.mxu0 0.0
        %2704 = vmatprep.subr.mxu0 0.0
        %2705 = vmatpush1.msra.mxu0 0.0
        %2706 = vmatprep.subr.mxu0 0.0
        %2707 = vmatpush1.msra.mxu0 0.0
        %2708 = vmatprep.mubr.f32.mxu0 0.0
        %v2709 = vand.u32 %v2473, 4294901760
        %v2710 = vsub.f32 %v2473, %v2709
        %2711 = vmatmul.mubr.f32.gmra.mrb[0].mxu0 %v2710
        %v2712 = vpop.f32.mrb[0].mxu0
        %v2713 = vadd.f32 %v2636, %v2712
        %v2714 = vpop.f32.mrb[0].mxu0
        %v2715 = vadd.f32 %v2638, %v2714
        %2716 = vdwg.mxu0
        %v2717 = vand.u32 %v2478, 4294901760
        %2718 = vmatprep.subr.mxu0 %v2717
        %v2719 = vand.u32 %v2476, 4294901760
        %2720 = vmatpush1.msra.mxu0 %v2719
        %2721 = vmatprep.subr.mxu0 0.0
        %2722 = vmatpush1.msra.mxu0 0.0
        %2723 = vmatprep.subr.mxu0 0.0
        %2724 = vmatpush1.msra.mxu0 0.0
        %2725 = vmatprep.subr.mxu0 0.0
        %2726 = vmatpush1.msra.mxu0 0.0
        %2727 = vmatprep.subr.mxu0 0.0
        %2728 = vmatpush1.msra.mxu0 0.0
        %2729 = vmatprep.subr.mxu0 0.0
        %2730 = vmatpush1.msra.mxu0 0.0
        %2731 = vmatprep.subr.mxu0 0.0
        %2732 = vmatpush1.msra.mxu0 0.0
        %2733 = vmatprep.subr.mxu0 0.0
        %2734 = vmatpush1.msra.mxu0 0.0
        %2735 = vmatprep.subr.mxu0 0.0
        %2736 = vmatpush1.msra.mxu0 0.0
        %2737 = vmatprep.subr.mxu0 0.0
        %2738 = vmatpush1.msra.mxu0 0.0
        %2739 = vmatprep.subr.mxu0 0.0
        %2740 = vmatpush1.msra.mxu0 0.0
        %2741 = vmatprep.subr.mxu0 0.0
        %2742 = vmatpush1.msra.mxu0 0.0
        %2743 = vmatprep.subr.mxu0 0.0
        %2744 = vmatpush1.msra.mxu0 0.0
        %2745 = vmatprep.subr.mxu0 0.0
        %2746 = vmatpush1.msra.mxu0 0.0
        %2747 = vmatprep.subr.mxu0 0.0
        %2748 = vmatpush1.msra.mxu0 0.0
        %2749 = vmatprep.subr.mxu0 0.0
        %2750 = vmatpush1.msra.mxu0 0.0
        %2751 = vmatprep.subr.mxu0 0.0
        %2752 = vmatpush1.msra.mxu0 0.0
        %2753 = vmatprep.subr.mxu0 0.0
        %2754 = vmatpush1.msra.mxu0 0.0
        %2755 = vmatprep.subr.mxu0 0.0
        %2756 = vmatpush1.msra.mxu0 0.0
        %2757 = vmatprep.subr.mxu0 0.0
        %2758 = vmatpush1.msra.mxu0 0.0
        %2759 = vmatprep.subr.mxu0 0.0
        %2760 = vmatpush1.msra.mxu0 0.0
        %2761 = vmatprep.subr.mxu0 0.0
        %2762 = vmatpush1.msra.mxu0 0.0
        %2763 = vmatprep.subr.mxu0 0.0
        %2764 = vmatpush1.msra.mxu0 0.0
        %2765 = vmatprep.subr.mxu0 0.0
        %2766 = vmatpush1.msra.mxu0 0.0
        %2767 = vmatprep.subr.mxu0 0.0
        %2768 = vmatpush1.msra.mxu0 0.0
        %2769 = vmatprep.subr.mxu0 0.0
        %2770 = vmatpush1.msra.mxu0 0.0
        %2771 = vmatprep.subr.mxu0 0.0
        %2772 = vmatpush1.msra.mxu0 0.0
        %2773 = vmatprep.subr.mxu0 0.0
        %2774 = vmatpush1.msra.mxu0 0.0
        %2775 = vmatprep.subr.mxu0 0.0
        %2776 = vmatpush1.msra.mxu0 0.0
        %2777 = vmatprep.subr.mxu0 0.0
        %2778 = vmatpush1.msra.mxu0 0.0
        %2779 = vmatprep.subr.mxu0 0.0
        %2780 = vmatpush1.msra.mxu0 0.0
        %2781 = vmatprep.subr.mxu0 0.0
        %2782 = vmatpush1.msra.mxu0 0.0
        %2783 = vmatprep.mubr.f32.mxu0 0.0
        %v2784 = vand.u32 %v2473, 4294901760
        %v2785 = vsub.f32 %v2473, %v2784
        %v2786 = vand.u32 %v2785, 4294901760
        %2787 = vmatmul.mubr.f32.gmra.mrb[0].mxu0 %v2786
        %v2788 = vpop.f32.mrb[0].mxu0
        %v2789 = vadd.f32 %v2713, %v2788
        %v2790 = vpop.f32.mrb[0].mxu0
        %v2791 = vadd.f32 %v2715, %v2790
        %2792 = vdwg.mxu0
        %v2793 = vand.u32 %v2478, 4294901760
        %v2794 = vsub.f32 %v2478, %v2793
        %v2795 = vand.u32 %v2794, 4294901760
        %2796 = vmatprep.subr.mxu0 %v2795
        %v2797 = vand.u32 %v2476, 4294901760
        %v2798 = vsub.f32 %v2476, %v2797
        %v2799 = vand.u32 %v2798, 4294901760
        %2800 = vmatpush1.msra.mxu0 %v2799
        %2801 = vmatprep.subr.mxu0 0.0
        %2802 = vmatpush1.msra.mxu0 0.0
        %2803 = vmatprep.subr.mxu0 0.0
        %2804 = vmatpush1.msra.mxu0 0.0
        %2805 = vmatprep.subr.mxu0 0.0
        %2806 = vmatpush1.msra.mxu0 0.0
        %2807 = vmatprep.subr.mxu0 0.0
        %2808 = vmatpush1.msra.mxu0 0.0
        %2809 = vmatprep.subr.mxu0 0.0
        %2810 = vmatpush1.msra.mxu0 0.0
        %2811 = vmatprep.subr.mxu0 0.0
        %2812 = vmatpush1.msra.mxu0 0.0
        %2813 = vmatprep.subr.mxu0 0.0
        %2814 = vmatpush1.msra.mxu0 0.0
        %2815 = vmatprep.subr.mxu0 0.0
        %2816 = vmatpush1.msra.mxu0 0.0
        %2817 = vmatprep.subr.mxu0 0.0
        %2818 = vmatpush1.msra.mxu0 0.0
        %2819 = vmatprep.subr.mxu0 0.0
        %2820 = vmatpush1.msra.mxu0 0.0
        %2821 = vmatprep.subr.mxu0 0.0
        %2822 = vmatpush1.msra.mxu0 0.0
        %2823 = vmatprep.subr.mxu0 0.0
        %2824 = vmatpush1.msra.mxu0 0.0
        %2825 = vmatprep.subr.mxu0 0.0
        %2826 = vmatpush1.msra.mxu0 0.0
        %2827 = vmatprep.subr.mxu0 0.0
        %2828 = vmatpush1.msra.mxu0 0.0
        %2829 = vmatprep.subr.mxu0 0.0
        %2830 = vmatpush1.msra.mxu0 0.0
        %2831 = vmatprep.subr.mxu0 0.0
        %2832 = vmatpush1.msra.mxu0 0.0
        %2833 = vmatprep.subr.mxu0 0.0
        %2834 = vmatpush1.msra.mxu0 0.0
        %2835 = vmatprep.subr.mxu0 0.0
        %2836 = vmatpush1.msra.mxu0 0.0
        %2837 = vmatprep.subr.mxu0 0.0
        %2838 = vmatpush1.msra.mxu0 0.0
        %2839 = vmatprep.subr.mxu0 0.0
        %2840 = vmatpush1.msra.mxu0 0.0
        %2841 = vmatprep.subr.mxu0 0.0
        %2842 = vmatpush1.msra.mxu0 0.0
        %2843 = vmatprep.subr.mxu0 0.0
        %2844 = vmatpush1.msra.mxu0 0.0
        %2845 = vmatprep.subr.mxu0 0.0
        %2846 = vmatpush1.msra.mxu0 0.0
        %2847 = vmatprep.subr.mxu0 0.0
        %2848 = vmatpush1.msra.mxu0 0.0
        %2849 = vmatprep.subr.mxu0 0.0
        %2850 = vmatpush1.msra.mxu0 0.0
        %2851 = vmatprep.subr.mxu0 0.0
        %2852 = vmatpush1.msra.mxu0 0.0
        %2853 = vmatprep.subr.mxu0 0.0
        %2854 = vmatpush1.msra.mxu0 0.0
        %2855 = vmatprep.subr.mxu0 0.0
        %2856 = vmatpush1.msra.mxu0 0.0
        %2857 = vmatprep.subr.mxu0 0.0
        %2858 = vmatpush1.msra.mxu0 0.0
        %2859 = vmatprep.subr.mxu0 0.0
        %2860 = vmatpush1.msra.mxu0 0.0
        %2861 = vmatprep.subr.mxu0 0.0
        %2862 = vmatpush1.msra.mxu0 0.0
        %2863 = vmatprep.mubr.f32.mxu0 0.0
        %v2864 = vand.u32 %v2473, 4294901760
        %2865 = vmatmul.mubr.f32.gmra.mrb[0].mxu0 %v2864
        %v2866 = vpop.f32.mrb[0].mxu0
        %v2867 = vadd.f32 %v2789, %v2866
        %v2868 = vpop.f32.mrb[0].mxu0
        %v2869 = vadd.f32 %v2791, %v2868
        %2870 = vdwg.mxu0
        %v2871 = vand.u32 %v2478, 4294901760
        %2872 = vmatprep.subr.mxu0 %v2871
        %v2873 = vand.u32 %v2476, 4294901760
        %2874 = vmatpush1.msra.mxu0 %v2873
        %2875 = vmatprep.subr.mxu0 0.0
        %2876 = vmatpush1.msra.mxu0 0.0
        %2877 = vmatprep.subr.mxu0 0.0
        %2878 = vmatpush1.msra.mxu0 0.0
        %2879 = vmatprep.subr.mxu0 0.0
        %2880 = vmatpush1.msra.mxu0 0.0
        %2881 = vmatprep.subr.mxu0 0.0
        %2882 = vmatpush1.msra.mxu0 0.0
        %2883 = vmatprep.subr.mxu0 0.0
        %2884 = vmatpush1.msra.mxu0 0.0
        %2885 = vmatprep.subr.mxu0 0.0
        %2886 = vmatpush1.msra.mxu0 0.0
        %2887 = vmatprep.subr.mxu0 0.0
        %2888 = vmatpush1.msra.mxu0 0.0
        %2889 = vmatprep.subr.mxu0 0.0
        %2890 = vmatpush1.msra.mxu0 0.0
        %2891 = vmatprep.subr.mxu0 0.0
        %2892 = vmatpush1.msra.mxu0 0.0
        %2893 = vmatprep.subr.mxu0 0.0
        %2894 = vmatpush1.msra.mxu0 0.0
        %2895 = vmatprep.subr.mxu0 0.0
        %2896 = vmatpush1.msra.mxu0 0.0
        %2897 = vmatprep.subr.mxu0 0.0
        %2898 = vmatpush1.msra.mxu0 0.0
        %2899 = vmatprep.subr.mxu0 0.0
        %2900 = vmatpush1.msra.mxu0 0.0
        %2901 = vmatprep.subr.mxu0 0.0
        %2902 = vmatpush1.msra.mxu0 0.0
        %2903 = vmatprep.subr.mxu0 0.0
        %2904 = vmatpush1.msra.mxu0 0.0
        %2905 = vmatprep.subr.mxu0 0.0
        %2906 = vmatpush1.msra.mxu0 0.0
        %2907 = vmatprep.subr.mxu0 0.0
        %2908 = vmatpush1.msra.mxu0 0.0
        %2909 = vmatprep.subr.mxu0 0.0
        %2910 = vmatpush1.msra.mxu0 0.0
        %2911 = vmatprep.subr.mxu0 0.0
        %2912 = vmatpush1.msra.mxu0 0.0
        %2913 = vmatprep.subr.mxu0 0.0
        %2914 = vmatpush1.msra.mxu0 0.0
        %2915 = vmatprep.subr.mxu0 0.0
        %2916 = vmatpush1.msra.mxu0 0.0
        %2917 = vmatprep.subr.mxu0 0.0
        %2918 = vmatpush1.msra.mxu0 0.0
        %2919 = vmatprep.subr.mxu0 0.0
        %2920 = vmatpush1.msra.mxu0 0.0
        %2921 = vmatprep.subr.mxu0 0.0
        %2922 = vmatpush1.msra.mxu0 0.0
        %2923 = vmatprep.subr.mxu0 0.0
        %2924 = vmatpush1.msra.mxu0 0.0
        %2925 = vmatprep.subr.mxu0 0.0
        %2926 = vmatpush1.msra.mxu0 0.0
        %2927 = vmatprep.subr.mxu0 0.0
        %2928 = vmatpush1.msra.mxu0 0.0
        %2929 = vmatprep.subr.mxu0 0.0
        %2930 = vmatpush1.msra.mxu0 0.0
        %2931 = vmatprep.subr.mxu0 0.0
        %2932 = vmatpush1.msra.mxu0 0.0
        %2933 = vmatprep.subr.mxu0 0.0
        %2934 = vmatpush1.msra.mxu0 0.0
        %2935 = vmatprep.subr.mxu0 0.0
        %2936 = vmatpush1.msra.mxu0 0.0
        %2937 = vmatprep.mubr.f32.mxu0 0.0
        %v2938 = vand.u32 %v2473, 4294901760
        %2939 = vmatmul.mubr.f32.gmra.mrb[0].mxu0 %v2938
        %v2940 = vpop.f32.mrb[0].mxu0
        %v2941 = vadd.f32 %v2867, %v2940
        %v2942 = vpop.f32.mrb[0].mxu0
        %v2943 = vadd.f32 %v2869, %v2942
        %2944 = vdwg.mxu0
        %v2945 = vmul.f32 %v2941, 0.70710677
        %v2946 = vmul.f32 %v2943, 0.70710677
        %v2947 = vand.u32 2147483647, %v2945
        %v2948 = vand.u32 2147483647, %v2946
        %v2949 = vmul.f32 %v2947, 0.3275911
        %v2950 = vmul.f32 %v2948, 0.3275911
        %v2951 = vadd.f32 %v2949, 1.0
        %v2952 = vadd.f32 %v2950, 1.0
        %v2953 = vrcp.pop %v2951
        %v2954 = vmul.f32 1.0, %v2953
        %v2955 = vrcp.pop %v2952
        %v2956 = vmul.f32 1.0, %v2955
        %v2957 = vmul.f32 %v2954, 1.0614054
        %v2958 = vmul.f32 %v2956, 1.0614054
        %v2959 = vsub.f32 %v2957, 1.4531521
        %v2960 = vsub.f32 %v2958, 1.4531521
        %v2961 = vmul.f32 %v2959, %v2954
        %v2962 = vmul.f32 %v2960, %v2956
        %v2963 = vadd.f32 %v2961, 1.4214138
        %v2964 = vadd.f32 %v2962, 1.4214138
        %v2965 = vmul.f32 %v2963, %v2954
        %v2966 = vmul.f32 %v2964, %v2956
        %v2967 = vsub.f32 %v2965, 0.28449672
        %v2968 = vsub.f32 %v2966, 0.28449672
        %v2969 = vmul.f32 %v2967, %v2954
        %v2970 = vmul.f32 %v2968, %v2956
        %v2971 = vadd.f32 %v2969, 0.2548296
        %v2972 = vadd.f32 %v2970, 0.2548296
        %v2973 = vmul.f32 %v2971, %v2954
        %v2974 = vmul.f32 %v2972, %v2956
        %v2975 = vsub.f32 0.0, %v2947
        %v2976 = vsub.f32 0.0, %v2948
        %v2977 = vmul.f32 %v2975, %v2947
        %v2978 = vmul.f32 %v2976, %v2948
        %v2979 = vmul.f32 %v2977, 1.442695
        %v2980 = vpow.pop %v2979
        %v2981 = vmul.f32 %v2978, 1.442695
        %v2982 = vpow.pop %v2981
        %v2983 = vmul.f32 %v2973, %v2980
        %v2984 = vmul.f32 %v2974, %v2982
        %v2985 = vsub.f32 1.0, %v2983
        %v2986 = vsub.f32 1.0, %v2984
        %vm2987 = vcmp.lt.f32.partialorder %v2945, 0.0
        %vm2988 = vcmp.lt.f32.partialorder %v2946, 0.0
        %v2989 = vsub.f32 0.0, %v2985
        %v2990 = vsub.f32 0.0, %v2986
        %v2991 = vsel %vm2987, %v2989, %v2985
        %v2992 = vsel %vm2988, %v2990, %v2986
        %v2993 = vmul.f32 %v2941, 0.5
        %v2994 = vmul.f32 %v2943, 0.5
        %v2995 = vadd.f32 %v2991, 1.0
        %v2996 = vadd.f32 %v2992, 1.0
        %v2997 = vmul.f32 %v2993, %v2995
        %v2998 = vmul.f32 %v2994, %v2996
        %3001 = vrot.lane.b32.xlu0 %v803, 17
        %v3002 = vpop.permute.xlu0 %3001
        %3003 = vrot.lane.b32.xlu0 %v810, 17
        %v3004 = vpop.permute.xlu0 %3003
        %3009 = vrot.lane.b32.xlu0 %v801, 17
        %v3010 = vpop.permute.xlu0 %3009
        %3011 = vrot.lane.b32.xlu0 %v808, 17
        %v3012 = vpop.permute.xlu0 %3011
        %v3013 = vsel %vm934, %v3010, %v3002
        %v3014 = vsel %vm934, %v3012, %v3004
        %v3019 = vsel %vm934, %v3002, %v3010
        %v3020 = vsel %vm934, %v3004, %v3012
        %v3021 = vmul.f32 %v3019, %v947
        %v3022 = vmul.f32 %v3013, %v951
        %v3023 = vmul.f32 %v3020, %v947
        %v3024 = vmul.f32 %v3014, %v951
        %3025 = vrot.lane.b32.xlu0 %v803, 16
        %v3026 = vpop.permute.xlu0 %3025
        %3027 = vrot.lane.b32.xlu0 %v810, 16
        %v3028 = vpop.permute.xlu0 %3027
        %3031 = vrot.lane.b32.xlu0 %v801, 16
        %v3032 = vpop.permute.xlu0 %3031
        %3033 = vrot.lane.b32.xlu0 %v808, 16
        %v3034 = vpop.permute.xlu0 %3033
        %v3035 = vsel %vm213, %v3032, %v3026
        %v3036 = vsel %vm213, %v3034, %v3028
        %v3041 = vsel %vm213, %v3026, %v3032
        %v3042 = vsel %vm213, %v3028, %v3034
        %v3043 = vmul.f32 %v3041, %v980
        %v3044 = vmul.f32 %v3035, %v984
        %v3045 = vmul.f32 %v3042, %v980
        %v3046 = vmul.f32 %v3036, %v984
        %3047 = vrot.lane.b32.xlu0 %v803, 15
        %v3048 = vpop.permute.xlu0 %3047
        %3049 = vrot.lane.b32.xlu0 %v810, 15
        %v3050 = vpop.permute.xlu0 %3049
        %3053 = vrot.lane.b32.xlu0 %v801, 15
        %v3054 = vpop.permute.xlu0 %3053
        %3055 = vrot.lane.b32.xlu0 %v808, 15
        %v3056 = vpop.permute.xlu0 %3055
        %v3057 = vsel %vm1001, %v3054, %v3048
        %v3058 = vsel %vm1001, %v3056, %v3050
        %v3063 = vsel %vm1001, %v3048, %v3054
        %v3064 = vsel %vm1001, %v3050, %v3056
        %v3065 = vmul.f32 %v3063, %v1014
        %v3066 = vmul.f32 %v3057, %v1018
        %v3067 = vmul.f32 %v3064, %v1014
        %v3068 = vmul.f32 %v3058, %v1018
        %3069 = vrot.lane.b32.xlu0 %v803, 1
        %v3070 = vpop.permute.xlu0 %3069
        %3071 = vrot.lane.b32.xlu0 %v810, 1
        %v3072 = vpop.permute.xlu0 %3071
        %3075 = vrot.lane.b32.xlu0 %v801, 1
        %v3076 = vpop.permute.xlu0 %3075
        %3077 = vrot.lane.b32.xlu0 %v808, 1
        %v3078 = vpop.permute.xlu0 %3077
        %v3079 = vsel %vm1035, %v3076, %v3070
        %v3080 = vsel %vm1035, %v3078, %v3072
        %v3085 = vsel %vm1035, %v3070, %v3076
        %v3086 = vsel %vm1035, %v3072, %v3078
        %v3087 = vmul.f32 %v3085, %v1048
        %v3088 = vmul.f32 %v3079, %v1052
        %v3089 = vmul.f32 %v3086, %v1048
        %v3090 = vmul.f32 %v3080, %v1052
        %3091 = vrot.lane.b32.xlu0 %v801, 127
        %v3092 = vpop.permute.xlu0 %3091
        %3093 = vrot.lane.b32.xlu0 %v803, 127
        %v3094 = vpop.permute.xlu0 %3093
        %3095 = vrot.lane.b32.xlu0 %v808, 127
        %v3096 = vpop.permute.xlu0 %3095
        %3097 = vrot.lane.b32.xlu0 %v810, 127
        %v3098 = vpop.permute.xlu0 %3097
        %v3099 = vsel %vm1067, %v3092, %v3094
        %v3100 = vsel %vm1067, %v3096, %v3098
        %v3107 = vsel %vm1067, %v3094, %v3092
        %v3108 = vsel %vm1067, %v3098, %v3096
        %v3109 = vmul.f32 %v3099, %v1082
        %v3110 = vmul.f32 %v3107, %v1086
        %v3111 = vmul.f32 %v3100, %v1082
        %v3112 = vmul.f32 %v3108, %v1086
        %3113 = vrot.lane.b32.xlu0 %v801, 113
        %v3114 = vpop.permute.xlu0 %3113
        %3115 = vrot.lane.b32.xlu0 %v803, 113
        %v3116 = vpop.permute.xlu0 %3115
        %3117 = vrot.lane.b32.xlu0 %v808, 113
        %v3118 = vpop.permute.xlu0 %3117
        %3119 = vrot.lane.b32.xlu0 %v810, 113
        %v3120 = vpop.permute.xlu0 %3119
        %v3121 = vsel %vm1101, %v3114, %v3116
        %v3122 = vsel %vm1101, %v3118, %v3120
        %v3129 = vsel %vm1101, %v3116, %v3114
        %v3130 = vsel %vm1101, %v3120, %v3118
        %v3131 = vmul.f32 %v3121, %v1116
        %v3132 = vmul.f32 %v3129, %v1120
        %v3133 = vmul.f32 %v3122, %v1116
        %v3134 = vmul.f32 %v3130, %v1120
        %3135 = vrot.lane.b32.xlu0 %v801, 112
        %v3136 = vpop.permute.xlu0 %3135
        %3137 = vrot.lane.b32.xlu0 %v803, 112
        %v3138 = vpop.permute.xlu0 %3137
        %3139 = vrot.lane.b32.xlu0 %v808, 112
        %v3140 = vpop.permute.xlu0 %3139
        %3141 = vrot.lane.b32.xlu0 %v810, 112
        %v3142 = vpop.permute.xlu0 %3141
        %v3143 = vsel %vm1135, %v3136, %v3138
        %v3144 = vsel %vm1135, %v3140, %v3142
        %v3151 = vsel %vm1135, %v3138, %v3136
        %v3152 = vsel %vm1135, %v3142, %v3140
        %v3153 = vmul.f32 %v3143, %v1150
        %v3154 = vmul.f32 %v3151, %v1154
        %v3155 = vmul.f32 %v3144, %v1150
        %v3156 = vmul.f32 %v3152, %v1154
        %3157 = vrot.lane.b32.xlu0 %v801, 111
        %v3158 = vpop.permute.xlu0 %3157
        %3159 = vrot.lane.b32.xlu0 %v803, 111
        %v3160 = vpop.permute.xlu0 %3159
        %3161 = vrot.lane.b32.xlu0 %v808, 111
        %v3162 = vpop.permute.xlu0 %3161
        %3163 = vrot.lane.b32.xlu0 %v810, 111
        %v3164 = vpop.permute.xlu0 %3163
        %v3165 = vsel %vm1169, %v3158, %v3160
        %v3166 = vsel %vm1169, %v3162, %v3164
        %v3173 = vsel %vm1169, %v3160, %v3158
        %v3174 = vsel %vm1169, %v3164, %v3162
        %v3175 = vmul.f32 %v3165, %v1184
        %v3176 = vmul.f32 %v3173, %v1188
        %v3177 = vmul.f32 %v3166, %v1184
        %v3178 = vmul.f32 %v3174, %v1188
        %v3179 = vadd.f32 %v3021, %v3043
        %v3180 = vadd.f32 %v3022, %v3044
        %v3181 = vadd.f32 %v3023, %v3045
        %v3182 = vadd.f32 %v3024, %v3046
        %v3183 = vadd.f32 %v3179, %v3065
        %v3184 = vadd.f32 %v3180, %v3066
        %v3185 = vadd.f32 %v3181, %v3067
        %v3186 = vadd.f32 %v3182, %v3068
        %v3187 = vadd.f32 %v3183, %v3087
        %v3188 = vadd.f32 %v3184, %v3088
        %v3189 = vadd.f32 %v3185, %v3089
        %v3190 = vadd.f32 %v3186, %v3090
        %v3191 = vadd.f32 %v3187, %v801
        %v3192 = vadd.f32 %v3188, %v803
        %v3193 = vadd.f32 %v3189, %v808
        %v3194 = vadd.f32 %v3190, %v810
        %v3195 = vadd.f32 %v3191, %v3109
        %v3196 = vadd.f32 %v3192, %v3110
        %v3197 = vadd.f32 %v3193, %v3111
        %v3198 = vadd.f32 %v3194, %v3112
        %v3199 = vadd.f32 %v3195, %v3131
        %v3200 = vadd.f32 %v3196, %v3132
        %v3201 = vadd.f32 %v3197, %v3133
        %v3202 = vadd.f32 %v3198, %v3134
        %v3203 = vadd.f32 %v3199, %v3153
        %v3204 = vadd.f32 %v3200, %v3154
        %v3205 = vadd.f32 %v3201, %v3155
        %v3206 = vadd.f32 %v3202, %v3156
        %v3207 = vadd.f32 %v3203, %v3175
        %v3208 = vadd.f32 %v3204, %v3176
        %v3209 = vadd.f32 %v3205, %v3177
        %v3210 = vadd.f32 %v3206, %v3178
        %v3212 = vlaneseq
        %v3213 = vshrl.u32 %v3212, 7
        %v3214 = vsub.s32 0, %v3213
        %v3215 = vrot.slane %v200, %v3214
        %v3216 = vlaneseq
        %v3217 = vshrl.u32 %v3216, 7
        %v3218 = vsub.s32 1, %v3217
        %v3219 = vrot.slane %v200, %v3218
        %v3222 = vmul.f32 %v3207, %v3215
        %v3223 = vmul.f32 %v3208, %v3219
        %v3224 = vmul.f32 %v3209, %v3215
        %v3225 = vmul.f32 %v3210, %v3219
        %v3226 = vmul.f32 %v3222, 0.70710677
        %v3227 = vmul.f32 %v3223, 0.70710677
        %v3228 = vmul.f32 %v3224, 0.70710677
        %v3229 = vmul.f32 %v3225, 0.70710677
        %v3230 = vand.u32 2147483647, %v3226
        %v3231 = vand.u32 2147483647, %v3227
        %v3232 = vand.u32 2147483647, %v3228
        %v3233 = vand.u32 2147483647, %v3229
        %v3234 = vmul.f32 %v3230, 0.3275911
        %v3235 = vmul.f32 %v3231, 0.3275911
        %v3236 = vmul.f32 %v3232, 0.3275911
        %v3237 = vmul.f32 %v3233, 0.3275911
        %v3238 = vadd.f32 %v3234, 1.0
        %v3239 = vadd.f32 %v3235, 1.0
        %v3240 = vadd.f32 %v3236, 1.0
        %v3241 = vadd.f32 %v3237, 1.0
        %v3242 = vrcp.pop %v3238
        %v3243 = vmul.f32 1.0, %v3242
        %v3244 = vrcp.pop %v3239
        %v3245 = vmul.f32 1.0, %v3244
        %v3246 = vrcp.pop %v3240
        %v3247 = vmul.f32 1.0, %v3246
        %v3248 = vrcp.pop %v3241
        %v3249 = vmul.f32 1.0, %v3248
        %v3250 = vmul.f32 %v3243, 1.0614054
        %v3251 = vmul.f32 %v3245, 1.0614054
        %v3252 = vmul.f32 %v3247, 1.0614054
        %v3253 = vmul.f32 %v3249, 1.0614054
        %v3254 = vsub.f32 %v3250, 1.4531521
        %v3255 = vsub.f32 %v3251, 1.4531521
        %v3256 = vsub.f32 %v3252, 1.4531521
        %v3257 = vsub.f32 %v3253, 1.4531521
        %v3258 = vmul.f32 %v3254, %v3243
        %v3259 = vmul.f32 %v3255, %v3245
        %v3260 = vmul.f32 %v3256, %v3247
        %v3261 = vmul.f32 %v3257, %v3249
        %v3262 = vadd.f32 %v3258, 1.4214138
        %v3263 = vadd.f32 %v3259, 1.4214138
        %v3264 = vadd.f32 %v3260, 1.4214138
        %v3265 = vadd.f32 %v3261, 1.4214138
        %v3266 = vmul.f32 %v3262, %v3243
        %v3267 = vmul.f32 %v3263, %v3245
        %v3268 = vmul.f32 %v3264, %v3247
        %v3269 = vmul.f32 %v3265, %v3249
        %v3270 = vsub.f32 %v3266, 0.28449672
        %v3271 = vsub.f32 %v3267, 0.28449672
        %v3272 = vsub.f32 %v3268, 0.28449672
        %v3273 = vsub.f32 %v3269, 0.28449672
        %v3274 = vmul.f32 %v3270, %v3243
        %v3275 = vmul.f32 %v3271, %v3245
        %v3276 = vmul.f32 %v3272, %v3247
        %v3277 = vmul.f32 %v3273, %v3249
        %v3278 = vadd.f32 %v3274, 0.2548296
        %v3279 = vadd.f32 %v3275, 0.2548296
        %v3280 = vadd.f32 %v3276, 0.2548296
        %v3281 = vadd.f32 %v3277, 0.2548296
        %v3282 = vmul.f32 %v3278, %v3243
        %v3283 = vmul.f32 %v3279, %v3245
        %v3284 = vmul.f32 %v3280, %v3247
        %v3285 = vmul.f32 %v3281, %v3249
        %v3286 = vsub.f32 0.0, %v3230
        %v3287 = vsub.f32 0.0, %v3231
        %v3288 = vsub.f32 0.0, %v3232
        %v3289 = vsub.f32 0.0, %v3233
        %v3290 = vmul.f32 %v3286, %v3230
        %v3291 = vmul.f32 %v3287, %v3231
        %v3292 = vmul.f32 %v3288, %v3232
        %v3293 = vmul.f32 %v3289, %v3233
        %v3294 = vmul.f32 %v3290, 1.442695
        %v3295 = vpow.pop %v3294
        %v3296 = vmul.f32 %v3291, 1.442695
        %v3297 = vpow.pop %v3296
        %v3298 = vmul.f32 %v3292, 1.442695
        %v3299 = vpow.pop %v3298
        %v3300 = vmul.f32 %v3293, 1.442695
        %v3301 = vpow.pop %v3300
        %v3302 = vmul.f32 %v3282, %v3295
        %v3303 = vmul.f32 %v3283, %v3297
        %v3304 = vmul.f32 %v3284, %v3299
        %v3305 = vmul.f32 %v3285, %v3301
        %v3306 = vsub.f32 1.0, %v3302
        %v3307 = vsub.f32 1.0, %v3303
        %v3308 = vsub.f32 1.0, %v3304
        %v3309 = vsub.f32 1.0, %v3305
        %vm3310 = vcmp.lt.f32.partialorder %v3226, 0.0
        %vm3311 = vcmp.lt.f32.partialorder %v3227, 0.0
        %vm3312 = vcmp.lt.f32.partialorder %v3228, 0.0
        %vm3313 = vcmp.lt.f32.partialorder %v3229, 0.0
        %v3314 = vsub.f32 0.0, %v3306
        %v3315 = vsub.f32 0.0, %v3307
        %v3316 = vsub.f32 0.0, %v3308
        %v3317 = vsub.f32 0.0, %v3309
        %v3318 = vsel %vm3310, %v3314, %v3306
        %v3319 = vsel %vm3311, %v3315, %v3307
        %v3320 = vsel %vm3312, %v3316, %v3308
        %v3321 = vsel %vm3313, %v3317, %v3309
        %v3322 = vmul.f32 %v3222, 0.5
        %v3323 = vmul.f32 %v3223, 0.5
        %v3324 = vmul.f32 %v3224, 0.5
        %v3325 = vmul.f32 %v3225, 0.5
        %v3326 = vadd.f32 %v3318, 1.0
        %v3327 = vadd.f32 %v3319, 1.0
        %v3328 = vadd.f32 %v3320, 1.0
        %v3329 = vadd.f32 %v3321, 1.0
        %v3330 = vmul.f32 %v3322, %v3326
        %v3331 = vmul.f32 %v3323, %v3327
        %v3332 = vmul.f32 %v3324, %v3328
        %v3333 = vmul.f32 %v3325, %v3329
        %v3334 = vrot.slane %v2055, 2
        %v3335 = vrot.slane %v2056, 2
        %v3340 = vrot.slane %v2997, 4
        %v3341 = vrot.slane %v2998, 4
        %vm3348 = vcmask 1043456
        %v3349 = vrot.slane %v3330, 4
        %v3350 = vrot.slane %v3332, 4
        %v3351 = vsel %vm3348, %v3349, %v3350
        %v3352 = vrot.slane %v3331, 4
        %v3353 = vrot.slane %v3333, 4
        %v3354 = vsel %vm3348, %v3352, %v3353
        %v3357 = vsel %vm2475, %v916, %v3334
        %v3358 = vsel %vm2475, %v917, %v3335
        %v3359 = vsel %vm3348, %v3334, %v3340
        %v3360 = vsel %vm3348, %v3335, %v3341
        %v3361 = vsel %vm1421, %v3340, %v3351
        %v3362 = vsel %vm1421, %v3341, %v3354
        %3363 = vst [vmem:[%s178] sm:$0xff] %v3357
        %3364 = vst [vmem:[%s178 + $0x8] sm:$0xff] %v3358
        %3365 = vst [vmem:[%s178 + $0x10] sm:$0xff] %v3359
        %3366 = vst [vmem:[%s178 + $0x18] sm:$0xff] %v3360
        %3367 = vst [vmem:[%s178 + $0x20] sm:$0xff] %v3361
        %3368 = vst [vmem:[%s178 + $0x28] sm:$0xff] %v3362
        %s3369 = sand.u32 %s94, 1
        %s3370 = scalar_lea.sflag [#allocation4], %s3369
        %s3371 = sand.u32 %s94, 1
        %s3372 = smul.addr %s3371, 48
        %s3373 = scalar_lea.vmem [#allocation5], %s3372
        // Predicated region
        $region37: #{tpu_custom_call.1} parent=31 // pred_check
          %p3374 = pneg %p104
        $region38: #{tpu_custom_call.1} parent=31 // pred_check_branch
          %3376 = sbr.rel (%p3374) target = $region40
        $region39: #{tpu_custom_call.1} parent=31 // pred_region
          %s3378 = ssub.s32 768, 768
          %3379 = vsyncadd %s3370, %s3378
          %s3380 = smul.addr %s18, 6
          %s3381 = smul.addr %s3380, 128
          %s3382 = scalar_lea.hbm %s3, %s3381
          %s3383 = sshll.u32 %s3373, 4
          %s3384 = int_to_ptr.vmem [resolvable:$true] %s3383
          %3389 = dma.vmem_to_hbm [thread:$0]  %s3384, 768, %s3382, %s3370, 256, 256, 16
        $region40: #{tpu_custom_call.1} parent=31 // pred_fallthru
          _
      $region32: #{tpu_custom_call.1} parent=5 // pred_fallthru
        _
      %p3390 = scmp.le.s32.totalorder 2, %s13
      // Predicated region
      $region41: #{tpu_custom_call.1} parent=5 // pred_check
        %p3391 = pneg %p3390
      $region42: #{tpu_custom_call.1} parent=5 // pred_check_branch
        %3393 = sbr.rel (%p3391) target = $region44
      $region43: #{tpu_custom_call.1} parent=5 // pred_region
        %s3394 = ssub.s32 %s13, 2
        // Predicated region
        $region45: #{tpu_custom_call.1} parent=43 // pred_check
          %p3395 = pneg %p110
        $region46: #{tpu_custom_call.1} parent=43 // pred_check_branch
          %3397 = sbr.rel (%p3395) target = $region48
        $region47: #{tpu_custom_call.1} parent=43 // pred_region
          %s3398 = sand.u32 %s95, 1
          %s3399 = scalar_lea.sflag [#allocation4], %s3398
          %s3400 = sand.u32 %s95, 1
          %s3401 = smul.addr %s3400, 48
          %s3402 = scalar_lea.vmem [#allocation5], %s3401
          %3403 = dma.done %s3399, 768
        $region48: #{tpu_custom_call.1} parent=43 // pred_fallthru
          _
      $region44: #{tpu_custom_call.1} parent=5 // pred_fallthru
        _
    $region6: #{tpu_custom_call.1} parent=1 // loop_footer
      %s17 = sadd.s32 1, %s13
    $region7: #{tpu_custom_call.1} parent=1 // loop_footer_branch
      %12 = sbr.rel target = $region3
    $region8: #{tpu_custom_call.1} parent=1 // loop_exit
      _
    %3404 = vsyncpa [#allocation3], 1
    %s3405 = scalar_lea.sflag [#allocation3], 1
    %3406 = vsyncpa %s3405, 1
    %3407 = vsyncpa [#allocation4], 1
    %s3408 = scalar_lea.sflag [#allocation4], 1
    %3409 = vsyncpa %s3408, 1

</llo_original>
